<compile_context>
chip_gen: v7x
topology: tpu7x:2x2x1
jax: 0.10.0
libtpu: 0.0.40
codegen_flags: <defaults>
</compile_context>

<pallas_src>
import functools

import jax
import jax.numpy as jnp
from jax.experimental import pallas as pl
from jax.experimental.pallas import tpu as pltpu

# Logical sizes (match the PyTorch module).
D_IN, D_H, D_Z = 784, 400, 20
# Lane-padded hidden/latent sizes (multiples of 128).  The 784 input/output width is
# kept unpadded (full-dim blocks are legal; 6 of 7 lane groups are dense).
D_H_P, D_Z_P = 512, 128
D_ML_P = 2 * D_Z_P            # fused fc21||fc22 output width: [mu | logvar]


def _round_up(x, m):
    return ((x + m - 1) // m) * m


def _vae_kernel(x_ref, eps_ref,
                w1_ref, b1_ref, wenc_ref, benc_ref,
                w3_ref, b3_ref, w4_ref, b4_ref,
                recon_ref, ml_ref):
    cdt = w1_ref.dtype                    # MXU compute dtype (f32 or bf16)

    # ---- encode: h1 = relu(x @ W1 + b1) ----
    h1 = jnp.dot(x_ref[...], w1_ref[...],
                 preferred_element_type=jnp.float32) + b1_ref[...]
    h1 = jnp.maximum(h1, 0.0)             # (tb, 512), f32

    # ---- fused fc21 || fc22: one matmul, mu in lanes [0,128), logvar in [128,256) ----
    ml = jnp.dot(h1.astype(cdt), wenc_ref[...],
                 preferred_element_type=jnp.float32) + benc_ref[...]
    mu = ml[:, :D_Z_P]                    # (tb, 128); cols 0..19 are real
    logvar = ml[:, D_Z_P:]                # (tb, 128); cols 0..19 real, rest exactly 0

    # ---- reparameterize: z = mu + eps * exp(0.5 * logvar) ----
    # Padded lanes: logvar_pad = 0 -> std = 1, eps_pad = 0 -> z_pad = mu_pad = 0.
    z = mu + eps_ref[...] * jnp.exp(0.5 * logvar)

    # ---- decode: relu(z @ W3 + b3), sigmoid(h3 @ W4 + b4) ----
    h3 = jnp.dot(z.astype(cdt), w3_ref[...],
                 preferred_element_type=jnp.float32) + b3_ref[...]
    h3 = jnp.maximum(h3, 0.0)
    logits = jnp.dot(h3.astype(cdt), w4_ref[...],
                     preferred_element_type=jnp.float32) + b4_ref[...]

    if cdt == jnp.bfloat16:
        # bf16 EUP sigmoid on v6e/v7x (2x rate) — dominant transcendental load.
        recon = jax.nn.sigmoid(logits.astype(jnp.bfloat16))
    else:
        recon = jax.nn.sigmoid(logits)

    recon_ref[...] = recon.astype(recon_ref.dtype)
    ml_ref[...] = ml.astype(ml_ref.dtype)


def pack_params(params, compute_dtype=jnp.bfloat16):
    """Pad hidden/latent dims to lane multiples of 128, fuse fc21/fc22 into one
    (512, 256) weight, and cast weights to the MXU compute dtype (biases stay f32).
    The 784 input/output width is NOT padded (streamed at natural width)."""
    (w1, b1, w21, b21, w22, b22, w3, b3, w4, b4) = params

    def pad(a, rows, cols, dtype=jnp.float32):
        out = jnp.zeros((rows, cols), dtype)
        return out.at[:a.shape[0], :a.shape[1]].set(a.astype(dtype))

    wenc = jnp.zeros((D_H_P, D_ML_P), jnp.float32)
    wenc = wenc.at[:D_H, :D_Z].set(w21)                       # mu head
    wenc = wenc.at[:D_H, D_Z_P:D_Z_P + D_Z].set(w22)          # logvar head
    benc = jnp.zeros((1, D_ML_P), jnp.float32)
    benc = benc.at[:, :D_Z].set(b21)
    benc = benc.at[:, D_Z_P:D_Z_P + D_Z].set(b22)

    return dict(
        w1=pad(w1, D_IN, D_H_P, compute_dtype),    # (784, 512)
        b1=pad(b1, 1, D_H_P),
        wenc=wenc.astype(compute_dtype),           # (512, 256)
        benc=benc,
        w3=pad(w3, D_Z_P, D_H_P, compute_dtype),   # (128, 512)
        b3=pad(b3, 1, D_H_P),
        w4=pad(w4, D_H_P, D_IN, compute_dtype),    # (512, 784)
        b4=pad(b4, 1, D_IN),
    )


@functools.partial(jax.jit,
                   static_argnames=("tile_b", "recon_dtype", "single_buffer_weights"))
def vae_forward(x_img, eps, packed, *, tile_b=None, recon_dtype=jnp.float32,
                single_buffer_weights=False):
    """x_img: (B,1,28,28) f32 NCHW.  eps: (B,20) f32 N(0,1) noise (torch.randn_like).
    packed: output of pack_params().  Returns (recon (B,784), mu (B,20), logvar (B,20))."""
    B = x_img.shape[0]
    cdt = packed["w1"].dtype

    # ---- batch-tile selection ----
    if tile_b is None:
        tile_b = 1024 if cdt == jnp.bfloat16 else 512   # amortize per-step overhead
    b8 = _round_up(B, 8)
    tb = min(int(tile_b), b8)
    if b8 >= 16:
        # v7x megacore: keep >= 2 batch tiles so ("parallel",) feeds both TensorCores.
        tb = min(tb, _round_up((b8 + 1) // 2, 8))
    tb = _round_up(max(tb, 8), 8)
    B_pad = _round_up(B, tb)
    num_tiles = B_pad // tb

    # ---- host-side prep: NO 896-lane zero-pad of x; only pad the batch dim if needed ----
    x = x_img.reshape(B, D_IN).astype(cdt)                    # x.view(-1, 784)
    if B_pad != B:
        x = jnp.pad(x, ((0, B_pad - B), (0, 0)))
    eps_p = jnp.pad(eps.astype(jnp.float32),
                    ((0, B_pad - B), (0, D_Z_P - D_Z)))       # (B_pad, 128), zeros in pad

    batch_map = lambda i: (i, 0)
    const_map = lambda i: (0, 0)     # weights: VMEM-resident across all batch tiles
    if single_buffer_weights:
        # Halves resident-weight VMEM; only needed if VMEM ever becomes binding.
        w_spec = lambda a: pl.BlockSpec(a.shape, const_map, pipeline_mode=pl.Buffered(1))
    else:
        w_spec = lambda a: pl.BlockSpec(a.shape, const_map)

    operands = (x, eps_p,
                packed["w1"], packed["b1"], packed["wenc"], packed["benc"],
                packed["w3"], packed["b3"], packed["w4"], packed["b4"])

    in_specs = ([pl.BlockSpec((tb, D_IN), batch_map),
                 pl.BlockSpec((tb, D_Z_P), batch_map)]
                + [w_spec(a) for a in operands[2:]])
    out_specs = (pl.BlockSpec((tb, D_IN), batch_map),      # recon (784 == full last dim)
                 pl.BlockSpec((tb, D_ML_P), batch_map))    # fused [mu | logvar]
    out_shape = (jax.ShapeDtypeStruct((B_pad, D_IN), recon_dtype),
                 jax.ShapeDtypeStruct((B_pad, D_ML_P), jnp.float32))

    nbytes = lambda a: int(a.size) * a.dtype.itemsize
    cost = pl.CostEstimate(
        flops=2 * B_pad * (D_IN * D_H_P + D_H_P * D_ML_P
                           + D_Z_P * D_H_P + D_H_P * D_IN),
        transcendentals=B_pad * (D_IN + D_Z_P),             # sigmoid + exp
        bytes_accessed=(nbytes(x) + nbytes(eps_p)
                        + sum(nbytes(a) for a in operands[2:])
                        + B_pad * D_IN * jnp.dtype(recon_dtype).itemsize
                        + B_pad * D_ML_P * 4),
    )

    recon_p, ml_p = pl.pallas_call(
        _vae_kernel,
        out_shape=out_shape,
        grid=(num_tiles,),
        in_specs=in_specs,
        out_specs=out_specs,
        compiler_params=pltpu.CompilerParams(
            dimension_semantics=("parallel",),     # shard batch tiles over v7x's 2 TCs
            vmem_limit_bytes=48 << 20),            # fits larger tiles, < v7x 64 MiB VMEM
        cost_estimate=cost,
    )(*operands)

    recon = recon_p[:B]
    mu = ml_p[:B, :D_Z]
    logvar = ml_p[:B, D_Z_P:D_Z_P + D_Z]
    return recon, mu, logvar


def init_params(key):
    """Deterministic PyTorch-like init; weights stored (in, out) so kernel does x @ W + b."""
    def linear(k, fan_in, fan_out):
        kw, kb = jax.random.split(k)
        bound = 1.0 / jnp.sqrt(fan_in)
        w = jax.random.uniform(kw, (fan_in, fan_out), jnp.float32, -bound, bound)
        b = jax.random.uniform(kb, (1, fan_out), jnp.float32, -bound, bound)
        return w, b

    k1, k2, k3, k4, k5 = jax.random.split(key, 5)
    w1, b1 = linear(k1, D_IN, D_H)      # fc1: 784 -> 400
    w21, b21 = linear(k2, D_H, D_Z)     # fc21: 400 -> 20
    w22, b22 = linear(k3, D_H, D_Z)     # fc22: 400 -> 20
    w3, b3 = linear(k4, D_Z, D_H)       # fc3: 20 -> 400
    w4, b4 = linear(k5, D_H, D_IN)      # fc4: 400 -> 784
    return (w1, b1, w21, b21, w22, b22, w3, b3, w4, b4)


def vae_forward_ref(x_img, eps, params):
    """Plain-JAX reference (unpadded, f32)."""
    B = x_img.shape[0]
    x = x_img.reshape(B, D_IN)
    (w1, b1, w21, b21, w22, b22, w3, b3, w4, b4) = params
    h1 = jnp.maximum(x @ w1 + b1, 0.0)
    mu = h1 @ w21 + b21
    logvar = h1 @ w22 + b22
    z = mu + eps * jnp.exp(0.5 * logvar)
    h3 = jnp.maximum(z @ w3 + b3, 0.0)
    recon = jax.nn.sigmoid(h3 @ w4 + b4)
    return recon, mu, logvar


if __name__ == "__main__":
    key = jax.random.PRNGKey(0)
    k_param, k_x, k_eps = jax.random.split(key, 3)

    params = init_params(k_param)

    # --- small batch (B=2): single-tile path, strict f32 check ---
    B = 2
    x_img = jax.random.uniform(k_x, (B, 1, 28, 28), jnp.float32)   # NCHW input
    eps = jax.random.normal(k_eps, (B, D_Z), jnp.float32)          # reparam noise
    packed_f32 = pack_params(params, jnp.float32)

    recon, mu, logvar = vae_forward(x_img, eps, packed_f32)
    jax.block_until_ready((recon, mu, logvar))
    r_ref, m_ref, lv_ref = vae_forward_ref(x_img, eps, params)
    assert jnp.allclose(recon, r_ref, atol=1e-5, rtol=1e-5)
    assert jnp.allclose(mu, m_ref, atol=1e-5, rtol=1e-5)
    assert jnp.allclose(logvar, lv_ref, atol=1e-5, rtol=1e-5)

    # --- bf16 MXU path (default packing; halves HBM traffic), loose tolerance ---
    packed_bf16 = pack_params(params)          # default compute_dtype = bfloat16
    recon_b, mu_b, logvar_b = vae_forward(x_img, eps, packed_bf16)
    jax.block_until_ready((recon_b, mu_b, logvar_b))
    assert jnp.allclose(recon_b, r_ref, atol=3e-2, rtol=3e-2)
    assert jnp.allclose(mu_b, m_ref, atol=3e-2, rtol=3e-2)
    assert jnp.allclose(logvar_b, lv_ref, atol=3e-2, rtol=3e-2)

    # --- larger batch (B=512): exercises the multi-tile pipelined / megacore path ---
    kx2, ke2 = jax.random.split(jax.random.PRNGKey(1))
    B2 = 512
    x2 = jax.random.uniform(kx2, (B2, 1, 28, 28), jnp.float32)
    e2 = jax.random.normal(ke2, (B2, D_Z), jnp.float32)
    r2, m2, lv2 = vae_forward(x2, e2, packed_f32)
    jax.block_until_ready((r2, m2, lv2))
    r2_ref, m2_ref, lv2_ref = vae_forward_ref(x2, e2, params)
    assert jnp.allclose(r2, r2_ref, atol=1e-4, rtol=1e-4)
    assert jnp.allclose(m2, m2_ref, atol=1e-4, rtol=1e-4)
    assert jnp.allclose(lv2, lv2_ref, atol=1e-4, rtol=1e-4)

    print("KERNEL_OK")
</pallas_src>

<mosaic_0001>
module attributes {stable_mosaic.version = 11 : i64} {
  func.func @_vae_kernel(%arg0: i32, %arg1: memref<8x784xf32, #tpu.memory_space<vmem>>, %arg2: memref<8x128xf32, #tpu.memory_space<vmem>>, %arg3: memref<784x512xf32, #tpu.memory_space<vmem>>, %arg4: memref<1x512xf32, #tpu.memory_space<vmem>>, %arg5: memref<512x256xf32, #tpu.memory_space<vmem>>, %arg6: memref<1x256xf32, #tpu.memory_space<vmem>>, %arg7: memref<128x512xf32, #tpu.memory_space<vmem>>, %arg8: memref<1x512xf32, #tpu.memory_space<vmem>>, %arg9: memref<512x784xf32, #tpu.memory_space<vmem>>, %arg10: memref<1x784xf32, #tpu.memory_space<vmem>>, %arg11: memref<8x784xf32, #tpu.memory_space<vmem>>, %arg12: memref<8x256xf32, #tpu.memory_space<vmem>>) attributes {dimension_semantics = [#tpu.dimension_semantics<parallel>], iteration_bounds = array<i64: 1>, scalar_prefetch = 0 : i64, scratch_operands = 0 : i64, tpu.core_type = #tpu.core_type<tc>, window_params = [{transform_indices = @transform_0, window_bounds = array<i64: 8, 784>}, {transform_indices = @transform_1, window_bounds = array<i64: 8, 128>}, {pipeline_mode = #tpu.pipeline_mode<synchronous>, transform_indices = @transform_2, window_bounds = array<i64: 784, 512>}, {pipeline_mode = #tpu.pipeline_mode<synchronous>, transform_indices = @transform_3, window_bounds = array<i64: 1, 512>}, {pipeline_mode = #tpu.pipeline_mode<synchronous>, transform_indices = @transform_4, window_bounds = array<i64: 512, 256>}, {pipeline_mode = #tpu.pipeline_mode<synchronous>, transform_indices = @transform_5, window_bounds = array<i64: 1, 256>}, {pipeline_mode = #tpu.pipeline_mode<synchronous>, transform_indices = @transform_6, window_bounds = array<i64: 128, 512>}, {pipeline_mode = #tpu.pipeline_mode<synchronous>, transform_indices = @transform_7, window_bounds = array<i64: 1, 512>}, {pipeline_mode = #tpu.pipeline_mode<synchronous>, transform_indices = @transform_8, window_bounds = array<i64: 512, 784>}, {pipeline_mode = #tpu.pipeline_mode<synchronous>, transform_indices = @transform_9, window_bounds = array<i64: 1, 784>}, {transform_indices = @transform_10, window_bounds = array<i64: 8, 784>}, {transform_indices = @transform_11, window_bounds = array<i64: 8, 256>}]} {
    %c0 = arith.constant 0 : index
    %c0_0 = arith.constant 0 : index
    %0 = vector.load %arg1[%c0, %c0_0] : memref<8x784xf32, #tpu.memory_space<vmem>>, vector<8x784xf32>
    %c0_1 = arith.constant 0 : index
    %c0_2 = arith.constant 0 : index
    %1 = vector.load %arg3[%c0_1, %c0_2] : memref<784x512xf32, #tpu.memory_space<vmem>>, vector<784x512xf32>
    %cst = arith.constant dense<0.000000e+00> : vector<8x512xf32>
    %2 = tpu.matmul %0, %1, %cst {dimension_numbers = #tpu.dot_dimension_numbers<[1], [0], [0], [1], [0, 0, 1, 1], [], []>} : vector<8x784xf32>, vector<784x512xf32>, vector<8x512xf32> -> vector<8x512xf32>
    %c0_3 = arith.constant 0 : index
    %c0_4 = arith.constant 0 : index
    %3 = vector.load %arg4[%c0_3, %c0_4] : memref<1x512xf32, #tpu.memory_space<vmem>>, vector<1x512xf32>
    %4 = vector.broadcast %3 : vector<1x512xf32> to vector<8x512xf32>
    %5 = arith.addf %2, %4 : vector<8x512xf32>
    %cst_5 = arith.constant 0.000000e+00 : f32
    %6 = vector.broadcast %cst_5 : f32 to vector<8x512xf32>
    %7 = arith.maximumf %5, %6 : vector<8x512xf32>
    %c0_6 = arith.constant 0 : index
    %c0_7 = arith.constant 0 : index
    %8 = vector.load %arg5[%c0_6, %c0_7] : memref<512x256xf32, #tpu.memory_space<vmem>>, vector<512x256xf32>
    %cst_8 = arith.constant dense<0.000000e+00> : vector<8x256xf32>
    %9 = tpu.matmul %7, %8, %cst_8 {dimension_numbers = #tpu.dot_dimension_numbers<[1], [0], [0], [1], [0, 0, 1, 1], [], []>} : vector<8x512xf32>, vector<512x256xf32>, vector<8x256xf32> -> vector<8x256xf32>
    %c0_9 = arith.constant 0 : index
    %c0_10 = arith.constant 0 : index
    %10 = vector.load %arg6[%c0_9, %c0_10] : memref<1x256xf32, #tpu.memory_space<vmem>>, vector<1x256xf32>
    %11 = vector.broadcast %10 : vector<1x256xf32> to vector<8x256xf32>
    %12 = arith.addf %9, %11 : vector<8x256xf32>
    %13 = vector.extract_strided_slice %12 {offsets = [0, 0], sizes = [8, 128], strides = [1, 1]} : vector<8x256xf32> to vector<8x128xf32>
    %14 = vector.extract_strided_slice %12 {offsets = [0, 128], sizes = [8, 128], strides = [1, 1]} : vector<8x256xf32> to vector<8x128xf32>
    %c0_11 = arith.constant 0 : index
    %c0_12 = arith.constant 0 : index
    %15 = vector.load %arg2[%c0_11, %c0_12] : memref<8x128xf32, #tpu.memory_space<vmem>>, vector<8x128xf32>
    %cst_13 = arith.constant 5.000000e-01 : f32
    %16 = vector.broadcast %cst_13 : f32 to vector<8x128xf32>
    %17 = arith.mulf %16, %14 : vector<8x128xf32>
    %18 = math.exp %17 : vector<8x128xf32>
    %19 = arith.mulf %15, %18 : vector<8x128xf32>
    %20 = arith.addf %13, %19 : vector<8x128xf32>
    %c0_14 = arith.constant 0 : index
    %c0_15 = arith.constant 0 : index
    %21 = vector.load %arg7[%c0_14, %c0_15] : memref<128x512xf32, #tpu.memory_space<vmem>>, vector<128x512xf32>
    %cst_16 = arith.constant dense<0.000000e+00> : vector<8x512xf32>
    %22 = tpu.matmul %20, %21, %cst_16 {dimension_numbers = #tpu.dot_dimension_numbers<[1], [0], [0], [1], [0, 0, 1, 1], [], []>} : vector<8x128xf32>, vector<128x512xf32>, vector<8x512xf32> -> vector<8x512xf32>
    %c0_17 = arith.constant 0 : index
    %c0_18 = arith.constant 0 : index
    %23 = vector.load %arg8[%c0_17, %c0_18] : memref<1x512xf32, #tpu.memory_space<vmem>>, vector<1x512xf32>
    %24 = vector.broadcast %23 : vector<1x512xf32> to vector<8x512xf32>
    %25 = arith.addf %22, %24 : vector<8x512xf32>
    %cst_19 = arith.constant 0.000000e+00 : f32
    %26 = vector.broadcast %cst_19 : f32 to vector<8x512xf32>
    %27 = arith.maximumf %25, %26 : vector<8x512xf32>
    %c0_20 = arith.constant 0 : index
    %c0_21 = arith.constant 0 : index
    %28 = vector.load %arg9[%c0_20, %c0_21] : memref<512x784xf32, #tpu.memory_space<vmem>>, vector<512x784xf32>
    %cst_22 = arith.constant dense<0.000000e+00> : vector<8x784xf32>
    %29 = tpu.matmul %27, %28, %cst_22 {dimension_numbers = #tpu.dot_dimension_numbers<[1], [0], [0], [1], [0, 0, 1, 1], [], []>} : vector<8x512xf32>, vector<512x784xf32>, vector<8x784xf32> -> vector<8x784xf32>
    %c0_23 = arith.constant 0 : index
    %c0_24 = arith.constant 0 : index
    %30 = vector.load %arg10[%c0_23, %c0_24] : memref<1x784xf32, #tpu.memory_space<vmem>>, vector<1x784xf32>
    %31 = vector.broadcast %30 : vector<1x784xf32> to vector<8x784xf32>
    %32 = arith.addf %29, %31 : vector<8x784xf32>
    %33 = arith.negf %32 : vector<8x784xf32>
    %34 = math.exp %33 : vector<8x784xf32>
    %cst_25 = arith.constant 1.000000e+00 : f32
    %35 = vector.broadcast %cst_25 : f32 to vector<8x784xf32>
    %36 = arith.addf %35, %34 : vector<8x784xf32>
    %37 = arith.divf %35, %36 : vector<8x784xf32>
    %c0_26 = arith.constant 0 : index
    %c0_27 = arith.constant 0 : index
    %38 = vector.load %arg11[%c0_26, %c0_27] : memref<8x784xf32, #tpu.memory_space<vmem>>, vector<8x784xf32>
    tpu.vector_store %arg11[%c0_26, %c0_27], %37 {strides = array<i32>} : memref<8x784xf32, #tpu.memory_space<vmem>>, vector<8x784xf32>,
    %c0_28 = arith.constant 0 : index
    %c0_29 = arith.constant 0 : index
    %39 = vector.load %arg12[%c0_28, %c0_29] : memref<8x256xf32, #tpu.memory_space<vmem>>, vector<8x256xf32>
    tpu.vector_store %arg12[%c0_28, %c0_29], %12 {strides = array<i32>} : memref<8x256xf32, #tpu.memory_space<vmem>>, vector<8x256xf32>,
    return
  }
  func.func @transform_0(%arg0: i32) -> (i32, i32) {
    %c0_i32 = arith.constant 0 : i32
    %c0_i32_0 = arith.constant 0 : i32
    return %arg0, %c0_i32 : i32, i32
  }
  func.func @transform_1(%arg0: i32) -> (i32, i32) {
    %c0_i32 = arith.constant 0 : i32
    %c0_i32_0 = arith.constant 0 : i32
    return %arg0, %c0_i32 : i32, i32
  }
  func.func @transform_2(%arg0: i32) -> (i32, i32) {
    %c0_i32 = arith.constant 0 : i32
    %c0_i32_0 = arith.constant 0 : i32
    %c0_i32_1 = arith.constant 0 : i32
    return %c0_i32, %c0_i32_0 : i32, i32
  }
  func.func @transform_3(%arg0: i32) -> (i32, i32) {
    %c0_i32 = arith.constant 0 : i32
    %c0_i32_0 = arith.constant 0 : i32
    %c0_i32_1 = arith.constant 0 : i32
    return %c0_i32, %c0_i32_0 : i32, i32
  }
  func.func @transform_4(%arg0: i32) -> (i32, i32) {
    %c0_i32 = arith.constant 0 : i32
    %c0_i32_0 = arith.constant 0 : i32
    %c0_i32_1 = arith.constant 0 : i32
    return %c0_i32, %c0_i32_0 : i32, i32
  }
  func.func @transform_5(%arg0: i32) -> (i32, i32) {
    %c0_i32 = arith.constant 0 : i32
    %c0_i32_0 = arith.constant 0 : i32
    %c0_i32_1 = arith.constant 0 : i32
    return %c0_i32, %c0_i32_0 : i32, i32
  }
  func.func @transform_6(%arg0: i32) -> (i32, i32) {
    %c0_i32 = arith.constant 0 : i32
    %c0_i32_0 = arith.constant 0 : i32
    %c0_i32_1 = arith.constant 0 : i32
    return %c0_i32, %c0_i32_0 : i32, i32
  }
  func.func @transform_7(%arg0: i32) -> (i32, i32) {
    %c0_i32 = arith.constant 0 : i32
    %c0_i32_0 = arith.constant 0 : i32
    %c0_i32_1 = arith.constant 0 : i32
    return %c0_i32, %c0_i32_0 : i32, i32
  }
  func.func @transform_8(%arg0: i32) -> (i32, i32) {
    %c0_i32 = arith.constant 0 : i32
    %c0_i32_0 = arith.constant 0 : i32
    %c0_i32_1 = arith.constant 0 : i32
    return %c0_i32, %c0_i32_0 : i32, i32
  }
  func.func @transform_9(%arg0: i32) -> (i32, i32) {
    %c0_i32 = arith.constant 0 : i32
    %c0_i32_0 = arith.constant 0 : i32
    %c0_i32_1 = arith.constant 0 : i32
    return %c0_i32, %c0_i32_0 : i32, i32
  }
  func.func @transform_10(%arg0: i32) -> (i32, i32) {
    %c0_i32 = arith.constant 0 : i32
    %c0_i32_0 = arith.constant 0 : i32
    return %arg0, %c0_i32 : i32, i32
  }
  func.func @transform_11(%arg0: i32) -> (i32, i32) {
    %c0_i32 = arith.constant 0 : i32
    %c0_i32_0 = arith.constant 0 : i32
    return %arg0, %c0_i32 : i32, i32
  }
}

</mosaic_0001>

<llo_original>
// kernel: vae_forward.1
$region0: #{vae_forward.1}
  #allocation0 [shape = 'u32[]', space=smem, size = 0x4, offset = 0x4, fixed_abs, tag = 'smem constant byte address 0x4 - core index']
  #allocation1 [shape = 'u32[144,128]{1,0:T(1,128)}', space=vmem, size = 0x12000, scoped, tag = 'internal scratch']
  %s0 = inlined_call_operand.vmem [shape: f32[8,784], index: 0, kind: input, shape index: {}]
  %s1 = inlined_call_operand.vmem [shape: f32[8,128], index: 1, kind: input, shape index: {}]
  %s2 = inlined_call_operand.vmem [shape: f32[784,512], index: 2, kind: input, shape index: {}]
  %s3 = inlined_call_operand.vmem [shape: f32[1,512], index: 3, kind: input, shape index: {}]
  %s4 = inlined_call_operand.vmem [shape: f32[512,256], index: 4, kind: input, shape index: {}]
  %s5 = inlined_call_operand.vmem [shape: f32[1,256], index: 5, kind: input, shape index: {}]
  %s6 = inlined_call_operand.vmem [shape: f32[128,512], index: 6, kind: input, shape index: {}]
  %s7 = inlined_call_operand.vmem [shape: f32[1,512], index: 7, kind: input, shape index: {}]
  %s8 = inlined_call_operand.vmem [shape: f32[512,784], index: 8, kind: input, shape index: {}]
  %s9 = inlined_call_operand.vmem [shape: f32[1,784], index: 9, kind: input, shape index: {}]
  %s10 = inlined_call_operand.vmem [shape: f32[8,784], index: 10, kind: output, shape index: {0}]
  %s11 = inlined_call_operand.vmem [shape: f32[8,256], index: 11, kind: output, shape index: {1}]
  %12 = xla_tuple %s10, %s11
  %s13 = sld [smem:[#allocation0]]
  $region58: #{vae_forward.1} parent=0
    _
  %s15 = ssub.s32 1, %s13
  %s16 = scalar_select 0, %s15, %s13
  // Predicated region
  $region2: #{vae_forward.1} parent=0 // pred_check
    _
  $region3: #{vae_forward.1} parent=0 // pred_check_branch
    %18 = sbr.rel (0) target = $region5
  $region4: #{vae_forward.1} parent=0 // pred_region
    _
  $region5: #{vae_forward.1} parent=0 // pred_fallthru
    _
  // Predicated region
  $region6: #{vae_forward.1} parent=0 // pred_check
    _
  $region7: #{vae_forward.1} parent=0 // pred_check_branch
    %20 = sbr.rel (0) target = $region9
  $region8: #{vae_forward.1} parent=0 // pred_region
    _
  $region9: #{vae_forward.1} parent=0 // pred_fallthru
    _
  // Predicated region
  $region10: #{vae_forward.1} parent=0 // pred_check
    _
  $region11: #{vae_forward.1} parent=0 // pred_check_branch
    %22 = sbr.rel (0) target = $region13
  $region12: #{vae_forward.1} parent=0 // pred_region
    _
  $region13: #{vae_forward.1} parent=0 // pred_fallthru
    _
  // Predicated region
  $region14: #{vae_forward.1} parent=0 // pred_check
    _
  $region15: #{vae_forward.1} parent=0 // pred_check_branch
    %24 = sbr.rel (0) target = $region17
  $region16: #{vae_forward.1} parent=0 // pred_region
    _
  $region17: #{vae_forward.1} parent=0 // pred_fallthru
    _
  // Predicated region
  $region18: #{vae_forward.1} parent=0 // pred_check
    _
  $region19: #{vae_forward.1} parent=0 // pred_check_branch
    %26 = sbr.rel (0) target = $region21
  $region20: #{vae_forward.1} parent=0 // pred_region
    _
  $region21: #{vae_forward.1} parent=0 // pred_fallthru
    _
  // Predicated region
  $region22: #{vae_forward.1} parent=0 // pred_check
    _
  $region23: #{vae_forward.1} parent=0 // pred_check_branch
    %28 = sbr.rel (0) target = $region25
  $region24: #{vae_forward.1} parent=0 // pred_region
    _
  $region25: #{vae_forward.1} parent=0 // pred_fallthru
    _
  // Predicated region
  $region26: #{vae_forward.1} parent=0 // pred_check
    _
  $region27: #{vae_forward.1} parent=0 // pred_check_branch
    %30 = sbr.rel (0) target = $region29
  $region28: #{vae_forward.1} parent=0 // pred_region
    _
  $region29: #{vae_forward.1} parent=0 // pred_fallthru
    _
  // Predicated region
  $region30: #{vae_forward.1} parent=0 // pred_check
    _
  $region31: #{vae_forward.1} parent=0 // pred_check_branch
    %32 = sbr.rel (0) target = $region33
  $region32: #{vae_forward.1} parent=0 // pred_region
    _
  $region33: #{vae_forward.1} parent=0 // pred_fallthru
    _
  // Predicated region
  $region34: #{vae_forward.1} parent=0 // pred_check
    _
  $region35: #{vae_forward.1} parent=0 // pred_check_branch
    %34 = sbr.rel (0) target = $region37
  $region36: #{vae_forward.1} parent=0 // pred_region
    _
  $region37: #{vae_forward.1} parent=0 // pred_fallthru
    _
  // Predicated region
  $region38: #{vae_forward.1} parent=0 // pred_check
    _
  $region39: #{vae_forward.1} parent=0 // pred_check_branch
    %36 = sbr.rel (0) target = $region41
  $region40: #{vae_forward.1} parent=0 // pred_region
    _
  $region41: #{vae_forward.1} parent=0 // pred_fallthru
    _
  %v37 = vld [vmem:[%s0] sm:$0xff]
  %v38 = vld [vmem:[%s0 + $0x8] sm:$0xff]
  %v39 = vld [vmem:[%s0 + $0x10] sm:$0xff]
  %v40 = vld [vmem:[%s0 + $0x18] sm:$0xff]
  %v41 = vld [vmem:[%s0 + $0x20] sm:$0xff]
  %v42 = vld [vmem:[%s0 + $0x28] sm:$0xff]
  %v43 = vld [vmem:[%s0 + $0x30] sm:$0xff]
  %v44 = vld [vmem:[%s2] sm:$0xff]
  %v45 = vld [vmem:[%s2 + $0x8] sm:$0xff]
  %v46 = vld [vmem:[%s2 + $0x10] sm:$0xff]
  %v47 = vld [vmem:[%s2 + $0x18] sm:$0xff]
  %v48 = vld [vmem:[%s2 + $0x20] sm:$0xff]
  %v49 = vld [vmem:[%s2 + $0x28] sm:$0xff]
  %v50 = vld [vmem:[%s2 + $0x30] sm:$0xff]
  %v51 = vld [vmem:[%s2 + $0x38] sm:$0xff]
  %v52 = vld [vmem:[%s2 + $0x40] sm:$0xff]
  %v53 = vld [vmem:[%s2 + $0x48] sm:$0xff]
  %v54 = vld [vmem:[%s2 + $0x50] sm:$0xff]
  %v55 = vld [vmem:[%s2 + $0x58] sm:$0xff]
  %v56 = vld [vmem:[%s2 + $0x60] sm:$0xff]
  %v57 = vld [vmem:[%s2 + $0x68] sm:$0xff]
  %v58 = vld [vmem:[%s2 + $0x70] sm:$0xff]
  %v59 = vld [vmem:[%s2 + $0x78] sm:$0xff]
  %v60 = vld [vmem:[%s2 + $0x80] sm:$0xff]
  %v61 = vld [vmem:[%s2 + $0x88] sm:$0xff]
  %v62 = vld [vmem:[%s2 + $0x90] sm:$0xff]
  %v63 = vld [vmem:[%s2 + $0x98] sm:$0xff]
  %v64 = vld [vmem:[%s2 + $0xa0] sm:$0xff]
  %v65 = vld [vmem:[%s2 + $0xa8] sm:$0xff]
  %v66 = vld [vmem:[%s2 + $0xb0] sm:$0xff]
  %v67 = vld [vmem:[%s2 + $0xb8] sm:$0xff]
  %v68 = vld [vmem:[%s2 + $0xc0] sm:$0xff]
  %v69 = vld [vmem:[%s2 + $0xc8] sm:$0xff]
  %v70 = vld [vmem:[%s2 + $0xd0] sm:$0xff]
  %v71 = vld [vmem:[%s2 + $0xd8] sm:$0xff]
  %v72 = vld [vmem:[%s2 + $0xe0] sm:$0xff]
  %v73 = vld [vmem:[%s2 + $0xe8] sm:$0xff]
  %v74 = vld [vmem:[%s2 + $0xf0] sm:$0xff]
  %v75 = vld [vmem:[%s2 + $0xf8] sm:$0xff]
  %v76 = vld [vmem:[%s2 + $0x100] sm:$0xff]
  %v77 = vld [vmem:[%s2 + $0x108] sm:$0xff]
  %v78 = vld [vmem:[%s2 + $0x110] sm:$0xff]
  %v79 = vld [vmem:[%s2 + $0x118] sm:$0xff]
  %v80 = vld [vmem:[%s2 + $0x120] sm:$0xff]
  %v81 = vld [vmem:[%s2 + $0x128] sm:$0xff]
  %v82 = vld [vmem:[%s2 + $0x130] sm:$0xff]
  %v83 = vld [vmem:[%s2 + $0x138] sm:$0xff]
  %v84 = vld [vmem:[%s2 + $0x140] sm:$0xff]
  %v85 = vld [vmem:[%s2 + $0x148] sm:$0xff]
  %v86 = vld [vmem:[%s2 + $0x150] sm:$0xff]
  %v87 = vld [vmem:[%s2 + $0x158] sm:$0xff]
  %v88 = vld [vmem:[%s2 + $0x160] sm:$0xff]
  %v89 = vld [vmem:[%s2 + $0x168] sm:$0xff]
  %v90 = vld [vmem:[%s2 + $0x170] sm:$0xff]
  %v91 = vld [vmem:[%s2 + $0x178] sm:$0xff]
  %v92 = vld [vmem:[%s2 + $0x180] sm:$0xff]
  %v93 = vld [vmem:[%s2 + $0x188] sm:$0xff]
  %v94 = vld [vmem:[%s2 + $0x190] sm:$0xff]
  %v95 = vld [vmem:[%s2 + $0x198] sm:$0xff]
  %v96 = vld [vmem:[%s2 + $0x1a0] sm:$0xff]
  %v97 = vld [vmem:[%s2 + $0x1a8] sm:$0xff]
  %v98 = vld [vmem:[%s2 + $0x1b0] sm:$0xff]
  %v99 = vld [vmem:[%s2 + $0x1b8] sm:$0xff]
  %v100 = vld [vmem:[%s2 + $0x1c0] sm:$0xff]
  %v101 = vld [vmem:[%s2 + $0x1c8] sm:$0xff]
  %v102 = vld [vmem:[%s2 + $0x1d0] sm:$0xff]
  %v103 = vld [vmem:[%s2 + $0x1d8] sm:$0xff]
  %v104 = vld [vmem:[%s2 + $0x1e0] sm:$0xff]
  %v105 = vld [vmem:[%s2 + $0x1e8] sm:$0xff]
  %v106 = vld [vmem:[%s2 + $0x1f0] sm:$0xff]
  %v107 = vld [vmem:[%s2 + $0x1f8] sm:$0xff]
  %v108 = vld [vmem:[%s2 + $0x200] sm:$0xff]
  %v109 = vld [vmem:[%s2 + $0x208] sm:$0xff]
  %v110 = vld [vmem:[%s2 + $0x210] sm:$0xff]
  %v111 = vld [vmem:[%s2 + $0x218] sm:$0xff]
  %v112 = vld [vmem:[%s2 + $0x220] sm:$0xff]
  %v113 = vld [vmem:[%s2 + $0x228] sm:$0xff]
  %v114 = vld [vmem:[%s2 + $0x230] sm:$0xff]
  %v115 = vld [vmem:[%s2 + $0x238] sm:$0xff]
  %v116 = vld [vmem:[%s2 + $0x240] sm:$0xff]
  %v117 = vld [vmem:[%s2 + $0x248] sm:$0xff]
  %v118 = vld [vmem:[%s2 + $0x250] sm:$0xff]
  %v119 = vld [vmem:[%s2 + $0x258] sm:$0xff]
  %v120 = vld [vmem:[%s2 + $0x260] sm:$0xff]
  %v121 = vld [vmem:[%s2 + $0x268] sm:$0xff]
  %v122 = vld [vmem:[%s2 + $0x270] sm:$0xff]
  %v123 = vld [vmem:[%s2 + $0x278] sm:$0xff]
  %v124 = vld [vmem:[%s2 + $0x280] sm:$0xff]
  %v125 = vld [vmem:[%s2 + $0x288] sm:$0xff]
  %v126 = vld [vmem:[%s2 + $0x290] sm:$0xff]
  %v127 = vld [vmem:[%s2 + $0x298] sm:$0xff]
  %v128 = vld [vmem:[%s2 + $0x2a0] sm:$0xff]
  %v129 = vld [vmem:[%s2 + $0x2a8] sm:$0xff]
  %v130 = vld [vmem:[%s2 + $0x2b0] sm:$0xff]
  %v131 = vld [vmem:[%s2 + $0x2b8] sm:$0xff]
  %v132 = vld [vmem:[%s2 + $0x2c0] sm:$0xff]
  %v133 = vld [vmem:[%s2 + $0x2c8] sm:$0xff]
  %v134 = vld [vmem:[%s2 + $0x2d0] sm:$0xff]
  %v135 = vld [vmem:[%s2 + $0x2d8] sm:$0xff]
  %v136 = vld [vmem:[%s2 + $0x2e0] sm:$0xff]
  %v137 = vld [vmem:[%s2 + $0x2e8] sm:$0xff]
  %v138 = vld [vmem:[%s2 + $0x2f0] sm:$0xff]
  %v139 = vld [vmem:[%s2 + $0x2f8] sm:$0xff]
  %v140 = vld [vmem:[%s2 + $0x300] sm:$0xff]
  %v141 = vld [vmem:[%s2 + $0x308] sm:$0xff]
  %v142 = vld [vmem:[%s2 + $0x310] sm:$0xff]
  %v143 = vld [vmem:[%s2 + $0x318] sm:$0xff]
  %v144 = vld [vmem:[%s2 + $0x320] sm:$0xff]
  %v145 = vld [vmem:[%s2 + $0x328] sm:$0xff]
  %v146 = vld [vmem:[%s2 + $0x330] sm:$0xff]
  %v147 = vld [vmem:[%s2 + $0x338] sm:$0xff]
  %v148 = vld [vmem:[%s2 + $0x340] sm:$0xff]
  %v149 = vld [vmem:[%s2 + $0x348] sm:$0xff]
  %v150 = vld [vmem:[%s2 + $0x350] sm:$0xff]
  %v151 = vld [vmem:[%s2 + $0x358] sm:$0xff]
  %v152 = vld [vmem:[%s2 + $0x360] sm:$0xff]
  %v153 = vld [vmem:[%s2 + $0x368] sm:$0xff]
  %v154 = vld [vmem:[%s2 + $0x370] sm:$0xff]
  %v155 = vld [vmem:[%s2 + $0x378] sm:$0xff]
  %v156 = vld [vmem:[%s2 + $0x380] sm:$0xff]
  %v157 = vld [vmem:[%s2 + $0x388] sm:$0xff]
  %v158 = vld [vmem:[%s2 + $0x390] sm:$0xff]
  %v159 = vld [vmem:[%s2 + $0x398] sm:$0xff]
  %v160 = vld [vmem:[%s2 + $0x3a0] sm:$0xff]
  %v161 = vld [vmem:[%s2 + $0x3a8] sm:$0xff]
  %v162 = vld [vmem:[%s2 + $0x3b0] sm:$0xff]
  %v163 = vld [vmem:[%s2 + $0x3b8] sm:$0xff]
  %v164 = vld [vmem:[%s2 + $0x3c0] sm:$0xff]
  %v165 = vld [vmem:[%s2 + $0x3c8] sm:$0xff]
  %v166 = vld [vmem:[%s2 + $0x3d0] sm:$0xff]
  %v167 = vld [vmem:[%s2 + $0x3d8] sm:$0xff]
  %v168 = vld [vmem:[%s2 + $0x3e0] sm:$0xff]
  %v169 = vld [vmem:[%s2 + $0x3e8] sm:$0xff]
  %v170 = vld [vmem:[%s2 + $0x3f0] sm:$0xff]
  %v171 = vld [vmem:[%s2 + $0x3f8] sm:$0xff]
  %v172 = vld [vmem:[%s2 + $0x400] sm:$0xff]
  %v173 = vld [vmem:[%s2 + $0x408] sm:$0xff]
  %v174 = vld [vmem:[%s2 + $0x410] sm:$0xff]
  %v175 = vld [vmem:[%s2 + $0x418] sm:$0xff]
  %v176 = vld [vmem:[%s2 + $0x420] sm:$0xff]
  %v177 = vld [vmem:[%s2 + $0x428] sm:$0xff]
  %v178 = vld [vmem:[%s2 + $0x430] sm:$0xff]
  %v179 = vld [vmem:[%s2 + $0x438] sm:$0xff]
  %v180 = vld [vmem:[%s2 + $0x440] sm:$0xff]
  %v181 = vld [vmem:[%s2 + $0x448] sm:$0xff]
  %v182 = vld [vmem:[%s2 + $0x450] sm:$0xff]
  %v183 = vld [vmem:[%s2 + $0x458] sm:$0xff]
  %v184 = vld [vmem:[%s2 + $0x460] sm:$0xff]
  %v185 = vld [vmem:[%s2 + $0x468] sm:$0xff]
  %v186 = vld [vmem:[%s2 + $0x470] sm:$0xff]
  %v187 = vld [vmem:[%s2 + $0x478] sm:$0xff]
  %v188 = vld [vmem:[%s2 + $0x480] sm:$0xff]
  %v189 = vld [vmem:[%s2 + $0x488] sm:$0xff]
  %v190 = vld [vmem:[%s2 + $0x490] sm:$0xff]
  %v191 = vld [vmem:[%s2 + $0x498] sm:$0xff]
  %v192 = vld [vmem:[%s2 + $0x4a0] sm:$0xff]
  %v193 = vld [vmem:[%s2 + $0x4a8] sm:$0xff]
  %v194 = vld [vmem:[%s2 + $0x4b0] sm:$0xff]
  %v195 = vld [vmem:[%s2 + $0x4b8] sm:$0xff]
  %v196 = vld [vmem:[%s2 + $0x4c0] sm:$0xff]
  %v197 = vld [vmem:[%s2 + $0x4c8] sm:$0xff]
  %v198 = vld [vmem:[%s2 + $0x4d0] sm:$0xff]
  %v199 = vld [vmem:[%s2 + $0x4d8] sm:$0xff]
  %v200 = vld [vmem:[%s2 + $0x4e0] sm:$0xff]
  %v201 = vld [vmem:[%s2 + $0x4e8] sm:$0xff]
  %v202 = vld [vmem:[%s2 + $0x4f0] sm:$0xff]
  %v203 = vld [vmem:[%s2 + $0x4f8] sm:$0xff]
  %v204 = vld [vmem:[%s2 + $0x500] sm:$0xff]
  %v205 = vld [vmem:[%s2 + $0x508] sm:$0xff]
  %v206 = vld [vmem:[%s2 + $0x510] sm:$0xff]
  %v207 = vld [vmem:[%s2 + $0x518] sm:$0xff]
  %v208 = vld [vmem:[%s2 + $0x520] sm:$0xff]
  %v209 = vld [vmem:[%s2 + $0x528] sm:$0xff]
  %v210 = vld [vmem:[%s2 + $0x530] sm:$0xff]
  %v211 = vld [vmem:[%s2 + $0x538] sm:$0xff]
  %v212 = vld [vmem:[%s2 + $0x540] sm:$0xff]
  %v213 = vld [vmem:[%s2 + $0x548] sm:$0xff]
  %v214 = vld [vmem:[%s2 + $0x550] sm:$0xff]
  %v215 = vld [vmem:[%s2 + $0x558] sm:$0xff]
  %v216 = vld [vmem:[%s2 + $0x560] sm:$0xff]
  %v217 = vld [vmem:[%s2 + $0x568] sm:$0xff]
  %v218 = vld [vmem:[%s2 + $0x570] sm:$0xff]
  %v219 = vld [vmem:[%s2 + $0x578] sm:$0xff]
  %v220 = vld [vmem:[%s2 + $0x580] sm:$0xff]
  %v221 = vld [vmem:[%s2 + $0x588] sm:$0xff]
  %v222 = vld [vmem:[%s2 + $0x590] sm:$0xff]
  %v223 = vld [vmem:[%s2 + $0x598] sm:$0xff]
  %v224 = vld [vmem:[%s2 + $0x5a0] sm:$0xff]
  %v225 = vld [vmem:[%s2 + $0x5a8] sm:$0xff]
  %v226 = vld [vmem:[%s2 + $0x5b0] sm:$0xff]
  %v227 = vld [vmem:[%s2 + $0x5b8] sm:$0xff]
  %v228 = vld [vmem:[%s2 + $0x5c0] sm:$0xff]
  %v229 = vld [vmem:[%s2 + $0x5c8] sm:$0xff]
  %v230 = vld [vmem:[%s2 + $0x5d0] sm:$0xff]
  %v231 = vld [vmem:[%s2 + $0x5d8] sm:$0xff]
  %v232 = vld [vmem:[%s2 + $0x5e0] sm:$0xff]
  %v233 = vld [vmem:[%s2 + $0x5e8] sm:$0xff]
  %v234 = vld [vmem:[%s2 + $0x5f0] sm:$0xff]
  %v235 = vld [vmem:[%s2 + $0x5f8] sm:$0xff]
  %v236 = vld [vmem:[%s2 + $0x600] sm:$0xff]
  %v237 = vld [vmem:[%s2 + $0x608] sm:$0xff]
  %v238 = vld [vmem:[%s2 + $0x610] sm:$0xff]
  %v239 = vld [vmem:[%s2 + $0x618] sm:$0xff]
  %v240 = vld [vmem:[%s2 + $0x620] sm:$0xff]
  %v241 = vld [vmem:[%s2 + $0x628] sm:$0xff]
  %v242 = vld [vmem:[%s2 + $0x630] sm:$0xff]
  %v243 = vld [vmem:[%s2 + $0x638] sm:$0xff]
  %v244 = vld [vmem:[%s2 + $0x640] sm:$0xff]
  %v245 = vld [vmem:[%s2 + $0x648] sm:$0xff]
  %v246 = vld [vmem:[%s2 + $0x650] sm:$0xff]
  %v247 = vld [vmem:[%s2 + $0x658] sm:$0xff]
  %v248 = vld [vmem:[%s2 + $0x660] sm:$0xff]
  %v249 = vld [vmem:[%s2 + $0x668] sm:$0xff]
  %v250 = vld [vmem:[%s2 + $0x670] sm:$0xff]
  %v251 = vld [vmem:[%s2 + $0x678] sm:$0xff]
  %v252 = vld [vmem:[%s2 + $0x680] sm:$0xff]
  %v253 = vld [vmem:[%s2 + $0x688] sm:$0xff]
  %v254 = vld [vmem:[%s2 + $0x690] sm:$0xff]
  %v255 = vld [vmem:[%s2 + $0x698] sm:$0xff]
  %v256 = vld [vmem:[%s2 + $0x6a0] sm:$0xff]
  %v257 = vld [vmem:[%s2 + $0x6a8] sm:$0xff]
  %v258 = vld [vmem:[%s2 + $0x6b0] sm:$0xff]
  %v259 = vld [vmem:[%s2 + $0x6b8] sm:$0xff]
  %v260 = vld [vmem:[%s2 + $0x6c0] sm:$0xff]
  %v261 = vld [vmem:[%s2 + $0x6c8] sm:$0xff]
  %v262 = vld [vmem:[%s2 + $0x6d0] sm:$0xff]
  %v263 = vld [vmem:[%s2 + $0x6d8] sm:$0xff]
  %v264 = vld [vmem:[%s2 + $0x6e0] sm:$0xff]
  %v265 = vld [vmem:[%s2 + $0x6e8] sm:$0xff]
  %v266 = vld [vmem:[%s2 + $0x6f0] sm:$0xff]
  %v267 = vld [vmem:[%s2 + $0x6f8] sm:$0xff]
  %v268 = vld [vmem:[%s2 + $0x700] sm:$0xff]
  %v269 = vld [vmem:[%s2 + $0x708] sm:$0xff]
  %v270 = vld [vmem:[%s2 + $0x710] sm:$0xff]
  %v271 = vld [vmem:[%s2 + $0x718] sm:$0xff]
  %v272 = vld [vmem:[%s2 + $0x720] sm:$0xff]
  %v273 = vld [vmem:[%s2 + $0x728] sm:$0xff]
  %v274 = vld [vmem:[%s2 + $0x730] sm:$0xff]
  %v275 = vld [vmem:[%s2 + $0x738] sm:$0xff]
  %v276 = vld [vmem:[%s2 + $0x740] sm:$0xff]
  %v277 = vld [vmem:[%s2 + $0x748] sm:$0xff]
  %v278 = vld [vmem:[%s2 + $0x750] sm:$0xff]
  %v279 = vld [vmem:[%s2 + $0x758] sm:$0xff]
  %v280 = vld [vmem:[%s2 + $0x760] sm:$0xff]
  %v281 = vld [vmem:[%s2 + $0x768] sm:$0xff]
  %v282 = vld [vmem:[%s2 + $0x770] sm:$0xff]
  %v283 = vld [vmem:[%s2 + $0x778] sm:$0xff]
  %v284 = vld [vmem:[%s2 + $0x780] sm:$0xff]
  %v285 = vld [vmem:[%s2 + $0x788] sm:$0xff]
  %v286 = vld [vmem:[%s2 + $0x790] sm:$0xff]
  %v287 = vld [vmem:[%s2 + $0x798] sm:$0xff]
  %v288 = vld [vmem:[%s2 + $0x7a0] sm:$0xff]
  %v289 = vld [vmem:[%s2 + $0x7a8] sm:$0xff]
  %v290 = vld [vmem:[%s2 + $0x7b0] sm:$0xff]
  %v291 = vld [vmem:[%s2 + $0x7b8] sm:$0xff]
  %v292 = vld [vmem:[%s2 + $0x7c0] sm:$0xff]
  %v293 = vld [vmem:[%s2 + $0x7c8] sm:$0xff]
  %v294 = vld [vmem:[%s2 + $0x7d0] sm:$0xff]
  %v295 = vld [vmem:[%s2 + $0x7d8] sm:$0xff]
  %v296 = vld [vmem:[%s2 + $0x7e0] sm:$0xff]
  %v297 = vld [vmem:[%s2 + $0x7e8] sm:$0xff]
  %v298 = vld [vmem:[%s2 + $0x7f0] sm:$0xff]
  %v299 = vld [vmem:[%s2 + $0x7f8] sm:$0xff]
  %v300 = vld [vmem:[%s2 + $0x800] sm:$0xff]
  %v301 = vld [vmem:[%s2 + $0x808] sm:$0xff]
  %v302 = vld [vmem:[%s2 + $0x810] sm:$0xff]
  %v303 = vld [vmem:[%s2 + $0x818] sm:$0xff]
  %v304 = vld [vmem:[%s2 + $0x820] sm:$0xff]
  %v305 = vld [vmem:[%s2 + $0x828] sm:$0xff]
  %v306 = vld [vmem:[%s2 + $0x830] sm:$0xff]
  %v307 = vld [vmem:[%s2 + $0x838] sm:$0xff]
  %v308 = vld [vmem:[%s2 + $0x840] sm:$0xff]
  %v309 = vld [vmem:[%s2 + $0x848] sm:$0xff]
  %v310 = vld [vmem:[%s2 + $0x850] sm:$0xff]
  %v311 = vld [vmem:[%s2 + $0x858] sm:$0xff]
  %v312 = vld [vmem:[%s2 + $0x860] sm:$0xff]
  %v313 = vld [vmem:[%s2 + $0x868] sm:$0xff]
  %v314 = vld [vmem:[%s2 + $0x870] sm:$0xff]
  %v315 = vld [vmem:[%s2 + $0x878] sm:$0xff]
  %v316 = vld [vmem:[%s2 + $0x880] sm:$0xff]
  %v317 = vld [vmem:[%s2 + $0x888] sm:$0xff]
  %v318 = vld [vmem:[%s2 + $0x890] sm:$0xff]
  %v319 = vld [vmem:[%s2 + $0x898] sm:$0xff]
  %v320 = vld [vmem:[%s2 + $0x8a0] sm:$0xff]
  %v321 = vld [vmem:[%s2 + $0x8a8] sm:$0xff]
  %v322 = vld [vmem:[%s2 + $0x8b0] sm:$0xff]
  %v323 = vld [vmem:[%s2 + $0x8b8] sm:$0xff]
  %v324 = vld [vmem:[%s2 + $0x8c0] sm:$0xff]
  %v325 = vld [vmem:[%s2 + $0x8c8] sm:$0xff]
  %v326 = vld [vmem:[%s2 + $0x8d0] sm:$0xff]
  %v327 = vld [vmem:[%s2 + $0x8d8] sm:$0xff]
  %v328 = vld [vmem:[%s2 + $0x8e0] sm:$0xff]
  %v329 = vld [vmem:[%s2 + $0x8e8] sm:$0xff]
  %v330 = vld [vmem:[%s2 + $0x8f0] sm:$0xff]
  %v331 = vld [vmem:[%s2 + $0x8f8] sm:$0xff]
  %v332 = vld [vmem:[%s2 + $0x900] sm:$0xff]
  %v333 = vld [vmem:[%s2 + $0x908] sm:$0xff]
  %v334 = vld [vmem:[%s2 + $0x910] sm:$0xff]
  %v335 = vld [vmem:[%s2 + $0x918] sm:$0xff]
  %v336 = vld [vmem:[%s2 + $0x920] sm:$0xff]
  %v337 = vld [vmem:[%s2 + $0x928] sm:$0xff]
  %v338 = vld [vmem:[%s2 + $0x930] sm:$0xff]
  %v339 = vld [vmem:[%s2 + $0x938] sm:$0xff]
  %v340 = vld [vmem:[%s2 + $0x940] sm:$0xff]
  %v341 = vld [vmem:[%s2 + $0x948] sm:$0xff]
  %v342 = vld [vmem:[%s2 + $0x950] sm:$0xff]
  %v343 = vld [vmem:[%s2 + $0x958] sm:$0xff]
  %v344 = vld [vmem:[%s2 + $0x960] sm:$0xff]
  %v345 = vld [vmem:[%s2 + $0x968] sm:$0xff]
  %v346 = vld [vmem:[%s2 + $0x970] sm:$0xff]
  %v347 = vld [vmem:[%s2 + $0x978] sm:$0xff]
  %v348 = vld [vmem:[%s2 + $0x980] sm:$0xff]
  %v349 = vld [vmem:[%s2 + $0x988] sm:$0xff]
  %v350 = vld [vmem:[%s2 + $0x990] sm:$0xff]
  %v351 = vld [vmem:[%s2 + $0x998] sm:$0xff]
  %v352 = vld [vmem:[%s2 + $0x9a0] sm:$0xff]
  %v353 = vld [vmem:[%s2 + $0x9a8] sm:$0xff]
  %v354 = vld [vmem:[%s2 + $0x9b0] sm:$0xff]
  %v355 = vld [vmem:[%s2 + $0x9b8] sm:$0xff]
  %v356 = vld [vmem:[%s2 + $0x9c0] sm:$0xff]
  %v357 = vld [vmem:[%s2 + $0x9c8] sm:$0xff]
  %v358 = vld [vmem:[%s2 + $0x9d0] sm:$0xff]
  %v359 = vld [vmem:[%s2 + $0x9d8] sm:$0xff]
  %v360 = vld [vmem:[%s2 + $0x9e0] sm:$0xff]
  %v361 = vld [vmem:[%s2 + $0x9e8] sm:$0xff]
  %v362 = vld [vmem:[%s2 + $0x9f0] sm:$0xff]
  %v363 = vld [vmem:[%s2 + $0x9f8] sm:$0xff]
  %v364 = vld [vmem:[%s2 + $0xa00] sm:$0xff]
  %v365 = vld [vmem:[%s2 + $0xa08] sm:$0xff]
  %v366 = vld [vmem:[%s2 + $0xa10] sm:$0xff]
  %v367 = vld [vmem:[%s2 + $0xa18] sm:$0xff]
  %v368 = vld [vmem:[%s2 + $0xa20] sm:$0xff]
  %v369 = vld [vmem:[%s2 + $0xa28] sm:$0xff]
  %v370 = vld [vmem:[%s2 + $0xa30] sm:$0xff]
  %v371 = vld [vmem:[%s2 + $0xa38] sm:$0xff]
  %v372 = vld [vmem:[%s2 + $0xa40] sm:$0xff]
  %v373 = vld [vmem:[%s2 + $0xa48] sm:$0xff]
  %v374 = vld [vmem:[%s2 + $0xa50] sm:$0xff]
  %v375 = vld [vmem:[%s2 + $0xa58] sm:$0xff]
  %v376 = vld [vmem:[%s2 + $0xa60] sm:$0xff]
  %v377 = vld [vmem:[%s2 + $0xa68] sm:$0xff]
  %v378 = vld [vmem:[%s2 + $0xa70] sm:$0xff]
  %v379 = vld [vmem:[%s2 + $0xa78] sm:$0xff]
  %v380 = vld [vmem:[%s2 + $0xa80] sm:$0xff]
  %v381 = vld [vmem:[%s2 + $0xa88] sm:$0xff]
  %v382 = vld [vmem:[%s2 + $0xa90] sm:$0xff]
  %v383 = vld [vmem:[%s2 + $0xa98] sm:$0xff]
  %v384 = vld [vmem:[%s2 + $0xaa0] sm:$0xff]
  %v385 = vld [vmem:[%s2 + $0xaa8] sm:$0xff]
  %v386 = vld [vmem:[%s2 + $0xab0] sm:$0xff]
  %v387 = vld [vmem:[%s2 + $0xab8] sm:$0xff]
  %v388 = vld [vmem:[%s2 + $0xac0] sm:$0xff]
  %v389 = vld [vmem:[%s2 + $0xac8] sm:$0xff]
  %v390 = vld [vmem:[%s2 + $0xad0] sm:$0xff]
  %v391 = vld [vmem:[%s2 + $0xad8] sm:$0xff]
  %v392 = vld [vmem:[%s2 + $0xae0] sm:$0xff]
  %v393 = vld [vmem:[%s2 + $0xae8] sm:$0xff]
  %v394 = vld [vmem:[%s2 + $0xaf0] sm:$0xff]
  %v395 = vld [vmem:[%s2 + $0xaf8] sm:$0xff]
  %v396 = vld [vmem:[%s2 + $0xb00] sm:$0xff]
  %v397 = vld [vmem:[%s2 + $0xb08] sm:$0xff]
  %v398 = vld [vmem:[%s2 + $0xb10] sm:$0xff]
  %v399 = vld [vmem:[%s2 + $0xb18] sm:$0xff]
  %v400 = vld [vmem:[%s2 + $0xb20] sm:$0xff]
  %v401 = vld [vmem:[%s2 + $0xb28] sm:$0xff]
  %v402 = vld [vmem:[%s2 + $0xb30] sm:$0xff]
  %v403 = vld [vmem:[%s2 + $0xb38] sm:$0xff]
  %v404 = vld [vmem:[%s2 + $0xb40] sm:$0xff]
  %v405 = vld [vmem:[%s2 + $0xb48] sm:$0xff]
  %v406 = vld [vmem:[%s2 + $0xb50] sm:$0xff]
  %v407 = vld [vmem:[%s2 + $0xb58] sm:$0xff]
  %v408 = vld [vmem:[%s2 + $0xb60] sm:$0xff]
  %v409 = vld [vmem:[%s2 + $0xb68] sm:$0xff]
  %v410 = vld [vmem:[%s2 + $0xb70] sm:$0xff]
  %v411 = vld [vmem:[%s2 + $0xb78] sm:$0xff]
  %v412 = vld [vmem:[%s2 + $0xb80] sm:$0xff]
  %v413 = vld [vmem:[%s2 + $0xb88] sm:$0xff]
  %v414 = vld [vmem:[%s2 + $0xb90] sm:$0xff]
  %v415 = vld [vmem:[%s2 + $0xb98] sm:$0xff]
  %v416 = vld [vmem:[%s2 + $0xba0] sm:$0xff]
  %v417 = vld [vmem:[%s2 + $0xba8] sm:$0xff]
  %v418 = vld [vmem:[%s2 + $0xbb0] sm:$0xff]
  %v419 = vld [vmem:[%s2 + $0xbb8] sm:$0xff]
  %v420 = vld [vmem:[%s2 + $0xbc0] sm:$0xff]
  %v421 = vld [vmem:[%s2 + $0xbc8] sm:$0xff]
  %v422 = vld [vmem:[%s2 + $0xbd0] sm:$0xff]
  %v423 = vld [vmem:[%s2 + $0xbd8] sm:$0xff]
  %v424 = vld [vmem:[%s2 + $0xbe0] sm:$0xff]
  %v425 = vld [vmem:[%s2 + $0xbe8] sm:$0xff]
  %v426 = vld [vmem:[%s2 + $0xbf0] sm:$0xff]
  %v427 = vld [vmem:[%s2 + $0xbf8] sm:$0xff]
  %v428 = vld [vmem:[%s2 + $0xc00] sm:$0xff]
  %v429 = vld [vmem:[%s2 + $0xc08] sm:$0xff]
  %v430 = vld [vmem:[%s2 + $0xc10] sm:$0xff]
  %v431 = vld [vmem:[%s2 + $0xc18] sm:$0xff]
  %v432 = vld [vmem:[%s2 + $0xc20] sm:$0xff]
  %v433 = vld [vmem:[%s2 + $0xc28] sm:$0xff]
  %v434 = vld [vmem:[%s2 + $0xc30] sm:$0xff]
  %v435 = vld [vmem:[%s2 + $0xc38] sm:$0xff]
  %v436 = vld [vmem:[%s3] sm:$0xf]
  %v438 = vlaneseq
  %v439 = vshrl.u32 %v438, 7
  %v440 = vsub.s32 0, %v439
  %v441 = vrot.slane %v436, %v440
  %v442 = vlaneseq
  %v443 = vshrl.u32 %v442, 7
  %v444 = vsub.s32 1, %v443
  %v445 = vrot.slane %v436, %v444
  %v446 = vlaneseq
  %v447 = vshrl.u32 %v446, 7
  %v448 = vsub.s32 2, %v447
  %v449 = vrot.slane %v436, %v448
  %v450 = vlaneseq
  %v451 = vshrl.u32 %v450, 7
  %v452 = vsub.s32 3, %v451
  %v453 = vrot.slane %v436, %v452
  %vm458 = vcmask 130048
  %v460 = vsel %vm458, %v43, 0
  %462 = vmatprep.subr.mxu0 %v45
  %463 = vmatpush1.msra.mxu0 %v44
  %464 = vmatprep.subr.mxu0 %v49
  %465 = vmatpush1.msra.mxu0 %v48
  %466 = vmatprep.subr.mxu0 %v53
  %467 = vmatpush1.msra.mxu0 %v52
  %468 = vmatprep.subr.mxu0 %v57
  %469 = vmatpush1.msra.mxu0 %v56
  %470 = vmatprep.subr.mxu0 %v61
  %471 = vmatpush1.msra.mxu0 %v60
  %472 = vmatprep.subr.mxu0 %v65
  %473 = vmatpush1.msra.mxu0 %v64
  %474 = vmatprep.subr.mxu0 %v69
  %475 = vmatpush1.msra.mxu0 %v68
  %476 = vmatprep.subr.mxu0 %v73
  %477 = vmatpush1.msra.mxu0 %v72
  %478 = vmatprep.subr.mxu0 %v77
  %479 = vmatpush1.msra.mxu0 %v76
  %480 = vmatprep.subr.mxu0 %v81
  %481 = vmatpush1.msra.mxu0 %v80
  %482 = vmatprep.subr.mxu0 %v85
  %483 = vmatpush1.msra.mxu0 %v84
  %484 = vmatprep.subr.mxu0 %v89
  %485 = vmatpush1.msra.mxu0 %v88
  %486 = vmatprep.subr.mxu0 %v93
  %487 = vmatpush1.msra.mxu0 %v92
  %488 = vmatprep.subr.mxu0 %v97
  %489 = vmatpush1.msra.mxu0 %v96
  %490 = vmatprep.subr.mxu0 %v101
  %491 = vmatpush1.msra.mxu0 %v100
  %492 = vmatprep.subr.mxu0 %v105
  %493 = vmatpush1.msra.mxu0 %v104
  %494 = vmatprep.subr.mxu0 %v109
  %495 = vmatpush1.msra.mxu0 %v108
  %496 = vmatprep.subr.mxu0 %v113
  %497 = vmatpush1.msra.mxu0 %v112
  %498 = vmatprep.subr.mxu0 %v117
  %499 = vmatpush1.msra.mxu0 %v116
  %500 = vmatprep.subr.mxu0 %v121
  %501 = vmatpush1.msra.mxu0 %v120
  %502 = vmatprep.subr.mxu0 %v125
  %503 = vmatpush1.msra.mxu0 %v124
  %504 = vmatprep.subr.mxu0 %v129
  %505 = vmatpush1.msra.mxu0 %v128
  %506 = vmatprep.subr.mxu0 %v133
  %507 = vmatpush1.msra.mxu0 %v132
  %508 = vmatprep.subr.mxu0 %v137
  %509 = vmatpush1.msra.mxu0 %v136
  %510 = vmatprep.subr.mxu0 %v141
  %511 = vmatpush1.msra.mxu0 %v140
  %512 = vmatprep.subr.mxu0 %v145
  %513 = vmatpush1.msra.mxu0 %v144
  %514 = vmatprep.subr.mxu0 %v149
  %515 = vmatpush1.msra.mxu0 %v148
  %516 = vmatprep.subr.mxu0 %v153
  %517 = vmatpush1.msra.mxu0 %v152
  %518 = vmatprep.subr.mxu0 %v157
  %519 = vmatpush1.msra.mxu0 %v156
  %520 = vmatprep.subr.mxu0 %v161
  %521 = vmatpush1.msra.mxu0 %v160
  %522 = vmatprep.subr.mxu0 %v165
  %523 = vmatpush1.msra.mxu0 %v164
  %524 = vmatprep.subr.mxu0 %v169
  %525 = vmatpush1.msra.mxu0 %v168
  %526 = vmatprep.mubr.f32.mxu0 %v38
  %527 = vmatmul.mubr.f32.gmra.mrb[0].mxu0 %v37
  %v528 = vpop.f32.mrb[0].mxu0
  %v529 = vadd.f32 %v441, %v528
  %v530 = vpop.f32.mrb[0].mxu0
  %v531 = vadd.f32 %v445, %v530
  %532 = vdwg.mxu0
  %533 = vmatprep.subr.mxu0 %v173
  %534 = vmatpush1.msra.mxu0 %v172
  %535 = vmatprep.subr.mxu0 %v177
  %536 = vmatpush1.msra.mxu0 %v176
  %537 = vmatprep.subr.mxu0 %v181
  %538 = vmatpush1.msra.mxu0 %v180
  %539 = vmatprep.subr.mxu0 %v185
  %540 = vmatpush1.msra.mxu0 %v184
  %541 = vmatprep.subr.mxu0 %v189
  %542 = vmatpush1.msra.mxu0 %v188
  %543 = vmatprep.subr.mxu0 %v193
  %544 = vmatpush1.msra.mxu0 %v192
  %545 = vmatprep.subr.mxu0 %v197
  %546 = vmatpush1.msra.mxu0 %v196
  %547 = vmatprep.subr.mxu0 %v201
  %548 = vmatpush1.msra.mxu0 %v200
  %549 = vmatprep.subr.mxu0 %v205
  %550 = vmatpush1.msra.mxu0 %v204
  %551 = vmatprep.subr.mxu0 %v209
  %552 = vmatpush1.msra.mxu0 %v208
  %553 = vmatprep.subr.mxu0 %v213
  %554 = vmatpush1.msra.mxu0 %v212
  %555 = vmatprep.subr.mxu0 %v217
  %556 = vmatpush1.msra.mxu0 %v216
  %557 = vmatprep.subr.mxu0 %v221
  %558 = vmatpush1.msra.mxu0 %v220
  %559 = vmatprep.subr.mxu0 %v225
  %560 = vmatpush1.msra.mxu0 %v224
  %561 = vmatprep.subr.mxu0 %v229
  %562 = vmatpush1.msra.mxu0 %v228
  %563 = vmatprep.subr.mxu0 %v233
  %564 = vmatpush1.msra.mxu0 %v232
  %565 = vmatprep.subr.mxu0 %v237
  %566 = vmatpush1.msra.mxu0 %v236
  %567 = vmatprep.subr.mxu0 %v241
  %568 = vmatpush1.msra.mxu0 %v240
  %569 = vmatprep.subr.mxu0 %v245
  %570 = vmatpush1.msra.mxu0 %v244
  %571 = vmatprep.subr.mxu0 %v249
  %572 = vmatpush1.msra.mxu0 %v248
  %573 = vmatprep.subr.mxu0 %v253
  %574 = vmatpush1.msra.mxu0 %v252
  %575 = vmatprep.subr.mxu0 %v257
  %576 = vmatpush1.msra.mxu0 %v256
  %577 = vmatprep.subr.mxu0 %v261
  %578 = vmatpush1.msra.mxu0 %v260
  %579 = vmatprep.subr.mxu0 %v265
  %580 = vmatpush1.msra.mxu0 %v264
  %581 = vmatprep.subr.mxu0 %v269
  %582 = vmatpush1.msra.mxu0 %v268
  %583 = vmatprep.subr.mxu0 %v273
  %584 = vmatpush1.msra.mxu0 %v272
  %585 = vmatprep.subr.mxu0 %v277
  %586 = vmatpush1.msra.mxu0 %v276
  %587 = vmatprep.subr.mxu0 %v281
  %588 = vmatpush1.msra.mxu0 %v280
  %589 = vmatprep.subr.mxu0 %v285
  %590 = vmatpush1.msra.mxu0 %v284
  %591 = vmatprep.subr.mxu0 %v289
  %592 = vmatpush1.msra.mxu0 %v288
  %593 = vmatprep.subr.mxu0 %v293
  %594 = vmatpush1.msra.mxu0 %v292
  %595 = vmatprep.subr.mxu0 %v297
  %596 = vmatpush1.msra.mxu0 %v296
  %597 = vmatprep.mubr.f32.mxu0 %v40
  %598 = vmatmul.mubr.f32.gmra.mrb[0].mxu0 %v39
  %v599 = vpop.f32.mrb[0].mxu0
  %v600 = vadd.f32 %v529, %v599
  %v601 = vpop.f32.mrb[0].mxu0
  %v602 = vadd.f32 %v531, %v601
  %603 = vdwg.mxu0
  %604 = vmatprep.subr.mxu0 %v301
  %605 = vmatpush1.msra.mxu0 %v300
  %606 = vmatprep.subr.mxu0 %v305
  %607 = vmatpush1.msra.mxu0 %v304
  %608 = vmatprep.subr.mxu0 %v309
  %609 = vmatpush1.msra.mxu0 %v308
  %610 = vmatprep.subr.mxu0 %v313
  %611 = vmatpush1.msra.mxu0 %v312
  %612 = vmatprep.subr.mxu0 %v317
  %613 = vmatpush1.msra.mxu0 %v316
  %614 = vmatprep.subr.mxu0 %v321
  %615 = vmatpush1.msra.mxu0 %v320
  %616 = vmatprep.subr.mxu0 %v325
  %617 = vmatpush1.msra.mxu0 %v324
  %618 = vmatprep.subr.mxu0 %v329
  %619 = vmatpush1.msra.mxu0 %v328
  %620 = vmatprep.subr.mxu0 %v333
  %621 = vmatpush1.msra.mxu0 %v332
  %622 = vmatprep.subr.mxu0 %v337
  %623 = vmatpush1.msra.mxu0 %v336
  %624 = vmatprep.subr.mxu0 %v341
  %625 = vmatpush1.msra.mxu0 %v340
  %626 = vmatprep.subr.mxu0 %v345
  %627 = vmatpush1.msra.mxu0 %v344
  %628 = vmatprep.subr.mxu0 %v349
  %629 = vmatpush1.msra.mxu0 %v348
  %630 = vmatprep.subr.mxu0 %v353
  %631 = vmatpush1.msra.mxu0 %v352
  %632 = vmatprep.subr.mxu0 %v357
  %633 = vmatpush1.msra.mxu0 %v356
  %634 = vmatprep.subr.mxu0 %v361
  %635 = vmatpush1.msra.mxu0 %v360
  %636 = vmatprep.subr.mxu0 %v365
  %637 = vmatpush1.msra.mxu0 %v364
  %638 = vmatprep.subr.mxu0 %v369
  %639 = vmatpush1.msra.mxu0 %v368
  %640 = vmatprep.subr.mxu0 %v373
  %641 = vmatpush1.msra.mxu0 %v372
  %642 = vmatprep.subr.mxu0 %v377
  %643 = vmatpush1.msra.mxu0 %v376
  %644 = vmatprep.subr.mxu0 %v381
  %645 = vmatpush1.msra.mxu0 %v380
  %646 = vmatprep.subr.mxu0 %v385
  %647 = vmatpush1.msra.mxu0 %v384
  %648 = vmatprep.subr.mxu0 %v389
  %649 = vmatpush1.msra.mxu0 %v388
  %650 = vmatprep.subr.mxu0 %v393
  %651 = vmatpush1.msra.mxu0 %v392
  %652 = vmatprep.subr.mxu0 %v397
  %653 = vmatpush1.msra.mxu0 %v396
  %654 = vmatprep.subr.mxu0 %v401
  %655 = vmatpush1.msra.mxu0 %v400
  %656 = vmatprep.subr.mxu0 %v405
  %657 = vmatpush1.msra.mxu0 %v404
  %658 = vmatprep.subr.mxu0 %v409
  %659 = vmatpush1.msra.mxu0 %v408
  %660 = vmatprep.subr.mxu0 %v413
  %661 = vmatpush1.msra.mxu0 %v412
  %662 = vmatprep.subr.mxu0 %v417
  %663 = vmatpush1.msra.mxu0 %v416
  %664 = vmatprep.subr.mxu0 %v421
  %665 = vmatpush1.msra.mxu0 %v420
  %666 = vmatprep.subr.mxu0 %v425
  %667 = vmatpush1.msra.mxu0 %v424
  %668 = vmatprep.mubr.f32.mxu0 %v42
  %669 = vmatmul.mubr.f32.gmra.mrb[0].mxu0 %v41
  %v670 = vpop.f32.mrb[0].mxu0
  %v671 = vadd.f32 %v600, %v670
  %v672 = vpop.f32.mrb[0].mxu0
  %v673 = vadd.f32 %v602, %v672
  %674 = vdwg.mxu0
  %675 = vmatprep.subr.mxu0 %v429
  %676 = vmatpush1.msra.mxu0 %v428
  %677 = vmatprep.subr.mxu0 %v433
  %678 = vmatpush1.msra.mxu0 %v432
  %679 = vmatprep.subr.mxu0 0.0
  %680 = vmatpush1.msra.mxu0 0.0
  %681 = vmatprep.subr.mxu0 0.0
  %682 = vmatpush1.msra.mxu0 0.0
  %683 = vmatprep.subr.mxu0 0.0
  %684 = vmatpush1.msra.mxu0 0.0
  %685 = vmatprep.subr.mxu0 0.0
  %686 = vmatpush1.msra.mxu0 0.0
  %687 = vmatprep.subr.mxu0 0.0
  %688 = vmatpush1.msra.mxu0 0.0
  %689 = vmatprep.subr.mxu0 0.0
  %690 = vmatpush1.msra.mxu0 0.0
  %691 = vmatprep.subr.mxu0 0.0
  %692 = vmatpush1.msra.mxu0 0.0
  %693 = vmatprep.subr.mxu0 0.0
  %694 = vmatpush1.msra.mxu0 0.0
  %695 = vmatprep.subr.mxu0 0.0
  %696 = vmatpush1.msra.mxu0 0.0
  %697 = vmatprep.subr.mxu0 0.0
  %698 = vmatpush1.msra.mxu0 0.0
  %699 = vmatprep.subr.mxu0 0.0
  %700 = vmatpush1.msra.mxu0 0.0
  %701 = vmatprep.subr.mxu0 0.0
  %702 = vmatpush1.msra.mxu0 0.0
  %703 = vmatprep.subr.mxu0 0.0
  %704 = vmatpush1.msra.mxu0 0.0
  %705 = vmatprep.subr.mxu0 0.0
  %706 = vmatpush1.msra.mxu0 0.0
  %707 = vmatprep.subr.mxu0 0.0
  %708 = vmatpush1.msra.mxu0 0.0
  %709 = vmatprep.subr.mxu0 0.0
  %710 = vmatpush1.msra.mxu0 0.0
  %711 = vmatprep.subr.mxu0 0.0
  %712 = vmatpush1.msra.mxu0 0.0
  %713 = vmatprep.subr.mxu0 0.0
  %714 = vmatpush1.msra.mxu0 0.0
  %715 = vmatprep.subr.mxu0 0.0
  %716 = vmatpush1.msra.mxu0 0.0
  %717 = vmatprep.subr.mxu0 0.0
  %718 = vmatpush1.msra.mxu0 0.0
  %719 = vmatprep.subr.mxu0 0.0
  %720 = vmatpush1.msra.mxu0 0.0
  %721 = vmatprep.subr.mxu0 0.0
  %722 = vmatpush1.msra.mxu0 0.0
  %723 = vmatprep.subr.mxu0 0.0
  %724 = vmatpush1.msra.mxu0 0.0
  %725 = vmatprep.subr.mxu0 0.0
  %726 = vmatpush1.msra.mxu0 0.0
  %727 = vmatprep.subr.mxu0 0.0
  %728 = vmatpush1.msra.mxu0 0.0
  %729 = vmatprep.subr.mxu0 0.0
  %730 = vmatpush1.msra.mxu0 0.0
  %731 = vmatprep.subr.mxu0 0.0
  %732 = vmatpush1.msra.mxu0 0.0
  %733 = vmatprep.subr.mxu0 0.0
  %734 = vmatpush1.msra.mxu0 0.0
  %735 = vmatprep.subr.mxu0 0.0
  %736 = vmatpush1.msra.mxu0 0.0
  %737 = vmatprep.subr.mxu0 0.0
  %738 = vmatpush1.msra.mxu0 0.0
  %739 = vmatprep.mubr.f32.mxu0 0.0
  %740 = vmatmul.mubr.f32.gmra.mrb[0].mxu0 %v460
  %v741 = vpop.f32.mrb[0].mxu0
  %v742 = vadd.f32 %v671, %v741
  %v743 = vpop.f32.mrb[0].mxu0
  %v744 = vadd.f32 %v673, %v743
  %745 = vdwg.mxu0
  %746 = vmatprep.subr.mxu0 %v47
  %747 = vmatpush1.msra.mxu0 %v46
  %748 = vmatprep.subr.mxu0 %v51
  %749 = vmatpush1.msra.mxu0 %v50
  %750 = vmatprep.subr.mxu0 %v55
  %751 = vmatpush1.msra.mxu0 %v54
  %752 = vmatprep.subr.mxu0 %v59
  %753 = vmatpush1.msra.mxu0 %v58
  %754 = vmatprep.subr.mxu0 %v63
  %755 = vmatpush1.msra.mxu0 %v62
  %756 = vmatprep.subr.mxu0 %v67
  %757 = vmatpush1.msra.mxu0 %v66
  %758 = vmatprep.subr.mxu0 %v71
  %759 = vmatpush1.msra.mxu0 %v70
  %760 = vmatprep.subr.mxu0 %v75
  %761 = vmatpush1.msra.mxu0 %v74
  %762 = vmatprep.subr.mxu0 %v79
  %763 = vmatpush1.msra.mxu0 %v78
  %764 = vmatprep.subr.mxu0 %v83
  %765 = vmatpush1.msra.mxu0 %v82
  %766 = vmatprep.subr.mxu0 %v87
  %767 = vmatpush1.msra.mxu0 %v86
  %768 = vmatprep.subr.mxu0 %v91
  %769 = vmatpush1.msra.mxu0 %v90
  %770 = vmatprep.subr.mxu0 %v95
  %771 = vmatpush1.msra.mxu0 %v94
  %772 = vmatprep.subr.mxu0 %v99
  %773 = vmatpush1.msra.mxu0 %v98
  %774 = vmatprep.subr.mxu0 %v103
  %775 = vmatpush1.msra.mxu0 %v102
  %776 = vmatprep.subr.mxu0 %v107
  %777 = vmatpush1.msra.mxu0 %v106
  %778 = vmatprep.subr.mxu0 %v111
  %779 = vmatpush1.msra.mxu0 %v110
  %780 = vmatprep.subr.mxu0 %v115
  %781 = vmatpush1.msra.mxu0 %v114
  %782 = vmatprep.subr.mxu0 %v119
  %783 = vmatpush1.msra.mxu0 %v118
  %784 = vmatprep.subr.mxu0 %v123
  %785 = vmatpush1.msra.mxu0 %v122
  %786 = vmatprep.subr.mxu0 %v127
  %787 = vmatpush1.msra.mxu0 %v126
  %788 = vmatprep.subr.mxu0 %v131
  %789 = vmatpush1.msra.mxu0 %v130
  %790 = vmatprep.subr.mxu0 %v135
  %791 = vmatpush1.msra.mxu0 %v134
  %792 = vmatprep.subr.mxu0 %v139
  %793 = vmatpush1.msra.mxu0 %v138
  %794 = vmatprep.subr.mxu0 %v143
  %795 = vmatpush1.msra.mxu0 %v142
  %796 = vmatprep.subr.mxu0 %v147
  %797 = vmatpush1.msra.mxu0 %v146
  %798 = vmatprep.subr.mxu0 %v151
  %799 = vmatpush1.msra.mxu0 %v150
  %800 = vmatprep.subr.mxu0 %v155
  %801 = vmatpush1.msra.mxu0 %v154
  %802 = vmatprep.subr.mxu0 %v159
  %803 = vmatpush1.msra.mxu0 %v158
  %804 = vmatprep.subr.mxu0 %v163
  %805 = vmatpush1.msra.mxu0 %v162
  %806 = vmatprep.subr.mxu0 %v167
  %807 = vmatpush1.msra.mxu0 %v166
  %808 = vmatprep.subr.mxu0 %v171
  %809 = vmatpush1.msra.mxu0 %v170
  %810 = vmatprep.mubr.f32.mxu0 %v38
  %811 = vmatmul.mubr.f32.gmra.mrb[0].mxu0 %v37
  %v812 = vpop.f32.mrb[0].mxu0
  %v813 = vadd.f32 %v449, %v812
  %v814 = vpop.f32.mrb[0].mxu0
  %v815 = vadd.f32 %v453, %v814
  %816 = vdwg.mxu0
  %817 = vmatprep.subr.mxu0 %v175
  %818 = vmatpush1.msra.mxu0 %v174
  %819 = vmatprep.subr.mxu0 %v179
  %820 = vmatpush1.msra.mxu0 %v178
  %821 = vmatprep.subr.mxu0 %v183
  %822 = vmatpush1.msra.mxu0 %v182
  %823 = vmatprep.subr.mxu0 %v187
  %824 = vmatpush1.msra.mxu0 %v186
  %825 = vmatprep.subr.mxu0 %v191
  %826 = vmatpush1.msra.mxu0 %v190
  %827 = vmatprep.subr.mxu0 %v195
  %828 = vmatpush1.msra.mxu0 %v194
  %829 = vmatprep.subr.mxu0 %v199
  %830 = vmatpush1.msra.mxu0 %v198
  %831 = vmatprep.subr.mxu0 %v203
  %832 = vmatpush1.msra.mxu0 %v202
  %833 = vmatprep.subr.mxu0 %v207
  %834 = vmatpush1.msra.mxu0 %v206
  %835 = vmatprep.subr.mxu0 %v211
  %836 = vmatpush1.msra.mxu0 %v210
  %837 = vmatprep.subr.mxu0 %v215
  %838 = vmatpush1.msra.mxu0 %v214
  %839 = vmatprep.subr.mxu0 %v219
  %840 = vmatpush1.msra.mxu0 %v218
  %841 = vmatprep.subr.mxu0 %v223
  %842 = vmatpush1.msra.mxu0 %v222
  %843 = vmatprep.subr.mxu0 %v227
  %844 = vmatpush1.msra.mxu0 %v226
  %845 = vmatprep.subr.mxu0 %v231
  %846 = vmatpush1.msra.mxu0 %v230
  %847 = vmatprep.subr.mxu0 %v235
  %848 = vmatpush1.msra.mxu0 %v234
  %849 = vmatprep.subr.mxu0 %v239
  %850 = vmatpush1.msra.mxu0 %v238
  %851 = vmatprep.subr.mxu0 %v243
  %852 = vmatpush1.msra.mxu0 %v242
  %853 = vmatprep.subr.mxu0 %v247
  %854 = vmatpush1.msra.mxu0 %v246
  %855 = vmatprep.subr.mxu0 %v251
  %856 = vmatpush1.msra.mxu0 %v250
  %857 = vmatprep.subr.mxu0 %v255
  %858 = vmatpush1.msra.mxu0 %v254
  %859 = vmatprep.subr.mxu0 %v259
  %860 = vmatpush1.msra.mxu0 %v258
  %861 = vmatprep.subr.mxu0 %v263
  %862 = vmatpush1.msra.mxu0 %v262
  %863 = vmatprep.subr.mxu0 %v267
  %864 = vmatpush1.msra.mxu0 %v266
  %865 = vmatprep.subr.mxu0 %v271
  %866 = vmatpush1.msra.mxu0 %v270
  %867 = vmatprep.subr.mxu0 %v275
  %868 = vmatpush1.msra.mxu0 %v274
  %869 = vmatprep.subr.mxu0 %v279
  %870 = vmatpush1.msra.mxu0 %v278
  %871 = vmatprep.subr.mxu0 %v283
  %872 = vmatpush1.msra.mxu0 %v282
  %873 = vmatprep.subr.mxu0 %v287
  %874 = vmatpush1.msra.mxu0 %v286
  %875 = vmatprep.subr.mxu0 %v291
  %876 = vmatpush1.msra.mxu0 %v290
  %877 = vmatprep.subr.mxu0 %v295
  %878 = vmatpush1.msra.mxu0 %v294
  %879 = vmatprep.subr.mxu0 %v299
  %880 = vmatpush1.msra.mxu0 %v298
  %881 = vmatprep.mubr.f32.mxu0 %v40
  %882 = vmatmul.mubr.f32.gmra.mrb[0].mxu0 %v39
  %v883 = vpop.f32.mrb[0].mxu0
  %v884 = vadd.f32 %v813, %v883
  %v885 = vpop.f32.mrb[0].mxu0
  %v886 = vadd.f32 %v815, %v885
  %887 = vdwg.mxu0
  %888 = vmatprep.subr.mxu0 %v303
  %889 = vmatpush1.msra.mxu0 %v302
  %890 = vmatprep.subr.mxu0 %v307
  %891 = vmatpush1.msra.mxu0 %v306
  %892 = vmatprep.subr.mxu0 %v311
  %893 = vmatpush1.msra.mxu0 %v310
  %894 = vmatprep.subr.mxu0 %v315
  %895 = vmatpush1.msra.mxu0 %v314
  %896 = vmatprep.subr.mxu0 %v319
  %897 = vmatpush1.msra.mxu0 %v318
  %898 = vmatprep.subr.mxu0 %v323
  %899 = vmatpush1.msra.mxu0 %v322
  %900 = vmatprep.subr.mxu0 %v327
  %901 = vmatpush1.msra.mxu0 %v326
  %902 = vmatprep.subr.mxu0 %v331
  %903 = vmatpush1.msra.mxu0 %v330
  %904 = vmatprep.subr.mxu0 %v335
  %905 = vmatpush1.msra.mxu0 %v334
  %906 = vmatprep.subr.mxu0 %v339
  %907 = vmatpush1.msra.mxu0 %v338
  %908 = vmatprep.subr.mxu0 %v343
  %909 = vmatpush1.msra.mxu0 %v342
  %910 = vmatprep.subr.mxu0 %v347
  %911 = vmatpush1.msra.mxu0 %v346
  %912 = vmatprep.subr.mxu0 %v351
  %913 = vmatpush1.msra.mxu0 %v350
  %914 = vmatprep.subr.mxu0 %v355
  %915 = vmatpush1.msra.mxu0 %v354
  %916 = vmatprep.subr.mxu0 %v359
  %917 = vmatpush1.msra.mxu0 %v358
  %918 = vmatprep.subr.mxu0 %v363
  %919 = vmatpush1.msra.mxu0 %v362
  %920 = vmatprep.subr.mxu0 %v367
  %921 = vmatpush1.msra.mxu0 %v366
  %922 = vmatprep.subr.mxu0 %v371
  %923 = vmatpush1.msra.mxu0 %v370
  %924 = vmatprep.subr.mxu0 %v375
  %925 = vmatpush1.msra.mxu0 %v374
  %926 = vmatprep.subr.mxu0 %v379
  %927 = vmatpush1.msra.mxu0 %v378
  %928 = vmatprep.subr.mxu0 %v383
  %929 = vmatpush1.msra.mxu0 %v382
  %930 = vmatprep.subr.mxu0 %v387
  %931 = vmatpush1.msra.mxu0 %v386
  %932 = vmatprep.subr.mxu0 %v391
  %933 = vmatpush1.msra.mxu0 %v390
  %934 = vmatprep.subr.mxu0 %v395
  %935 = vmatpush1.msra.mxu0 %v394
  %936 = vmatprep.subr.mxu0 %v399
  %937 = vmatpush1.msra.mxu0 %v398
  %938 = vmatprep.subr.mxu0 %v403
  %939 = vmatpush1.msra.mxu0 %v402
  %940 = vmatprep.subr.mxu0 %v407
  %941 = vmatpush1.msra.mxu0 %v406
  %942 = vmatprep.subr.mxu0 %v411
  %943 = vmatpush1.msra.mxu0 %v410
  %944 = vmatprep.subr.mxu0 %v415
  %945 = vmatpush1.msra.mxu0 %v414
  %946 = vmatprep.subr.mxu0 %v419
  %947 = vmatpush1.msra.mxu0 %v418
  %948 = vmatprep.subr.mxu0 %v423
  %949 = vmatpush1.msra.mxu0 %v422
  %950 = vmatprep.subr.mxu0 %v427
  %951 = vmatpush1.msra.mxu0 %v426
  %952 = vmatprep.mubr.f32.mxu0 %v42
  %953 = vmatmul.mubr.f32.gmra.mrb[0].mxu0 %v41
  %v954 = vpop.f32.mrb[0].mxu0
  %v955 = vadd.f32 %v884, %v954
  %v956 = vpop.f32.mrb[0].mxu0
  %v957 = vadd.f32 %v886, %v956
  %958 = vdwg.mxu0
  %959 = vmatprep.subr.mxu0 %v431
  %960 = vmatpush1.msra.mxu0 %v430
  %961 = vmatprep.subr.mxu0 %v435
  %962 = vmatpush1.msra.mxu0 %v434
  %963 = vmatprep.subr.mxu0 0.0
  %964 = vmatpush1.msra.mxu0 0.0
  %965 = vmatprep.subr.mxu0 0.0
  %966 = vmatpush1.msra.mxu0 0.0
  %967 = vmatprep.subr.mxu0 0.0
  %968 = vmatpush1.msra.mxu0 0.0
  %969 = vmatprep.subr.mxu0 0.0
  %970 = vmatpush1.msra.mxu0 0.0
  %971 = vmatprep.subr.mxu0 0.0
  %972 = vmatpush1.msra.mxu0 0.0
  %973 = vmatprep.subr.mxu0 0.0
  %974 = vmatpush1.msra.mxu0 0.0
  %975 = vmatprep.subr.mxu0 0.0
  %976 = vmatpush1.msra.mxu0 0.0
  %977 = vmatprep.subr.mxu0 0.0
  %978 = vmatpush1.msra.mxu0 0.0
  %979 = vmatprep.subr.mxu0 0.0
  %980 = vmatpush1.msra.mxu0 0.0
  %981 = vmatprep.subr.mxu0 0.0
  %982 = vmatpush1.msra.mxu0 0.0
  %983 = vmatprep.subr.mxu0 0.0
  %984 = vmatpush1.msra.mxu0 0.0
  %985 = vmatprep.subr.mxu0 0.0
  %986 = vmatpush1.msra.mxu0 0.0
  %987 = vmatprep.subr.mxu0 0.0
  %988 = vmatpush1.msra.mxu0 0.0
  %989 = vmatprep.subr.mxu0 0.0
  %990 = vmatpush1.msra.mxu0 0.0
  %991 = vmatprep.subr.mxu0 0.0
  %992 = vmatpush1.msra.mxu0 0.0
  %993 = vmatprep.subr.mxu0 0.0
  %994 = vmatpush1.msra.mxu0 0.0
  %995 = vmatprep.subr.mxu0 0.0
  %996 = vmatpush1.msra.mxu0 0.0
  %997 = vmatprep.subr.mxu0 0.0
  %998 = vmatpush1.msra.mxu0 0.0
  %999 = vmatprep.subr.mxu0 0.0
  %1000 = vmatpush1.msra.mxu0 0.0
  %1001 = vmatprep.subr.mxu0 0.0
  %1002 = vmatpush1.msra.mxu0 0.0
  %1003 = vmatprep.subr.mxu0 0.0
  %1004 = vmatpush1.msra.mxu0 0.0
  %1005 = vmatprep.subr.mxu0 0.0
  %1006 = vmatpush1.msra.mxu0 0.0
  %1007 = vmatprep.subr.mxu0 0.0
  %1008 = vmatpush1.msra.mxu0 0.0
  %1009 = vmatprep.subr.mxu0 0.0
  %1010 = vmatpush1.msra.mxu0 0.0
  %1011 = vmatprep.subr.mxu0 0.0
  %1012 = vmatpush1.msra.mxu0 0.0
  %1013 = vmatprep.subr.mxu0 0.0
  %1014 = vmatpush1.msra.mxu0 0.0
  %1015 = vmatprep.subr.mxu0 0.0
  %1016 = vmatpush1.msra.mxu0 0.0
  %1017 = vmatprep.subr.mxu0 0.0
  %1018 = vmatpush1.msra.mxu0 0.0
  %1019 = vmatprep.subr.mxu0 0.0
  %1020 = vmatpush1.msra.mxu0 0.0
  %1021 = vmatprep.subr.mxu0 0.0
  %1022 = vmatpush1.msra.mxu0 0.0
  %1023 = vmatprep.mubr.f32.mxu0 0.0
  %1024 = vmatmul.mubr.f32.gmra.mrb[0].mxu0 %v460
  %v1025 = vpop.f32.mrb[0].mxu0
  %v1026 = vadd.f32 %v955, %v1025
  %v1027 = vpop.f32.mrb[0].mxu0
  %v1028 = vadd.f32 %v957, %v1027
  %1029 = vdwg.mxu0
  %v1030 = vmax.f32 %v742, 0.0
  %v1031 = vmax.f32 %v744, 0.0
  %v1032 = vmax.f32 %v1026, 0.0
  %v1033 = vmax.f32 %v1028, 0.0
  %v1034 = vld [vmem:[%s4] sm:$0xff]
  %v1035 = vld [vmem:[%s4 + $0x8] sm:$0xff]
  %v1036 = vld [vmem:[%s4 + $0x10] sm:$0xff]
  %v1037 = vld [vmem:[%s4 + $0x18] sm:$0xff]
  %v1038 = vld [vmem:[%s4 + $0x20] sm:$0xff]
  %v1039 = vld [vmem:[%s4 + $0x28] sm:$0xff]
  %v1040 = vld [vmem:[%s4 + $0x30] sm:$0xff]
  %v1041 = vld [vmem:[%s4 + $0x38] sm:$0xff]
  %v1042 = vld [vmem:[%s4 + $0x40] sm:$0xff]
  %v1043 = vld [vmem:[%s4 + $0x48] sm:$0xff]
  %v1044 = vld [vmem:[%s4 + $0x50] sm:$0xff]
  %v1045 = vld [vmem:[%s4 + $0x58] sm:$0xff]
  %v1046 = vld [vmem:[%s4 + $0x60] sm:$0xff]
  %v1047 = vld [vmem:[%s4 + $0x68] sm:$0xff]
  %v1048 = vld [vmem:[%s4 + $0x70] sm:$0xff]
  %v1049 = vld [vmem:[%s4 + $0x78] sm:$0xff]
  %v1050 = vld [vmem:[%s4 + $0x80] sm:$0xff]
  %v1051 = vld [vmem:[%s4 + $0x88] sm:$0xff]
  %v1052 = vld [vmem:[%s4 + $0x90] sm:$0xff]
  %v1053 = vld [vmem:[%s4 + $0x98] sm:$0xff]
  %v1054 = vld [vmem:[%s4 + $0xa0] sm:$0xff]
  %v1055 = vld [vmem:[%s4 + $0xa8] sm:$0xff]
  %v1056 = vld [vmem:[%s4 + $0xb0] sm:$0xff]
  %v1057 = vld [vmem:[%s4 + $0xb8] sm:$0xff]
  %v1058 = vld [vmem:[%s4 + $0xc0] sm:$0xff]
  %v1059 = vld [vmem:[%s4 + $0xc8] sm:$0xff]
  %v1060 = vld [vmem:[%s4 + $0xd0] sm:$0xff]
  %v1061 = vld [vmem:[%s4 + $0xd8] sm:$0xff]
  %v1062 = vld [vmem:[%s4 + $0xe0] sm:$0xff]
  %v1063 = vld [vmem:[%s4 + $0xe8] sm:$0xff]
  %v1064 = vld [vmem:[%s4 + $0xf0] sm:$0xff]
  %v1065 = vld [vmem:[%s4 + $0xf8] sm:$0xff]
  %v1066 = vld [vmem:[%s4 + $0x100] sm:$0xff]
  %v1067 = vld [vmem:[%s4 + $0x108] sm:$0xff]
  %v1068 = vld [vmem:[%s4 + $0x110] sm:$0xff]
  %v1069 = vld [vmem:[%s4 + $0x118] sm:$0xff]
  %v1070 = vld [vmem:[%s4 + $0x120] sm:$0xff]
  %v1071 = vld [vmem:[%s4 + $0x128] sm:$0xff]
  %v1072 = vld [vmem:[%s4 + $0x130] sm:$0xff]
  %v1073 = vld [vmem:[%s4 + $0x138] sm:$0xff]
  %v1074 = vld [vmem:[%s4 + $0x140] sm:$0xff]
  %v1075 = vld [vmem:[%s4 + $0x148] sm:$0xff]
  %v1076 = vld [vmem:[%s4 + $0x150] sm:$0xff]
  %v1077 = vld [vmem:[%s4 + $0x158] sm:$0xff]
  %v1078 = vld [vmem:[%s4 + $0x160] sm:$0xff]
  %v1079 = vld [vmem:[%s4 + $0x168] sm:$0xff]
  %v1080 = vld [vmem:[%s4 + $0x170] sm:$0xff]
  %v1081 = vld [vmem:[%s4 + $0x178] sm:$0xff]
  %v1082 = vld [vmem:[%s4 + $0x180] sm:$0xff]
  %v1083 = vld [vmem:[%s4 + $0x188] sm:$0xff]
  %v1084 = vld [vmem:[%s4 + $0x190] sm:$0xff]
  %v1085 = vld [vmem:[%s4 + $0x198] sm:$0xff]
  %v1086 = vld [vmem:[%s4 + $0x1a0] sm:$0xff]
  %v1087 = vld [vmem:[%s4 + $0x1a8] sm:$0xff]
  %v1088 = vld [vmem:[%s4 + $0x1b0] sm:$0xff]
  %v1089 = vld [vmem:[%s4 + $0x1b8] sm:$0xff]
  %v1090 = vld [vmem:[%s4 + $0x1c0] sm:$0xff]
  %v1091 = vld [vmem:[%s4 + $0x1c8] sm:$0xff]
  %v1092 = vld [vmem:[%s4 + $0x1d0] sm:$0xff]
  %v1093 = vld [vmem:[%s4 + $0x1d8] sm:$0xff]
  %v1094 = vld [vmem:[%s4 + $0x1e0] sm:$0xff]
  %v1095 = vld [vmem:[%s4 + $0x1e8] sm:$0xff]
  %v1096 = vld [vmem:[%s4 + $0x1f0] sm:$0xff]
  %v1097 = vld [vmem:[%s4 + $0x1f8] sm:$0xff]
  %v1098 = vld [vmem:[%s4 + $0x200] sm:$0xff]
  %v1099 = vld [vmem:[%s4 + $0x208] sm:$0xff]
  %v1100 = vld [vmem:[%s4 + $0x210] sm:$0xff]
  %v1101 = vld [vmem:[%s4 + $0x218] sm:$0xff]
  %v1102 = vld [vmem:[%s4 + $0x220] sm:$0xff]
  %v1103 = vld [vmem:[%s4 + $0x228] sm:$0xff]
  %v1104 = vld [vmem:[%s4 + $0x230] sm:$0xff]
  %v1105 = vld [vmem:[%s4 + $0x238] sm:$0xff]
  %v1106 = vld [vmem:[%s4 + $0x240] sm:$0xff]
  %v1107 = vld [vmem:[%s4 + $0x248] sm:$0xff]
  %v1108 = vld [vmem:[%s4 + $0x250] sm:$0xff]
  %v1109 = vld [vmem:[%s4 + $0x258] sm:$0xff]
  %v1110 = vld [vmem:[%s4 + $0x260] sm:$0xff]
  %v1111 = vld [vmem:[%s4 + $0x268] sm:$0xff]
  %v1112 = vld [vmem:[%s4 + $0x270] sm:$0xff]
  %v1113 = vld [vmem:[%s4 + $0x278] sm:$0xff]
  %v1114 = vld [vmem:[%s4 + $0x280] sm:$0xff]
  %v1115 = vld [vmem:[%s4 + $0x288] sm:$0xff]
  %v1116 = vld [vmem:[%s4 + $0x290] sm:$0xff]
  %v1117 = vld [vmem:[%s4 + $0x298] sm:$0xff]
  %v1118 = vld [vmem:[%s4 + $0x2a0] sm:$0xff]
  %v1119 = vld [vmem:[%s4 + $0x2a8] sm:$0xff]
  %v1120 = vld [vmem:[%s4 + $0x2b0] sm:$0xff]
  %v1121 = vld [vmem:[%s4 + $0x2b8] sm:$0xff]
  %v1122 = vld [vmem:[%s4 + $0x2c0] sm:$0xff]
  %v1123 = vld [vmem:[%s4 + $0x2c8] sm:$0xff]
  %v1124 = vld [vmem:[%s4 + $0x2d0] sm:$0xff]
  %v1125 = vld [vmem:[%s4 + $0x2d8] sm:$0xff]
  %v1126 = vld [vmem:[%s4 + $0x2e0] sm:$0xff]
  %v1127 = vld [vmem:[%s4 + $0x2e8] sm:$0xff]
  %v1128 = vld [vmem:[%s4 + $0x2f0] sm:$0xff]
  %v1129 = vld [vmem:[%s4 + $0x2f8] sm:$0xff]
  %v1130 = vld [vmem:[%s4 + $0x300] sm:$0xff]
  %v1131 = vld [vmem:[%s4 + $0x308] sm:$0xff]
  %v1132 = vld [vmem:[%s4 + $0x310] sm:$0xff]
  %v1133 = vld [vmem:[%s4 + $0x318] sm:$0xff]
  %v1134 = vld [vmem:[%s4 + $0x320] sm:$0xff]
  %v1135 = vld [vmem:[%s4 + $0x328] sm:$0xff]
  %v1136 = vld [vmem:[%s4 + $0x330] sm:$0xff]
  %v1137 = vld [vmem:[%s4 + $0x338] sm:$0xff]
  %v1138 = vld [vmem:[%s4 + $0x340] sm:$0xff]
  %v1139 = vld [vmem:[%s4 + $0x348] sm:$0xff]
  %v1140 = vld [vmem:[%s4 + $0x350] sm:$0xff]
  %v1141 = vld [vmem:[%s4 + $0x358] sm:$0xff]
  %v1142 = vld [vmem:[%s4 + $0x360] sm:$0xff]
  %v1143 = vld [vmem:[%s4 + $0x368] sm:$0xff]
  %v1144 = vld [vmem:[%s4 + $0x370] sm:$0xff]
  %v1145 = vld [vmem:[%s4 + $0x378] sm:$0xff]
  %v1146 = vld [vmem:[%s4 + $0x380] sm:$0xff]
  %v1147 = vld [vmem:[%s4 + $0x388] sm:$0xff]
  %v1148 = vld [vmem:[%s4 + $0x390] sm:$0xff]
  %v1149 = vld [vmem:[%s4 + $0x398] sm:$0xff]
  %v1150 = vld [vmem:[%s4 + $0x3a0] sm:$0xff]
  %v1151 = vld [vmem:[%s4 + $0x3a8] sm:$0xff]
  %v1152 = vld [vmem:[%s4 + $0x3b0] sm:$0xff]
  %v1153 = vld [vmem:[%s4 + $0x3b8] sm:$0xff]
  %v1154 = vld [vmem:[%s4 + $0x3c0] sm:$0xff]
  %v1155 = vld [vmem:[%s4 + $0x3c8] sm:$0xff]
  %v1156 = vld [vmem:[%s4 + $0x3d0] sm:$0xff]
  %v1157 = vld [vmem:[%s4 + $0x3d8] sm:$0xff]
  %v1158 = vld [vmem:[%s4 + $0x3e0] sm:$0xff]
  %v1159 = vld [vmem:[%s4 + $0x3e8] sm:$0xff]
  %v1160 = vld [vmem:[%s4 + $0x3f0] sm:$0xff]
  %v1161 = vld [vmem:[%s4 + $0x3f8] sm:$0xff]
  %v1162 = vld [vmem:[%s5] sm:$0x3]
  %v1164 = vlaneseq
  %v1165 = vshrl.u32 %v1164, 7
  %v1166 = vsub.s32 0, %v1165
  %v1167 = vrot.slane %v1162, %v1166
  %v1168 = vlaneseq
  %v1169 = vshrl.u32 %v1168, 7
  %v1170 = vsub.s32 1, %v1169
  %v1171 = vrot.slane %v1162, %v1170
  %1174 = vmatprep.subr.mxu0 %v1035
  %1175 = vmatpush1.msra.mxu0 %v1034
  %1176 = vmatprep.subr.mxu0 %v1037
  %1177 = vmatpush1.msra.mxu0 %v1036
  %1178 = vmatprep.subr.mxu0 %v1039
  %1179 = vmatpush1.msra.mxu0 %v1038
  %1180 = vmatprep.subr.mxu0 %v1041
  %1181 = vmatpush1.msra.mxu0 %v1040
  %1182 = vmatprep.subr.mxu0 %v1043
  %1183 = vmatpush1.msra.mxu0 %v1042
  %1184 = vmatprep.subr.mxu0 %v1045
  %1185 = vmatpush1.msra.mxu0 %v1044
  %1186 = vmatprep.subr.mxu0 %v1047
  %1187 = vmatpush1.msra.mxu0 %v1046
  %1188 = vmatprep.subr.mxu0 %v1049
  %1189 = vmatpush1.msra.mxu0 %v1048
  %1190 = vmatprep.subr.mxu0 %v1051
  %1191 = vmatpush1.msra.mxu0 %v1050
  %1192 = vmatprep.subr.mxu0 %v1053
  %1193 = vmatpush1.msra.mxu0 %v1052
  %1194 = vmatprep.subr.mxu0 %v1055
  %1195 = vmatpush1.msra.mxu0 %v1054
  %1196 = vmatprep.subr.mxu0 %v1057
  %1197 = vmatpush1.msra.mxu0 %v1056
  %1198 = vmatprep.subr.mxu0 %v1059
  %1199 = vmatpush1.msra.mxu0 %v1058
  %1200 = vmatprep.subr.mxu0 %v1061
  %1201 = vmatpush1.msra.mxu0 %v1060
  %1202 = vmatprep.subr.mxu0 %v1063
  %1203 = vmatpush1.msra.mxu0 %v1062
  %1204 = vmatprep.subr.mxu0 %v1065
  %1205 = vmatpush1.msra.mxu0 %v1064
  %1206 = vmatprep.subr.mxu0 %v1067
  %1207 = vmatpush1.msra.mxu0 %v1066
  %1208 = vmatprep.subr.mxu0 %v1069
  %1209 = vmatpush1.msra.mxu0 %v1068
  %1210 = vmatprep.subr.mxu0 %v1071
  %1211 = vmatpush1.msra.mxu0 %v1070
  %1212 = vmatprep.subr.mxu0 %v1073
  %1213 = vmatpush1.msra.mxu0 %v1072
  %1214 = vmatprep.subr.mxu0 %v1075
  %1215 = vmatpush1.msra.mxu0 %v1074
  %1216 = vmatprep.subr.mxu0 %v1077
  %1217 = vmatpush1.msra.mxu0 %v1076
  %1218 = vmatprep.subr.mxu0 %v1079
  %1219 = vmatpush1.msra.mxu0 %v1078
  %1220 = vmatprep.subr.mxu0 %v1081
  %1221 = vmatpush1.msra.mxu0 %v1080
  %1222 = vmatprep.subr.mxu0 %v1083
  %1223 = vmatpush1.msra.mxu0 %v1082
  %1224 = vmatprep.subr.mxu0 %v1085
  %1225 = vmatpush1.msra.mxu0 %v1084
  %1226 = vmatprep.subr.mxu0 %v1087
  %1227 = vmatpush1.msra.mxu0 %v1086
  %1228 = vmatprep.subr.mxu0 %v1089
  %1229 = vmatpush1.msra.mxu0 %v1088
  %1230 = vmatprep.subr.mxu0 %v1091
  %1231 = vmatpush1.msra.mxu0 %v1090
  %1232 = vmatprep.subr.mxu0 %v1093
  %1233 = vmatpush1.msra.mxu0 %v1092
  %1234 = vmatprep.subr.mxu0 %v1095
  %1235 = vmatpush1.msra.mxu0 %v1094
  %1236 = vmatprep.subr.mxu0 %v1097
  %1237 = vmatpush1.msra.mxu0 %v1096
  %1238 = vmatprep.mubr.f32.mxu0 %v1031
  %1239 = vmatmul.mubr.f32.gmra.mrb[0].mxu0 %v1030
  %v1240 = vpop.f32.mrb[0].mxu0
  %v1241 = vadd.f32 %v1167, %v1240
  %v1242 = vpop.f32.mrb[0].mxu0
  %v1243 = vadd.f32 %v1171, %v1242
  %1244 = vdwg.mxu0
  %1245 = vmatprep.subr.mxu0 %v1099
  %1246 = vmatpush1.msra.mxu0 %v1098
  %1247 = vmatprep.subr.mxu0 %v1101
  %1248 = vmatpush1.msra.mxu0 %v1100
  %1249 = vmatprep.subr.mxu0 %v1103
  %1250 = vmatpush1.msra.mxu0 %v1102
  %1251 = vmatprep.subr.mxu0 %v1105
  %1252 = vmatpush1.msra.mxu0 %v1104
  %1253 = vmatprep.subr.mxu0 %v1107
  %1254 = vmatpush1.msra.mxu0 %v1106
  %1255 = vmatprep.subr.mxu0 %v1109
  %1256 = vmatpush1.msra.mxu0 %v1108
  %1257 = vmatprep.subr.mxu0 %v1111
  %1258 = vmatpush1.msra.mxu0 %v1110
  %1259 = vmatprep.subr.mxu0 %v1113
  %1260 = vmatpush1.msra.mxu0 %v1112
  %1261 = vmatprep.subr.mxu0 %v1115
  %1262 = vmatpush1.msra.mxu0 %v1114
  %1263 = vmatprep.subr.mxu0 %v1117
  %1264 = vmatpush1.msra.mxu0 %v1116
  %1265 = vmatprep.subr.mxu0 %v1119
  %1266 = vmatpush1.msra.mxu0 %v1118
  %1267 = vmatprep.subr.mxu0 %v1121
  %1268 = vmatpush1.msra.mxu0 %v1120
  %1269 = vmatprep.subr.mxu0 %v1123
  %1270 = vmatpush1.msra.mxu0 %v1122
  %1271 = vmatprep.subr.mxu0 %v1125
  %1272 = vmatpush1.msra.mxu0 %v1124
  %1273 = vmatprep.subr.mxu0 %v1127
  %1274 = vmatpush1.msra.mxu0 %v1126
  %1275 = vmatprep.subr.mxu0 %v1129
  %1276 = vmatpush1.msra.mxu0 %v1128
  %1277 = vmatprep.subr.mxu0 %v1131
  %1278 = vmatpush1.msra.mxu0 %v1130
  %1279 = vmatprep.subr.mxu0 %v1133
  %1280 = vmatpush1.msra.mxu0 %v1132
  %1281 = vmatprep.subr.mxu0 %v1135
  %1282 = vmatpush1.msra.mxu0 %v1134
  %1283 = vmatprep.subr.mxu0 %v1137
  %1284 = vmatpush1.msra.mxu0 %v1136
  %1285 = vmatprep.subr.mxu0 %v1139
  %1286 = vmatpush1.msra.mxu0 %v1138
  %1287 = vmatprep.subr.mxu0 %v1141
  %1288 = vmatpush1.msra.mxu0 %v1140
  %1289 = vmatprep.subr.mxu0 %v1143
  %1290 = vmatpush1.msra.mxu0 %v1142
  %1291 = vmatprep.subr.mxu0 %v1145
  %1292 = vmatpush1.msra.mxu0 %v1144
  %1293 = vmatprep.subr.mxu0 %v1147
  %1294 = vmatpush1.msra.mxu0 %v1146
  %1295 = vmatprep.subr.mxu0 %v1149
  %1296 = vmatpush1.msra.mxu0 %v1148
  %1297 = vmatprep.subr.mxu0 %v1151
  %1298 = vmatpush1.msra.mxu0 %v1150
  %1299 = vmatprep.subr.mxu0 %v1153
  %1300 = vmatpush1.msra.mxu0 %v1152
  %1301 = vmatprep.subr.mxu0 %v1155
  %1302 = vmatpush1.msra.mxu0 %v1154
  %1303 = vmatprep.subr.mxu0 %v1157
  %1304 = vmatpush1.msra.mxu0 %v1156
  %1305 = vmatprep.subr.mxu0 %v1159
  %1306 = vmatpush1.msra.mxu0 %v1158
  %1307 = vmatprep.subr.mxu0 %v1161
  %1308 = vmatpush1.msra.mxu0 %v1160
  %1309 = vmatprep.mubr.f32.mxu0 %v1033
  %1310 = vmatmul.mubr.f32.gmra.mrb[0].mxu0 %v1032
  %v1311 = vpop.f32.mrb[0].mxu0
  %v1312 = vadd.f32 %v1241, %v1311
  %v1313 = vpop.f32.mrb[0].mxu0
  %v1314 = vadd.f32 %v1243, %v1313
  %1315 = vdwg.mxu0
  %v1316 = vld [vmem:[%s1] sm:$0xff]
  %v1317 = vmul.f32 %v1314, 0.5
  %v1318 = vmul.f32 %v1317, 1.442695
  %v1319 = vpow.pop %v1318
  %v1320 = vmul.f32 %v1316, %v1319
  %v1321 = vadd.f32 %v1312, %v1320
  %v1322 = vld [vmem:[%s6] sm:$0xff]
  %v1323 = vld [vmem:[%s6 + $0x8] sm:$0xff]
  %v1324 = vld [vmem:[%s6 + $0x10] sm:$0xff]
  %v1325 = vld [vmem:[%s6 + $0x18] sm:$0xff]
  %v1326 = vld [vmem:[%s6 + $0x20] sm:$0xff]
  %v1327 = vld [vmem:[%s6 + $0x28] sm:$0xff]
  %v1328 = vld [vmem:[%s6 + $0x30] sm:$0xff]
  %v1329 = vld [vmem:[%s6 + $0x38] sm:$0xff]
  %v1330 = vld [vmem:[%s6 + $0x40] sm:$0xff]
  %v1331 = vld [vmem:[%s6 + $0x48] sm:$0xff]
  %v1332 = vld [vmem:[%s6 + $0x50] sm:$0xff]
  %v1333 = vld [vmem:[%s6 + $0x58] sm:$0xff]
  %v1334 = vld [vmem:[%s6 + $0x60] sm:$0xff]
  %v1335 = vld [vmem:[%s6 + $0x68] sm:$0xff]
  %v1336 = vld [vmem:[%s6 + $0x70] sm:$0xff]
  %v1337 = vld [vmem:[%s6 + $0x78] sm:$0xff]
  %v1338 = vld [vmem:[%s6 + $0x80] sm:$0xff]
  %v1339 = vld [vmem:[%s6 + $0x88] sm:$0xff]
  %v1340 = vld [vmem:[%s6 + $0x90] sm:$0xff]
  %v1341 = vld [vmem:[%s6 + $0x98] sm:$0xff]
  %v1342 = vld [vmem:[%s6 + $0xa0] sm:$0xff]
  %v1343 = vld [vmem:[%s6 + $0xa8] sm:$0xff]
  %v1344 = vld [vmem:[%s6 + $0xb0] sm:$0xff]
  %v1345 = vld [vmem:[%s6 + $0xb8] sm:$0xff]
  %v1346 = vld [vmem:[%s6 + $0xc0] sm:$0xff]
  %v1347 = vld [vmem:[%s6 + $0xc8] sm:$0xff]
  %v1348 = vld [vmem:[%s6 + $0xd0] sm:$0xff]
  %v1349 = vld [vmem:[%s6 + $0xd8] sm:$0xff]
  %v1350 = vld [vmem:[%s6 + $0xe0] sm:$0xff]
  %v1351 = vld [vmem:[%s6 + $0xe8] sm:$0xff]
  %v1352 = vld [vmem:[%s6 + $0xf0] sm:$0xff]
  %v1353 = vld [vmem:[%s6 + $0xf8] sm:$0xff]
  %v1354 = vld [vmem:[%s6 + $0x100] sm:$0xff]
  %v1355 = vld [vmem:[%s6 + $0x108] sm:$0xff]
  %v1356 = vld [vmem:[%s6 + $0x110] sm:$0xff]
  %v1357 = vld [vmem:[%s6 + $0x118] sm:$0xff]
  %v1358 = vld [vmem:[%s6 + $0x120] sm:$0xff]
  %v1359 = vld [vmem:[%s6 + $0x128] sm:$0xff]
  %v1360 = vld [vmem:[%s6 + $0x130] sm:$0xff]
  %v1361 = vld [vmem:[%s6 + $0x138] sm:$0xff]
  %v1362 = vld [vmem:[%s6 + $0x140] sm:$0xff]
  %v1363 = vld [vmem:[%s6 + $0x148] sm:$0xff]
  %v1364 = vld [vmem:[%s6 + $0x150] sm:$0xff]
  %v1365 = vld [vmem:[%s6 + $0x158] sm:$0xff]
  %v1366 = vld [vmem:[%s6 + $0x160] sm:$0xff]
  %v1367 = vld [vmem:[%s6 + $0x168] sm:$0xff]
  %v1368 = vld [vmem:[%s6 + $0x170] sm:$0xff]
  %v1369 = vld [vmem:[%s6 + $0x178] sm:$0xff]
  %v1370 = vld [vmem:[%s6 + $0x180] sm:$0xff]
  %v1371 = vld [vmem:[%s6 + $0x188] sm:$0xff]
  %v1372 = vld [vmem:[%s6 + $0x190] sm:$0xff]
  %v1373 = vld [vmem:[%s6 + $0x198] sm:$0xff]
  %v1374 = vld [vmem:[%s6 + $0x1a0] sm:$0xff]
  %v1375 = vld [vmem:[%s6 + $0x1a8] sm:$0xff]
  %v1376 = vld [vmem:[%s6 + $0x1b0] sm:$0xff]
  %v1377 = vld [vmem:[%s6 + $0x1b8] sm:$0xff]
  %v1378 = vld [vmem:[%s6 + $0x1c0] sm:$0xff]
  %v1379 = vld [vmem:[%s6 + $0x1c8] sm:$0xff]
  %v1380 = vld [vmem:[%s6 + $0x1d0] sm:$0xff]
  %v1381 = vld [vmem:[%s6 + $0x1d8] sm:$0xff]
  %v1382 = vld [vmem:[%s6 + $0x1e0] sm:$0xff]
  %v1383 = vld [vmem:[%s6 + $0x1e8] sm:$0xff]
  %v1384 = vld [vmem:[%s6 + $0x1f0] sm:$0xff]
  %v1385 = vld [vmem:[%s6 + $0x1f8] sm:$0xff]
  %v1386 = vld [vmem:[%s7] sm:$0xf]
  %v1388 = vlaneseq
  %v1389 = vshrl.u32 %v1388, 7
  %v1390 = vsub.s32 0, %v1389
  %v1391 = vrot.slane %v1386, %v1390
  %v1392 = vlaneseq
  %v1393 = vshrl.u32 %v1392, 7
  %v1394 = vsub.s32 1, %v1393
  %v1395 = vrot.slane %v1386, %v1394
  %v1396 = vlaneseq
  %v1397 = vshrl.u32 %v1396, 7
  %v1398 = vsub.s32 2, %v1397
  %v1399 = vrot.slane %v1386, %v1398
  %v1400 = vlaneseq
  %v1401 = vshrl.u32 %v1400, 7
  %v1402 = vsub.s32 3, %v1401
  %v1403 = vrot.slane %v1386, %v1402
  %1408 = vmatprep.subr.mxu0 %v1323
  %1409 = vmatpush1.msra.mxu0 %v1322
  %1410 = vmatprep.subr.mxu0 %v1327
  %1411 = vmatpush1.msra.mxu0 %v1326
  %1412 = vmatprep.subr.mxu0 %v1331
  %1413 = vmatpush1.msra.mxu0 %v1330
  %1414 = vmatprep.subr.mxu0 %v1335
  %1415 = vmatpush1.msra.mxu0 %v1334
  %1416 = vmatprep.subr.mxu0 %v1339
  %1417 = vmatpush1.msra.mxu0 %v1338
  %1418 = vmatprep.subr.mxu0 %v1343
  %1419 = vmatpush1.msra.mxu0 %v1342
  %1420 = vmatprep.subr.mxu0 %v1347
  %1421 = vmatpush1.msra.mxu0 %v1346
  %1422 = vmatprep.subr.mxu0 %v1351
  %1423 = vmatpush1.msra.mxu0 %v1350
  %1424 = vmatprep.subr.mxu0 %v1355
  %1425 = vmatpush1.msra.mxu0 %v1354
  %1426 = vmatprep.subr.mxu0 %v1359
  %1427 = vmatpush1.msra.mxu0 %v1358
  %1428 = vmatprep.subr.mxu0 %v1363
  %1429 = vmatpush1.msra.mxu0 %v1362
  %1430 = vmatprep.subr.mxu0 %v1367
  %1431 = vmatpush1.msra.mxu0 %v1366
  %1432 = vmatprep.subr.mxu0 %v1371
  %1433 = vmatpush1.msra.mxu0 %v1370
  %1434 = vmatprep.subr.mxu0 %v1375
  %1435 = vmatpush1.msra.mxu0 %v1374
  %1436 = vmatprep.subr.mxu0 %v1379
  %1437 = vmatpush1.msra.mxu0 %v1378
  %1438 = vmatprep.subr.mxu0 %v1383
  %1439 = vmatpush1.msra.mxu0 %v1382
  %1440 = vmatprep.subr.mxu0 0.0
  %1441 = vmatpush1.msra.mxu0 0.0
  %1442 = vmatprep.subr.mxu0 0.0
  %1443 = vmatpush1.msra.mxu0 0.0
  %1444 = vmatprep.subr.mxu0 0.0
  %1445 = vmatpush1.msra.mxu0 0.0
  %1446 = vmatprep.subr.mxu0 0.0
  %1447 = vmatpush1.msra.mxu0 0.0
  %1448 = vmatprep.subr.mxu0 0.0
  %1449 = vmatpush1.msra.mxu0 0.0
  %1450 = vmatprep.subr.mxu0 0.0
  %1451 = vmatpush1.msra.mxu0 0.0
  %1452 = vmatprep.subr.mxu0 0.0
  %1453 = vmatpush1.msra.mxu0 0.0
  %1454 = vmatprep.subr.mxu0 0.0
  %1455 = vmatpush1.msra.mxu0 0.0
  %1456 = vmatprep.subr.mxu0 0.0
  %1457 = vmatpush1.msra.mxu0 0.0
  %1458 = vmatprep.subr.mxu0 0.0
  %1459 = vmatpush1.msra.mxu0 0.0
  %1460 = vmatprep.subr.mxu0 0.0
  %1461 = vmatpush1.msra.mxu0 0.0
  %1462 = vmatprep.subr.mxu0 0.0
  %1463 = vmatpush1.msra.mxu0 0.0
  %1464 = vmatprep.subr.mxu0 0.0
  %1465 = vmatpush1.msra.mxu0 0.0
  %1466 = vmatprep.subr.mxu0 0.0
  %1467 = vmatpush1.msra.mxu0 0.0
  %1468 = vmatprep.subr.mxu0 0.0
  %1469 = vmatpush1.msra.mxu0 0.0
  %1470 = vmatprep.subr.mxu0 0.0
  %1471 = vmatpush1.msra.mxu0 0.0
  %1472 = vmatprep.mubr.f32.mxu0 0.0
  %1473 = vmatmul.mubr.f32.gmra.mrb[0].mxu0 %v1321
  %v1474 = vpop.f32.mrb[0].mxu0
  %v1475 = vadd.f32 %v1391, %v1474
  %v1476 = vpop.f32.mrb[0].mxu0
  %v1477 = vadd.f32 %v1395, %v1476
  %1478 = vdwg.mxu0
  %1479 = vmatprep.subr.mxu0 %v1325
  %1480 = vmatpush1.msra.mxu0 %v1324
  %1481 = vmatprep.subr.mxu0 %v1329
  %1482 = vmatpush1.msra.mxu0 %v1328
  %1483 = vmatprep.subr.mxu0 %v1333
  %1484 = vmatpush1.msra.mxu0 %v1332
  %1485 = vmatprep.subr.mxu0 %v1337
  %1486 = vmatpush1.msra.mxu0 %v1336
  %1487 = vmatprep.subr.mxu0 %v1341
  %1488 = vmatpush1.msra.mxu0 %v1340
  %1489 = vmatprep.subr.mxu0 %v1345
  %1490 = vmatpush1.msra.mxu0 %v1344
  %1491 = vmatprep.subr.mxu0 %v1349
  %1492 = vmatpush1.msra.mxu0 %v1348
  %1493 = vmatprep.subr.mxu0 %v1353
  %1494 = vmatpush1.msra.mxu0 %v1352
  %1495 = vmatprep.subr.mxu0 %v1357
  %1496 = vmatpush1.msra.mxu0 %v1356
  %1497 = vmatprep.subr.mxu0 %v1361
  %1498 = vmatpush1.msra.mxu0 %v1360
  %1499 = vmatprep.subr.mxu0 %v1365
  %1500 = vmatpush1.msra.mxu0 %v1364
  %1501 = vmatprep.subr.mxu0 %v1369
  %1502 = vmatpush1.msra.mxu0 %v1368
  %1503 = vmatprep.subr.mxu0 %v1373
  %1504 = vmatpush1.msra.mxu0 %v1372
  %1505 = vmatprep.subr.mxu0 %v1377
  %1506 = vmatpush1.msra.mxu0 %v1376
  %1507 = vmatprep.subr.mxu0 %v1381
  %1508 = vmatpush1.msra.mxu0 %v1380
  %1509 = vmatprep.subr.mxu0 %v1385
  %1510 = vmatpush1.msra.mxu0 %v1384
  %1511 = vmatprep.subr.mxu0 0.0
  %1512 = vmatpush1.msra.mxu0 0.0
  %1513 = vmatprep.subr.mxu0 0.0
  %1514 = vmatpush1.msra.mxu0 0.0
  %1515 = vmatprep.subr.mxu0 0.0
  %1516 = vmatpush1.msra.mxu0 0.0
  %1517 = vmatprep.subr.mxu0 0.0
  %1518 = vmatpush1.msra.mxu0 0.0
  %1519 = vmatprep.subr.mxu0 0.0
  %1520 = vmatpush1.msra.mxu0 0.0
  %1521 = vmatprep.subr.mxu0 0.0
  %1522 = vmatpush1.msra.mxu0 0.0
  %1523 = vmatprep.subr.mxu0 0.0
  %1524 = vmatpush1.msra.mxu0 0.0
  %1525 = vmatprep.subr.mxu0 0.0
  %1526 = vmatpush1.msra.mxu0 0.0
  %1527 = vmatprep.subr.mxu0 0.0
  %1528 = vmatpush1.msra.mxu0 0.0
  %1529 = vmatprep.subr.mxu0 0.0
  %1530 = vmatpush1.msra.mxu0 0.0
  %1531 = vmatprep.subr.mxu0 0.0
  %1532 = vmatpush1.msra.mxu0 0.0
  %1533 = vmatprep.subr.mxu0 0.0
  %1534 = vmatpush1.msra.mxu0 0.0
  %1535 = vmatprep.subr.mxu0 0.0
  %1536 = vmatpush1.msra.mxu0 0.0
  %1537 = vmatprep.subr.mxu0 0.0
  %1538 = vmatpush1.msra.mxu0 0.0
  %1539 = vmatprep.subr.mxu0 0.0
  %1540 = vmatpush1.msra.mxu0 0.0
  %1541 = vmatprep.subr.mxu0 0.0
  %1542 = vmatpush1.msra.mxu0 0.0
  %1543 = vmatprep.mubr.f32.mxu0 0.0
  %1544 = vmatmul.mubr.f32.gmra.mrb[0].mxu0 %v1321
  %v1545 = vpop.f32.mrb[0].mxu0
  %v1546 = vadd.f32 %v1399, %v1545
  %v1547 = vpop.f32.mrb[0].mxu0
  %v1548 = vadd.f32 %v1403, %v1547
  %1549 = vdwg.mxu0
  %v1550 = vmax.f32 %v1475, 0.0
  %v1551 = vmax.f32 %v1477, 0.0
  %v1552 = vmax.f32 %v1546, 0.0
  %v1553 = vmax.f32 %v1548, 0.0
  %v1554 = vld [vmem:[%s8] sm:$0xff]
  %v1555 = vld [vmem:[%s8 + $0x8] sm:$0xff]
  %v1556 = vld [vmem:[%s8 + $0x10] sm:$0xff]
  %v1557 = vld [vmem:[%s8 + $0x18] sm:$0xff]
  %v1558 = vld [vmem:[%s8 + $0x20] sm:$0xff]
  %v1559 = vld [vmem:[%s8 + $0x28] sm:$0xff]
  %v1560 = vld [vmem:[%s8 + $0x30] sm:$0xff]
  %v1561 = vld [vmem:[%s8 + $0x38] sm:$0xff]
  %v1562 = vld [vmem:[%s8 + $0x40] sm:$0xff]
  %v1563 = vld [vmem:[%s8 + $0x48] sm:$0xff]
  %v1564 = vld [vmem:[%s8 + $0x50] sm:$0xff]
  %v1565 = vld [vmem:[%s8 + $0x58] sm:$0xff]
  %v1566 = vld [vmem:[%s8 + $0x60] sm:$0xff]
  %v1567 = vld [vmem:[%s8 + $0x68] sm:$0xff]
  %v1568 = vld [vmem:[%s8 + $0x70] sm:$0xff]
  %v1569 = vld [vmem:[%s8 + $0x78] sm:$0xff]
  %v1570 = vld [vmem:[%s8 + $0x80] sm:$0xff]
  %v1571 = vld [vmem:[%s8 + $0x88] sm:$0xff]
  %v1572 = vld [vmem:[%s8 + $0x90] sm:$0xff]
  %v1573 = vld [vmem:[%s8 + $0x98] sm:$0xff]
  %v1574 = vld [vmem:[%s8 + $0xa0] sm:$0xff]
  %v1575 = vld [vmem:[%s8 + $0xa8] sm:$0xff]
  %v1576 = vld [vmem:[%s8 + $0xb0] sm:$0xff]
  %v1577 = vld [vmem:[%s8 + $0xb8] sm:$0xff]
  %v1578 = vld [vmem:[%s8 + $0xc0] sm:$0xff]
  %v1579 = vld [vmem:[%s8 + $0xc8] sm:$0xff]
  %v1580 = vld [vmem:[%s8 + $0xd0] sm:$0xff]
  %v1581 = vld [vmem:[%s8 + $0xd8] sm:$0xff]
  %v1582 = vld [vmem:[%s8 + $0xe0] sm:$0xff]
  %v1583 = vld [vmem:[%s8 + $0xe8] sm:$0xff]
  %v1584 = vld [vmem:[%s8 + $0xf0] sm:$0xff]
  %v1585 = vld [vmem:[%s8 + $0xf8] sm:$0xff]
  %v1586 = vld [vmem:[%s8 + $0x100] sm:$0xff]
  %v1587 = vld [vmem:[%s8 + $0x108] sm:$0xff]
  %v1588 = vld [vmem:[%s8 + $0x110] sm:$0xff]
  %v1589 = vld [vmem:[%s8 + $0x118] sm:$0xff]
  %v1590 = vld [vmem:[%s8 + $0x120] sm:$0xff]
  %v1591 = vld [vmem:[%s8 + $0x128] sm:$0xff]
  %v1592 = vld [vmem:[%s8 + $0x130] sm:$0xff]
  %v1593 = vld [vmem:[%s8 + $0x138] sm:$0xff]
  %v1594 = vld [vmem:[%s8 + $0x140] sm:$0xff]
  %v1595 = vld [vmem:[%s8 + $0x148] sm:$0xff]
  %v1596 = vld [vmem:[%s8 + $0x150] sm:$0xff]
  %v1597 = vld [vmem:[%s8 + $0x158] sm:$0xff]
  %v1598 = vld [vmem:[%s8 + $0x160] sm:$0xff]
  %v1599 = vld [vmem:[%s8 + $0x168] sm:$0xff]
  %v1600 = vld [vmem:[%s8 + $0x170] sm:$0xff]
  %v1601 = vld [vmem:[%s8 + $0x178] sm:$0xff]
  %v1602 = vld [vmem:[%s8 + $0x180] sm:$0xff]
  %v1603 = vld [vmem:[%s8 + $0x188] sm:$0xff]
  %v1604 = vld [vmem:[%s8 + $0x190] sm:$0xff]
  %v1605 = vld [vmem:[%s8 + $0x198] sm:$0xff]
  %v1606 = vld [vmem:[%s8 + $0x1a0] sm:$0xff]
  %v1607 = vld [vmem:[%s8 + $0x1a8] sm:$0xff]
  %v1608 = vld [vmem:[%s8 + $0x1b0] sm:$0xff]
  %v1609 = vld [vmem:[%s8 + $0x1b8] sm:$0xff]
  %v1610 = vld [vmem:[%s8 + $0x1c0] sm:$0xff]
  %v1611 = vld [vmem:[%s8 + $0x1c8] sm:$0xff]
  %v1612 = vld [vmem:[%s8 + $0x1d0] sm:$0xff]
  %v1613 = vld [vmem:[%s8 + $0x1d8] sm:$0xff]
  %v1614 = vld [vmem:[%s8 + $0x1e0] sm:$0xff]
  %v1615 = vld [vmem:[%s8 + $0x1e8] sm:$0xff]
  %v1616 = vld [vmem:[%s8 + $0x1f0] sm:$0xff]
  %v1617 = vld [vmem:[%s8 + $0x1f8] sm:$0xff]
  %v1618 = vld [vmem:[%s8 + $0x200] sm:$0xff]
  %v1619 = vld [vmem:[%s8 + $0x208] sm:$0xff]
  %v1620 = vld [vmem:[%s8 + $0x210] sm:$0xff]
  %v1621 = vld [vmem:[%s8 + $0x218] sm:$0xff]
  %v1622 = vld [vmem:[%s8 + $0x220] sm:$0xff]
  %v1623 = vld [vmem:[%s8 + $0x228] sm:$0xff]
  %v1624 = vld [vmem:[%s8 + $0x230] sm:$0xff]
  %v1625 = vld [vmem:[%s8 + $0x238] sm:$0xff]
  %v1626 = vld [vmem:[%s8 + $0x240] sm:$0xff]
  %v1627 = vld [vmem:[%s8 + $0x248] sm:$0xff]
  %v1628 = vld [vmem:[%s8 + $0x250] sm:$0xff]
  %v1629 = vld [vmem:[%s8 + $0x258] sm:$0xff]
  %v1630 = vld [vmem:[%s8 + $0x260] sm:$0xff]
  %v1631 = vld [vmem:[%s8 + $0x268] sm:$0xff]
  %v1632 = vld [vmem:[%s8 + $0x270] sm:$0xff]
  %v1633 = vld [vmem:[%s8 + $0x278] sm:$0xff]
  %v1634 = vld [vmem:[%s8 + $0x280] sm:$0xff]
  %v1635 = vld [vmem:[%s8 + $0x288] sm:$0xff]
  %v1636 = vld [vmem:[%s8 + $0x290] sm:$0xff]
  %v1637 = vld [vmem:[%s8 + $0x298] sm:$0xff]
  %v1638 = vld [vmem:[%s8 + $0x2a0] sm:$0xff]
  %v1639 = vld [vmem:[%s8 + $0x2a8] sm:$0xff]
  %v1640 = vld [vmem:[%s8 + $0x2b0] sm:$0xff]
  %v1641 = vld [vmem:[%s8 + $0x2b8] sm:$0xff]
  %v1642 = vld [vmem:[%s8 + $0x2c0] sm:$0xff]
  %v1643 = vld [vmem:[%s8 + $0x2c8] sm:$0xff]
  %v1644 = vld [vmem:[%s8 + $0x2d0] sm:$0xff]
  %v1645 = vld [vmem:[%s8 + $0x2d8] sm:$0xff]
  %v1646 = vld [vmem:[%s8 + $0x2e0] sm:$0xff]
  %v1647 = vld [vmem:[%s8 + $0x2e8] sm:$0xff]
  %v1648 = vld [vmem:[%s8 + $0x2f0] sm:$0xff]
  %v1649 = vld [vmem:[%s8 + $0x2f8] sm:$0xff]
  %v1650 = vld [vmem:[%s8 + $0x300] sm:$0xff]
  %v1651 = vld [vmem:[%s8 + $0x308] sm:$0xff]
  %v1652 = vld [vmem:[%s8 + $0x310] sm:$0xff]
  %v1653 = vld [vmem:[%s8 + $0x318] sm:$0xff]
  %v1654 = vld [vmem:[%s8 + $0x320] sm:$0xff]
  %v1655 = vld [vmem:[%s8 + $0x328] sm:$0xff]
  %v1656 = vld [vmem:[%s8 + $0x330] sm:$0xff]
  %v1657 = vld [vmem:[%s8 + $0x338] sm:$0xff]
  %v1658 = vld [vmem:[%s8 + $0x340] sm:$0xff]
  %v1659 = vld [vmem:[%s8 + $0x348] sm:$0xff]
  %v1660 = vld [vmem:[%s8 + $0x350] sm:$0xff]
  %v1661 = vld [vmem:[%s8 + $0x358] sm:$0xff]
  %v1662 = vld [vmem:[%s8 + $0x360] sm:$0xff]
  %v1663 = vld [vmem:[%s8 + $0x368] sm:$0xff]
  %v1664 = vld [vmem:[%s8 + $0x370] sm:$0xff]
  %v1665 = vld [vmem:[%s8 + $0x378] sm:$0xff]
  %v1666 = vld [vmem:[%s8 + $0x380] sm:$0xff]
  %v1667 = vld [vmem:[%s8 + $0x388] sm:$0xff]
  %v1668 = vld [vmem:[%s8 + $0x390] sm:$0xff]
  %v1669 = vld [vmem:[%s8 + $0x398] sm:$0xff]
  %v1670 = vld [vmem:[%s8 + $0x3a0] sm:$0xff]
  %v1671 = vld [vmem:[%s8 + $0x3a8] sm:$0xff]
  %v1672 = vld [vmem:[%s8 + $0x3b0] sm:$0xff]
  %v1673 = vld [vmem:[%s8 + $0x3b8] sm:$0xff]
  %v1674 = vld [vmem:[%s8 + $0x3c0] sm:$0xff]
  %v1675 = vld [vmem:[%s8 + $0x3c8] sm:$0xff]
  %v1676 = vld [vmem:[%s8 + $0x3d0] sm:$0xff]
  %v1677 = vld [vmem:[%s8 + $0x3d8] sm:$0xff]
  %v1678 = vld [vmem:[%s8 + $0x3e0] sm:$0xff]
  %v1679 = vld [vmem:[%s8 + $0x3e8] sm:$0xff]
  %v1680 = vld [vmem:[%s8 + $0x3f0] sm:$0xff]
  %v1681 = vld [vmem:[%s8 + $0x3f8] sm:$0xff]
  %v1682 = vld [vmem:[%s8 + $0x400] sm:$0xff]
  %v1683 = vld [vmem:[%s8 + $0x408] sm:$0xff]
  %v1684 = vld [vmem:[%s8 + $0x410] sm:$0xff]
  %v1685 = vld [vmem:[%s8 + $0x418] sm:$0xff]
  %v1686 = vld [vmem:[%s8 + $0x420] sm:$0xff]
  %v1687 = vld [vmem:[%s8 + $0x428] sm:$0xff]
  %v1688 = vld [vmem:[%s8 + $0x430] sm:$0xff]
  %v1689 = vld [vmem:[%s8 + $0x438] sm:$0xff]
  %v1690 = vld [vmem:[%s8 + $0x440] sm:$0xff]
  %v1691 = vld [vmem:[%s8 + $0x448] sm:$0xff]
  %v1692 = vld [vmem:[%s8 + $0x450] sm:$0xff]
  %v1693 = vld [vmem:[%s8 + $0x458] sm:$0xff]
  %v1694 = vld [vmem:[%s8 + $0x460] sm:$0xff]
  %v1695 = vld [vmem:[%s8 + $0x468] sm:$0xff]
  %v1696 = vld [vmem:[%s8 + $0x470] sm:$0xff]
  %v1697 = vld [vmem:[%s8 + $0x478] sm:$0xff]
  %v1698 = vld [vmem:[%s8 + $0x480] sm:$0xff]
  %v1699 = vld [vmem:[%s8 + $0x488] sm:$0xff]
  %v1700 = vld [vmem:[%s8 + $0x490] sm:$0xff]
  %v1701 = vld [vmem:[%s8 + $0x498] sm:$0xff]
  %v1702 = vld [vmem:[%s8 + $0x4a0] sm:$0xff]
  %v1703 = vld [vmem:[%s8 + $0x4a8] sm:$0xff]
  %v1704 = vld [vmem:[%s8 + $0x4b0] sm:$0xff]
  %v1705 = vld [vmem:[%s8 + $0x4b8] sm:$0xff]
  %v1706 = vld [vmem:[%s8 + $0x4c0] sm:$0xff]
  %v1707 = vld [vmem:[%s8 + $0x4c8] sm:$0xff]
  %v1708 = vld [vmem:[%s8 + $0x4d0] sm:$0xff]
  %v1709 = vld [vmem:[%s8 + $0x4d8] sm:$0xff]
  %v1710 = vld [vmem:[%s8 + $0x4e0] sm:$0xff]
  %v1711 = vld [vmem:[%s8 + $0x4e8] sm:$0xff]
  %v1712 = vld [vmem:[%s8 + $0x4f0] sm:$0xff]
  %v1713 = vld [vmem:[%s8 + $0x4f8] sm:$0xff]
  %v1714 = vld [vmem:[%s8 + $0x500] sm:$0xff]
  %v1715 = vld [vmem:[%s8 + $0x508] sm:$0xff]
  %v1716 = vld [vmem:[%s8 + $0x510] sm:$0xff]
  %v1717 = vld [vmem:[%s8 + $0x518] sm:$0xff]
  %v1718 = vld [vmem:[%s8 + $0x520] sm:$0xff]
  %v1719 = vld [vmem:[%s8 + $0x528] sm:$0xff]
  %v1720 = vld [vmem:[%s8 + $0x530] sm:$0xff]
  %v1721 = vld [vmem:[%s8 + $0x538] sm:$0xff]
  %v1722 = vld [vmem:[%s8 + $0x540] sm:$0xff]
  %v1723 = vld [vmem:[%s8 + $0x548] sm:$0xff]
  %v1724 = vld [vmem:[%s8 + $0x550] sm:$0xff]
  %v1725 = vld [vmem:[%s8 + $0x558] sm:$0xff]
  %v1726 = vld [vmem:[%s8 + $0x560] sm:$0xff]
  %v1727 = vld [vmem:[%s8 + $0x568] sm:$0xff]
  %v1728 = vld [vmem:[%s8 + $0x570] sm:$0xff]
  %v1729 = vld [vmem:[%s8 + $0x578] sm:$0xff]
  %v1730 = vld [vmem:[%s8 + $0x580] sm:$0xff]
  %v1731 = vld [vmem:[%s8 + $0x588] sm:$0xff]
  %v1732 = vld [vmem:[%s8 + $0x590] sm:$0xff]
  %v1733 = vld [vmem:[%s8 + $0x598] sm:$0xff]
  %v1734 = vld [vmem:[%s8 + $0x5a0] sm:$0xff]
  %v1735 = vld [vmem:[%s8 + $0x5a8] sm:$0xff]
  %v1736 = vld [vmem:[%s8 + $0x5b0] sm:$0xff]
  %v1737 = vld [vmem:[%s8 + $0x5b8] sm:$0xff]
  %v1738 = vld [vmem:[%s8 + $0x5c0] sm:$0xff]
  %v1739 = vld [vmem:[%s8 + $0x5c8] sm:$0xff]
  %v1740 = vld [vmem:[%s8 + $0x5d0] sm:$0xff]
  %v1741 = vld [vmem:[%s8 + $0x5d8] sm:$0xff]
  %v1742 = vld [vmem:[%s8 + $0x5e0] sm:$0xff]
  %v1743 = vld [vmem:[%s8 + $0x5e8] sm:$0xff]
  %v1744 = vld [vmem:[%s8 + $0x5f0] sm:$0xff]
  %v1745 = vld [vmem:[%s8 + $0x5f8] sm:$0xff]
  %v1746 = vld [vmem:[%s8 + $0x600] sm:$0xff]
  %v1747 = vld [vmem:[%s8 + $0x608] sm:$0xff]
  %v1748 = vld [vmem:[%s8 + $0x610] sm:$0xff]
  %v1749 = vld [vmem:[%s8 + $0x618] sm:$0xff]
  %v1750 = vld [vmem:[%s8 + $0x620] sm:$0xff]
  %v1751 = vld [vmem:[%s8 + $0x628] sm:$0xff]
  %v1752 = vld [vmem:[%s8 + $0x630] sm:$0xff]
  %v1753 = vld [vmem:[%s8 + $0x638] sm:$0xff]
  %v1754 = vld [vmem:[%s8 + $0x640] sm:$0xff]
  %v1755 = vld [vmem:[%s8 + $0x648] sm:$0xff]
  %v1756 = vld [vmem:[%s8 + $0x650] sm:$0xff]
  %v1757 = vld [vmem:[%s8 + $0x658] sm:$0xff]
  %v1758 = vld [vmem:[%s8 + $0x660] sm:$0xff]
  %v1759 = vld [vmem:[%s8 + $0x668] sm:$0xff]
  %v1760 = vld [vmem:[%s8 + $0x670] sm:$0xff]
  %v1761 = vld [vmem:[%s8 + $0x678] sm:$0xff]
  %v1762 = vld [vmem:[%s8 + $0x680] sm:$0xff]
  %v1763 = vld [vmem:[%s8 + $0x688] sm:$0xff]
  %v1764 = vld [vmem:[%s8 + $0x690] sm:$0xff]
  %v1765 = vld [vmem:[%s8 + $0x698] sm:$0xff]
  %v1766 = vld [vmem:[%s8 + $0x6a0] sm:$0xff]
  %v1767 = vld [vmem:[%s8 + $0x6a8] sm:$0xff]
  %v1768 = vld [vmem:[%s8 + $0x6b0] sm:$0xff]
  %v1769 = vld [vmem:[%s8 + $0x6b8] sm:$0xff]
  %v1770 = vld [vmem:[%s8 + $0x6c0] sm:$0xff]
  %v1771 = vld [vmem:[%s8 + $0x6c8] sm:$0xff]
  %v1772 = vld [vmem:[%s8 + $0x6d0] sm:$0xff]
  %v1773 = vld [vmem:[%s8 + $0x6d8] sm:$0xff]
  %v1774 = vld [vmem:[%s8 + $0x6e0] sm:$0xff]
  %v1775 = vld [vmem:[%s8 + $0x6e8] sm:$0xff]
  %v1776 = vld [vmem:[%s8 + $0x6f0] sm:$0xff]
  %v1777 = vld [vmem:[%s8 + $0x6f8] sm:$0xff]
  %v1778 = vld [vmem:[%s8 + $0x700] sm:$0xff]
  %v1779 = vld [vmem:[%s8 + $0x708] sm:$0xff]
  %v1780 = vld [vmem:[%s8 + $0x710] sm:$0xff]
  %v1781 = vld [vmem:[%s8 + $0x718] sm:$0xff]
  %v1782 = vld [vmem:[%s8 + $0x720] sm:$0xff]
  %v1783 = vld [vmem:[%s8 + $0x728] sm:$0xff]
  %v1784 = vld [vmem:[%s8 + $0x730] sm:$0xff]
  %v1785 = vld [vmem:[%s8 + $0x738] sm:$0xff]
  %v1786 = vld [vmem:[%s8 + $0x740] sm:$0xff]
  %v1787 = vld [vmem:[%s8 + $0x748] sm:$0xff]
  %v1788 = vld [vmem:[%s8 + $0x750] sm:$0xff]
  %v1789 = vld [vmem:[%s8 + $0x758] sm:$0xff]
  %v1790 = vld [vmem:[%s8 + $0x760] sm:$0xff]
  %v1791 = vld [vmem:[%s8 + $0x768] sm:$0xff]
  %v1792 = vld [vmem:[%s8 + $0x770] sm:$0xff]
  %v1793 = vld [vmem:[%s8 + $0x778] sm:$0xff]
  %v1794 = vld [vmem:[%s8 + $0x780] sm:$0xff]
  %v1795 = vld [vmem:[%s8 + $0x788] sm:$0xff]
  %v1796 = vld [vmem:[%s8 + $0x790] sm:$0xff]
  %v1797 = vld [vmem:[%s8 + $0x798] sm:$0xff]
  %v1798 = vld [vmem:[%s8 + $0x7a0] sm:$0xff]
  %v1799 = vld [vmem:[%s8 + $0x7a8] sm:$0xff]
  %v1800 = vld [vmem:[%s8 + $0x7b0] sm:$0xff]
  %v1801 = vld [vmem:[%s8 + $0x7b8] sm:$0xff]
  %v1802 = vld [vmem:[%s8 + $0x7c0] sm:$0xff]
  %v1803 = vld [vmem:[%s8 + $0x7c8] sm:$0xff]
  %v1804 = vld [vmem:[%s8 + $0x7d0] sm:$0xff]
  %v1805 = vld [vmem:[%s8 + $0x7d8] sm:$0xff]
  %v1806 = vld [vmem:[%s8 + $0x7e0] sm:$0xff]
  %v1807 = vld [vmem:[%s8 + $0x7e8] sm:$0xff]
  %v1808 = vld [vmem:[%s8 + $0x7f0] sm:$0xff]
  %v1809 = vld [vmem:[%s8 + $0x7f8] sm:$0xff]
  %v1810 = vld [vmem:[%s8 + $0x800] sm:$0xff]
  %v1811 = vld [vmem:[%s8 + $0x808] sm:$0xff]
  %v1812 = vld [vmem:[%s8 + $0x810] sm:$0xff]
  %v1813 = vld [vmem:[%s8 + $0x818] sm:$0xff]
  %v1814 = vld [vmem:[%s8 + $0x820] sm:$0xff]
  %v1815 = vld [vmem:[%s8 + $0x828] sm:$0xff]
  %v1816 = vld [vmem:[%s8 + $0x830] sm:$0xff]
  %v1817 = vld [vmem:[%s8 + $0x838] sm:$0xff]
  %v1818 = vld [vmem:[%s8 + $0x840] sm:$0xff]
  %v1819 = vld [vmem:[%s8 + $0x848] sm:$0xff]
  %v1820 = vld [vmem:[%s8 + $0x850] sm:$0xff]
  %v1821 = vld [vmem:[%s8 + $0x858] sm:$0xff]
  %v1822 = vld [vmem:[%s8 + $0x860] sm:$0xff]
  %v1823 = vld [vmem:[%s8 + $0x868] sm:$0xff]
  %v1824 = vld [vmem:[%s8 + $0x870] sm:$0xff]
  %v1825 = vld [vmem:[%s8 + $0x878] sm:$0xff]
  %v1826 = vld [vmem:[%s8 + $0x880] sm:$0xff]
  %v1827 = vld [vmem:[%s8 + $0x888] sm:$0xff]
  %v1828 = vld [vmem:[%s8 + $0x890] sm:$0xff]
  %v1829 = vld [vmem:[%s8 + $0x898] sm:$0xff]
  %v1830 = vld [vmem:[%s8 + $0x8a0] sm:$0xff]
  %v1831 = vld [vmem:[%s8 + $0x8a8] sm:$0xff]
  %v1832 = vld [vmem:[%s8 + $0x8b0] sm:$0xff]
  %v1833 = vld [vmem:[%s8 + $0x8b8] sm:$0xff]
  %v1834 = vld [vmem:[%s8 + $0x8c0] sm:$0xff]
  %v1835 = vld [vmem:[%s8 + $0x8c8] sm:$0xff]
  %v1836 = vld [vmem:[%s8 + $0x8d0] sm:$0xff]
  %v1837 = vld [vmem:[%s8 + $0x8d8] sm:$0xff]
  %v1838 = vld [vmem:[%s8 + $0x8e0] sm:$0xff]
  %v1839 = vld [vmem:[%s8 + $0x8e8] sm:$0xff]
  %v1840 = vld [vmem:[%s8 + $0x8f0] sm:$0xff]
  %v1841 = vld [vmem:[%s8 + $0x8f8] sm:$0xff]
  %v1842 = vld [vmem:[%s8 + $0x900] sm:$0xff]
  %v1843 = vld [vmem:[%s8 + $0x908] sm:$0xff]
  %v1844 = vld [vmem:[%s8 + $0x910] sm:$0xff]
  %v1845 = vld [vmem:[%s8 + $0x918] sm:$0xff]
  %v1846 = vld [vmem:[%s8 + $0x920] sm:$0xff]
  %v1847 = vld [vmem:[%s8 + $0x928] sm:$0xff]
  %v1848 = vld [vmem:[%s8 + $0x930] sm:$0xff]
  %v1849 = vld [vmem:[%s8 + $0x938] sm:$0xff]
  %v1850 = vld [vmem:[%s8 + $0x940] sm:$0xff]
  %v1851 = vld [vmem:[%s8 + $0x948] sm:$0xff]
  %v1852 = vld [vmem:[%s8 + $0x950] sm:$0xff]
  %v1853 = vld [vmem:[%s8 + $0x958] sm:$0xff]
  %v1854 = vld [vmem:[%s8 + $0x960] sm:$0xff]
  %v1855 = vld [vmem:[%s8 + $0x968] sm:$0xff]
  %v1856 = vld [vmem:[%s8 + $0x970] sm:$0xff]
  %v1857 = vld [vmem:[%s8 + $0x978] sm:$0xff]
  %v1858 = vld [vmem:[%s8 + $0x980] sm:$0xff]
  %v1859 = vld [vmem:[%s8 + $0x988] sm:$0xff]
  %v1860 = vld [vmem:[%s8 + $0x990] sm:$0xff]
  %v1861 = vld [vmem:[%s8 + $0x998] sm:$0xff]
  %v1862 = vld [vmem:[%s8 + $0x9a0] sm:$0xff]
  %v1863 = vld [vmem:[%s8 + $0x9a8] sm:$0xff]
  %v1864 = vld [vmem:[%s8 + $0x9b0] sm:$0xff]
  %v1865 = vld [vmem:[%s8 + $0x9b8] sm:$0xff]
  %v1866 = vld [vmem:[%s8 + $0x9c0] sm:$0xff]
  %v1867 = vld [vmem:[%s8 + $0x9c8] sm:$0xff]
  %v1868 = vld [vmem:[%s8 + $0x9d0] sm:$0xff]
  %v1869 = vld [vmem:[%s8 + $0x9d8] sm:$0xff]
  %v1870 = vld [vmem:[%s8 + $0x9e0] sm:$0xff]
  %v1871 = vld [vmem:[%s8 + $0x9e8] sm:$0xff]
  %v1872 = vld [vmem:[%s8 + $0x9f0] sm:$0xff]
  %v1873 = vld [vmem:[%s8 + $0x9f8] sm:$0xff]
  %v1874 = vld [vmem:[%s8 + $0xa00] sm:$0xff]
  %v1875 = vld [vmem:[%s8 + $0xa08] sm:$0xff]
  %v1876 = vld [vmem:[%s8 + $0xa10] sm:$0xff]
  %v1877 = vld [vmem:[%s8 + $0xa18] sm:$0xff]
  %v1878 = vld [vmem:[%s8 + $0xa20] sm:$0xff]
  %v1879 = vld [vmem:[%s8 + $0xa28] sm:$0xff]
  %v1880 = vld [vmem:[%s8 + $0xa30] sm:$0xff]
  %v1881 = vld [vmem:[%s8 + $0xa38] sm:$0xff]
  %v1882 = vld [vmem:[%s8 + $0xa40] sm:$0xff]
  %v1883 = vld [vmem:[%s8 + $0xa48] sm:$0xff]
  %v1884 = vld [vmem:[%s8 + $0xa50] sm:$0xff]
  %v1885 = vld [vmem:[%s8 + $0xa58] sm:$0xff]
  %v1886 = vld [vmem:[%s8 + $0xa60] sm:$0xff]
  %v1887 = vld [vmem:[%s8 + $0xa68] sm:$0xff]
  %v1888 = vld [vmem:[%s8 + $0xa70] sm:$0xff]
  %v1889 = vld [vmem:[%s8 + $0xa78] sm:$0xff]
  %v1890 = vld [vmem:[%s8 + $0xa80] sm:$0xff]
  %v1891 = vld [vmem:[%s8 + $0xa88] sm:$0xff]
  %v1892 = vld [vmem:[%s8 + $0xa90] sm:$0xff]
  %v1893 = vld [vmem:[%s8 + $0xa98] sm:$0xff]
  %v1894 = vld [vmem:[%s8 + $0xaa0] sm:$0xff]
  %v1895 = vld [vmem:[%s8 + $0xaa8] sm:$0xff]
  %v1896 = vld [vmem:[%s8 + $0xab0] sm:$0xff]
  %v1897 = vld [vmem:[%s8 + $0xab8] sm:$0xff]
  %v1898 = vld [vmem:[%s8 + $0xac0] sm:$0xff]
  %v1899 = vld [vmem:[%s8 + $0xac8] sm:$0xff]
  %v1900 = vld [vmem:[%s8 + $0xad0] sm:$0xff]
  %v1901 = vld [vmem:[%s8 + $0xad8] sm:$0xff]
  %v1902 = vld [vmem:[%s8 + $0xae0] sm:$0xff]
  %v1903 = vld [vmem:[%s8 + $0xae8] sm:$0xff]
  %v1904 = vld [vmem:[%s8 + $0xaf0] sm:$0xff]
  %v1905 = vld [vmem:[%s8 + $0xaf8] sm:$0xff]
  %v1906 = vld [vmem:[%s8 + $0xb00] sm:$0xff]
  %v1907 = vld [vmem:[%s8 + $0xb08] sm:$0xff]
  %v1908 = vld [vmem:[%s8 + $0xb10] sm:$0xff]
  %v1909 = vld [vmem:[%s8 + $0xb18] sm:$0xff]
  %v1910 = vld [vmem:[%s8 + $0xb20] sm:$0xff]
  %v1911 = vld [vmem:[%s8 + $0xb28] sm:$0xff]
  %v1912 = vld [vmem:[%s8 + $0xb30] sm:$0xff]
  %v1913 = vld [vmem:[%s8 + $0xb38] sm:$0xff]
  %v1914 = vld [vmem:[%s8 + $0xb40] sm:$0xff]
  %v1915 = vld [vmem:[%s8 + $0xb48] sm:$0xff]
  %v1916 = vld [vmem:[%s8 + $0xb50] sm:$0xff]
  %v1917 = vld [vmem:[%s8 + $0xb58] sm:$0xff]
  %v1918 = vld [vmem:[%s8 + $0xb60] sm:$0xff]
  %v1919 = vld [vmem:[%s8 + $0xb68] sm:$0xff]
  %v1920 = vld [vmem:[%s8 + $0xb70] sm:$0xff]
  %v1921 = vld [vmem:[%s8 + $0xb78] sm:$0xff]
  %v1922 = vld [vmem:[%s8 + $0xb80] sm:$0xff]
  %v1923 = vld [vmem:[%s8 + $0xb88] sm:$0xff]
  %v1924 = vld [vmem:[%s8 + $0xb90] sm:$0xff]
  %v1925 = vld [vmem:[%s8 + $0xb98] sm:$0xff]
  %v1926 = vld [vmem:[%s8 + $0xba0] sm:$0xff]
  %v1927 = vld [vmem:[%s8 + $0xba8] sm:$0xff]
  %v1928 = vld [vmem:[%s8 + $0xbb0] sm:$0xff]
  %v1929 = vld [vmem:[%s8 + $0xbb8] sm:$0xff]
  %v1930 = vld [vmem:[%s8 + $0xbc0] sm:$0xff]
  %v1931 = vld [vmem:[%s8 + $0xbc8] sm:$0xff]
  %v1932 = vld [vmem:[%s8 + $0xbd0] sm:$0xff]
  %v1933 = vld [vmem:[%s8 + $0xbd8] sm:$0xff]
  %v1934 = vld [vmem:[%s8 + $0xbe0] sm:$0xff]
  %v1935 = vld [vmem:[%s8 + $0xbe8] sm:$0xff]
  %v1936 = vld [vmem:[%s8 + $0xbf0] sm:$0xff]
  %v1937 = vld [vmem:[%s8 + $0xbf8] sm:$0xff]
  %v1938 = vld [vmem:[%s8 + $0xc00] sm:$0xff]
  %v1939 = vld [vmem:[%s8 + $0xc08] sm:$0xff]
  %v1940 = vld [vmem:[%s8 + $0xc10] sm:$0xff]
  %v1941 = vld [vmem:[%s8 + $0xc18] sm:$0xff]
  %v1942 = vld [vmem:[%s8 + $0xc20] sm:$0xff]
  %v1943 = vld [vmem:[%s8 + $0xc28] sm:$0xff]
  %v1944 = vld [vmem:[%s8 + $0xc30] sm:$0xff]
  %v1945 = vld [vmem:[%s8 + $0xc38] sm:$0xff]
  %v1946 = vld [vmem:[%s8 + $0xc40] sm:$0xff]
  %v1947 = vld [vmem:[%s8 + $0xc48] sm:$0xff]
  %v1948 = vld [vmem:[%s8 + $0xc50] sm:$0xff]
  %v1949 = vld [vmem:[%s8 + $0xc58] sm:$0xff]
  %v1950 = vld [vmem:[%s8 + $0xc60] sm:$0xff]
  %v1951 = vld [vmem:[%s8 + $0xc68] sm:$0xff]
  %v1952 = vld [vmem:[%s8 + $0xc70] sm:$0xff]
  %v1953 = vld [vmem:[%s8 + $0xc78] sm:$0xff]
  %v1954 = vld [vmem:[%s8 + $0xc80] sm:$0xff]
  %v1955 = vld [vmem:[%s8 + $0xc88] sm:$0xff]
  %v1956 = vld [vmem:[%s8 + $0xc90] sm:$0xff]
  %v1957 = vld [vmem:[%s8 + $0xc98] sm:$0xff]
  %v1958 = vld [vmem:[%s8 + $0xca0] sm:$0xff]
  %v1959 = vld [vmem:[%s8 + $0xca8] sm:$0xff]
  %v1960 = vld [vmem:[%s8 + $0xcb0] sm:$0xff]
  %v1961 = vld [vmem:[%s8 + $0xcb8] sm:$0xff]
  %v1962 = vld [vmem:[%s8 + $0xcc0] sm:$0xff]
  %v1963 = vld [vmem:[%s8 + $0xcc8] sm:$0xff]
  %v1964 = vld [vmem:[%s8 + $0xcd0] sm:$0xff]
  %v1965 = vld [vmem:[%s8 + $0xcd8] sm:$0xff]
  %v1966 = vld [vmem:[%s8 + $0xce0] sm:$0xff]
  %v1967 = vld [vmem:[%s8 + $0xce8] sm:$0xff]
  %v1968 = vld [vmem:[%s8 + $0xcf0] sm:$0xff]
  %v1969 = vld [vmem:[%s8 + $0xcf8] sm:$0xff]
  %v1970 = vld [vmem:[%s8 + $0xd00] sm:$0xff]
  %v1971 = vld [vmem:[%s8 + $0xd08] sm:$0xff]
  %v1972 = vld [vmem:[%s8 + $0xd10] sm:$0xff]
  %v1973 = vld [vmem:[%s8 + $0xd18] sm:$0xff]
  %v1974 = vld [vmem:[%s8 + $0xd20] sm:$0xff]
  %v1975 = vld [vmem:[%s8 + $0xd28] sm:$0xff]
  %v1976 = vld [vmem:[%s8 + $0xd30] sm:$0xff]
  %v1977 = vld [vmem:[%s8 + $0xd38] sm:$0xff]
  %v1978 = vld [vmem:[%s8 + $0xd40] sm:$0xff]
  %v1979 = vld [vmem:[%s8 + $0xd48] sm:$0xff]
  %v1980 = vld [vmem:[%s8 + $0xd50] sm:$0xff]
  %v1981 = vld [vmem:[%s8 + $0xd58] sm:$0xff]
  %v1982 = vld [vmem:[%s8 + $0xd60] sm:$0xff]
  %v1983 = vld [vmem:[%s8 + $0xd68] sm:$0xff]
  %v1984 = vld [vmem:[%s8 + $0xd70] sm:$0xff]
  %v1985 = vld [vmem:[%s8 + $0xd78] sm:$0xff]
  %v1986 = vld [vmem:[%s8 + $0xd80] sm:$0xff]
  %v1987 = vld [vmem:[%s8 + $0xd88] sm:$0xff]
  %v1988 = vld [vmem:[%s8 + $0xd90] sm:$0xff]
  %v1989 = vld [vmem:[%s8 + $0xd98] sm:$0xff]
  %v1990 = vld [vmem:[%s8 + $0xda0] sm:$0xff]
  %v1991 = vld [vmem:[%s8 + $0xda8] sm:$0xff]
  %v1992 = vld [vmem:[%s8 + $0xdb0] sm:$0xff]
  %v1993 = vld [vmem:[%s8 + $0xdb8] sm:$0xff]
  %v1994 = vld [vmem:[%s8 + $0xdc0] sm:$0xff]
  %v1995 = vld [vmem:[%s8 + $0xdc8] sm:$0xff]
  %v1996 = vld [vmem:[%s8 + $0xdd0] sm:$0xff]
  %v1997 = vld [vmem:[%s8 + $0xdd8] sm:$0xff]
  %v1998 = vld [vmem:[%s8 + $0xde0] sm:$0xff]
  %v1999 = vld [vmem:[%s8 + $0xde8] sm:$0xff]
  %v2000 = vld [vmem:[%s8 + $0xdf0] sm:$0xff]
  %v2001 = vld [vmem:[%s8 + $0xdf8] sm:$0xff]
  %v2002 = vld [vmem:[%s9] sm:$0x7f]
  %v2004 = vlaneseq
  %v2005 = vshrl.u32 %v2004, 7
  %v2006 = vsub.s32 0, %v2005
  %v2007 = vrot.slane %v2002, %v2006
  %v2008 = vlaneseq
  %v2009 = vshrl.u32 %v2008, 7
  %v2010 = vsub.s32 1, %v2009
  %v2011 = vrot.slane %v2002, %v2010
  %v2012 = vlaneseq
  %v2013 = vshrl.u32 %v2012, 7
  %v2014 = vsub.s32 2, %v2013
  %v2015 = vrot.slane %v2002, %v2014
  %v2016 = vlaneseq
  %v2017 = vshrl.u32 %v2016, 7
  %v2018 = vsub.s32 3, %v2017
  %v2019 = vrot.slane %v2002, %v2018
  %v2020 = vlaneseq
  %v2021 = vshrl.u32 %v2020, 7
  %v2022 = vsub.s32 4, %v2021
  %v2023 = vrot.slane %v2002, %v2022
  %v2024 = vlaneseq
  %v2025 = vshrl.u32 %v2024, 7
  %v2026 = vsub.s32 5, %v2025
  %v2027 = vrot.slane %v2002, %v2026
  %v2028 = vlaneseq
  %v2029 = vshrl.u32 %v2028, 7
  %v2030 = vsub.s32 6, %v2029
  %v2031 = vrot.slane %v2002, %v2030
  %2039 = vmatprep.subr.mxu0 %v1555
  %2040 = vmatpush1.msra.mxu0 %v1554
  %2041 = vmatprep.subr.mxu0 %v1562
  %2042 = vmatpush1.msra.mxu0 %v1561
  %2043 = vmatprep.subr.mxu0 %v1569
  %2044 = vmatpush1.msra.mxu0 %v1568
  %2045 = vmatprep.subr.mxu0 %v1576
  %2046 = vmatpush1.msra.mxu0 %v1575
  %2047 = vmatprep.subr.mxu0 %v1583
  %2048 = vmatpush1.msra.mxu0 %v1582
  %2049 = vmatprep.subr.mxu0 %v1590
  %2050 = vmatpush1.msra.mxu0 %v1589
  %2051 = vmatprep.subr.mxu0 %v1597
  %2052 = vmatpush1.msra.mxu0 %v1596
  %2053 = vmatprep.subr.mxu0 %v1604
  %2054 = vmatpush1.msra.mxu0 %v1603
  %2055 = vmatprep.subr.mxu0 %v1611
  %2056 = vmatpush1.msra.mxu0 %v1610
  %2057 = vmatprep.subr.mxu0 %v1618
  %2058 = vmatpush1.msra.mxu0 %v1617
  %2059 = vmatprep.subr.mxu0 %v1625
  %2060 = vmatpush1.msra.mxu0 %v1624
  %2061 = vmatprep.subr.mxu0 %v1632
  %2062 = vmatpush1.msra.mxu0 %v1631
  %2063 = vmatprep.subr.mxu0 %v1639
  %2064 = vmatpush1.msra.mxu0 %v1638
  %2065 = vmatprep.subr.mxu0 %v1646
  %2066 = vmatpush1.msra.mxu0 %v1645
  %2067 = vmatprep.subr.mxu0 %v1653
  %2068 = vmatpush1.msra.mxu0 %v1652
  %2069 = vmatprep.subr.mxu0 %v1660
  %2070 = vmatpush1.msra.mxu0 %v1659
  %2071 = vmatprep.subr.mxu0 %v1667
  %2072 = vmatpush1.msra.mxu0 %v1666
  %2073 = vmatprep.subr.mxu0 %v1674
  %2074 = vmatpush1.msra.mxu0 %v1673
  %2075 = vmatprep.subr.mxu0 %v1681
  %2076 = vmatpush1.msra.mxu0 %v1680
  %2077 = vmatprep.subr.mxu0 %v1688
  %2078 = vmatpush1.msra.mxu0 %v1687
  %2079 = vmatprep.subr.mxu0 %v1695
  %2080 = vmatpush1.msra.mxu0 %v1694
  %2081 = vmatprep.subr.mxu0 %v1702
  %2082 = vmatpush1.msra.mxu0 %v1701
  %2083 = vmatprep.subr.mxu0 %v1709
  %2084 = vmatpush1.msra.mxu0 %v1708
  %2085 = vmatprep.subr.mxu0 %v1716
  %2086 = vmatpush1.msra.mxu0 %v1715
  %2087 = vmatprep.subr.mxu0 %v1723
  %2088 = vmatpush1.msra.mxu0 %v1722
  %2089 = vmatprep.subr.mxu0 %v1730
  %2090 = vmatpush1.msra.mxu0 %v1729
  %2091 = vmatprep.subr.mxu0 %v1737
  %2092 = vmatpush1.msra.mxu0 %v1736
  %2093 = vmatprep.subr.mxu0 %v1744
  %2094 = vmatpush1.msra.mxu0 %v1743
  %2095 = vmatprep.subr.mxu0 %v1751
  %2096 = vmatpush1.msra.mxu0 %v1750
  %2097 = vmatprep.subr.mxu0 %v1758
  %2098 = vmatpush1.msra.mxu0 %v1757
  %2099 = vmatprep.subr.mxu0 %v1765
  %2100 = vmatpush1.msra.mxu0 %v1764
  %2101 = vmatprep.subr.mxu0 %v1772
  %2102 = vmatpush1.msra.mxu0 %v1771
  %2103 = vmatprep.mubr.f32.mxu0 %v1551
  %2104 = vmatmul.mubr.f32.gmra.mrb[0].mxu0 %v1550
  %v2105 = vpop.f32.mrb[0].mxu0
  %v2106 = vadd.f32 %v2007, %v2105
  %v2107 = vpop.f32.mrb[0].mxu0
  %v2108 = vadd.f32 %v2011, %v2107
  %2109 = vdwg.mxu0
  %2110 = vmatprep.subr.mxu0 %v1779
  %2111 = vmatpush1.msra.mxu0 %v1778
  %2112 = vmatprep.subr.mxu0 %v1786
  %2113 = vmatpush1.msra.mxu0 %v1785
  %2114 = vmatprep.subr.mxu0 %v1793
  %2115 = vmatpush1.msra.mxu0 %v1792
  %2116 = vmatprep.subr.mxu0 %v1800
  %2117 = vmatpush1.msra.mxu0 %v1799
  %2118 = vmatprep.subr.mxu0 %v1807
  %2119 = vmatpush1.msra.mxu0 %v1806
  %2120 = vmatprep.subr.mxu0 %v1814
  %2121 = vmatpush1.msra.mxu0 %v1813
  %2122 = vmatprep.subr.mxu0 %v1821
  %2123 = vmatpush1.msra.mxu0 %v1820
  %2124 = vmatprep.subr.mxu0 %v1828
  %2125 = vmatpush1.msra.mxu0 %v1827
  %2126 = vmatprep.subr.mxu0 %v1835
  %2127 = vmatpush1.msra.mxu0 %v1834
  %2128 = vmatprep.subr.mxu0 %v1842
  %2129 = vmatpush1.msra.mxu0 %v1841
  %2130 = vmatprep.subr.mxu0 %v1849
  %2131 = vmatpush1.msra.mxu0 %v1848
  %2132 = vmatprep.subr.mxu0 %v1856
  %2133 = vmatpush1.msra.mxu0 %v1855
  %2134 = vmatprep.subr.mxu0 %v1863
  %2135 = vmatpush1.msra.mxu0 %v1862
  %2136 = vmatprep.subr.mxu0 %v1870
  %2137 = vmatpush1.msra.mxu0 %v1869
  %2138 = vmatprep.subr.mxu0 %v1877
  %2139 = vmatpush1.msra.mxu0 %v1876
  %2140 = vmatprep.subr.mxu0 %v1884
  %2141 = vmatpush1.msra.mxu0 %v1883
  %2142 = vmatprep.subr.mxu0 %v1891
  %2143 = vmatpush1.msra.mxu0 %v1890
  %2144 = vmatprep.subr.mxu0 %v1898
  %2145 = vmatpush1.msra.mxu0 %v1897
  %2146 = vmatprep.subr.mxu0 %v1905
  %2147 = vmatpush1.msra.mxu0 %v1904
  %2148 = vmatprep.subr.mxu0 %v1912
  %2149 = vmatpush1.msra.mxu0 %v1911
  %2150 = vmatprep.subr.mxu0 %v1919
  %2151 = vmatpush1.msra.mxu0 %v1918
  %2152 = vmatprep.subr.mxu0 %v1926
  %2153 = vmatpush1.msra.mxu0 %v1925
  %2154 = vmatprep.subr.mxu0 %v1933
  %2155 = vmatpush1.msra.mxu0 %v1932
  %2156 = vmatprep.subr.mxu0 %v1940
  %2157 = vmatpush1.msra.mxu0 %v1939
  %2158 = vmatprep.subr.mxu0 %v1947
  %2159 = vmatpush1.msra.mxu0 %v1946
  %2160 = vmatprep.subr.mxu0 %v1954
  %2161 = vmatpush1.msra.mxu0 %v1953
  %2162 = vmatprep.subr.mxu0 %v1961
  %2163 = vmatpush1.msra.mxu0 %v1960
  %2164 = vmatprep.subr.mxu0 %v1968
  %2165 = vmatpush1.msra.mxu0 %v1967
  %2166 = vmatprep.subr.mxu0 %v1975
  %2167 = vmatpush1.msra.mxu0 %v1974
  %2168 = vmatprep.subr.mxu0 %v1982
  %2169 = vmatpush1.msra.mxu0 %v1981
  %2170 = vmatprep.subr.mxu0 %v1989
  %2171 = vmatpush1.msra.mxu0 %v1988
  %2172 = vmatprep.subr.mxu0 %v1996
  %2173 = vmatpush1.msra.mxu0 %v1995
  %2174 = vmatprep.mubr.f32.mxu0 %v1553
  %2175 = vmatmul.mubr.f32.gmra.mrb[0].mxu0 %v1552
  %v2176 = vpop.f32.mrb[0].mxu0
  %v2177 = vadd.f32 %v2106, %v2176
  %v2178 = vpop.f32.mrb[0].mxu0
  %v2179 = vadd.f32 %v2108, %v2178
  %2180 = vdwg.mxu0
  %2181 = vmatprep.subr.mxu0 %v1557
  %2182 = vmatpush1.msra.mxu0 %v1556
  %2183 = vmatprep.subr.mxu0 %v1564
  %2184 = vmatpush1.msra.mxu0 %v1563
  %2185 = vmatprep.subr.mxu0 %v1571
  %2186 = vmatpush1.msra.mxu0 %v1570
  %2187 = vmatprep.subr.mxu0 %v1578
  %2188 = vmatpush1.msra.mxu0 %v1577
  %2189 = vmatprep.subr.mxu0 %v1585
  %2190 = vmatpush1.msra.mxu0 %v1584
  %2191 = vmatprep.subr.mxu0 %v1592
  %2192 = vmatpush1.msra.mxu0 %v1591
  %2193 = vmatprep.subr.mxu0 %v1599
  %2194 = vmatpush1.msra.mxu0 %v1598
  %2195 = vmatprep.subr.mxu0 %v1606
  %2196 = vmatpush1.msra.mxu0 %v1605
  %2197 = vmatprep.subr.mxu0 %v1613
  %2198 = vmatpush1.msra.mxu0 %v1612
  %2199 = vmatprep.subr.mxu0 %v1620
  %2200 = vmatpush1.msra.mxu0 %v1619
  %2201 = vmatprep.subr.mxu0 %v1627
  %2202 = vmatpush1.msra.mxu0 %v1626
  %2203 = vmatprep.subr.mxu0 %v1634
  %2204 = vmatpush1.msra.mxu0 %v1633
  %2205 = vmatprep.subr.mxu0 %v1641
  %2206 = vmatpush1.msra.mxu0 %v1640
  %2207 = vmatprep.subr.mxu0 %v1648
  %2208 = vmatpush1.msra.mxu0 %v1647
  %2209 = vmatprep.subr.mxu0 %v1655
  %2210 = vmatpush1.msra.mxu0 %v1654
  %2211 = vmatprep.subr.mxu0 %v1662
  %2212 = vmatpush1.msra.mxu0 %v1661
  %2213 = vmatprep.subr.mxu0 %v1669
  %2214 = vmatpush1.msra.mxu0 %v1668
  %2215 = vmatprep.subr.mxu0 %v1676
  %2216 = vmatpush1.msra.mxu0 %v1675
  %2217 = vmatprep.subr.mxu0 %v1683
  %2218 = vmatpush1.msra.mxu0 %v1682
  %2219 = vmatprep.subr.mxu0 %v1690
  %2220 = vmatpush1.msra.mxu0 %v1689
  %2221 = vmatprep.subr.mxu0 %v1697
  %2222 = vmatpush1.msra.mxu0 %v1696
  %2223 = vmatprep.subr.mxu0 %v1704
  %2224 = vmatpush1.msra.mxu0 %v1703
  %2225 = vmatprep.subr.mxu0 %v1711
  %2226 = vmatpush1.msra.mxu0 %v1710
  %2227 = vmatprep.subr.mxu0 %v1718
  %2228 = vmatpush1.msra.mxu0 %v1717
  %2229 = vmatprep.subr.mxu0 %v1725
  %2230 = vmatpush1.msra.mxu0 %v1724
  %2231 = vmatprep.subr.mxu0 %v1732
  %2232 = vmatpush1.msra.mxu0 %v1731
  %2233 = vmatprep.subr.mxu0 %v1739
  %2234 = vmatpush1.msra.mxu0 %v1738
  %2235 = vmatprep.subr.mxu0 %v1746
  %2236 = vmatpush1.msra.mxu0 %v1745
  %2237 = vmatprep.subr.mxu0 %v1753
  %2238 = vmatpush1.msra.mxu0 %v1752
  %2239 = vmatprep.subr.mxu0 %v1760
  %2240 = vmatpush1.msra.mxu0 %v1759
  %2241 = vmatprep.subr.mxu0 %v1767
  %2242 = vmatpush1.msra.mxu0 %v1766
  %2243 = vmatprep.subr.mxu0 %v1774
  %2244 = vmatpush1.msra.mxu0 %v1773
  %2245 = vmatprep.mubr.f32.mxu0 %v1551
  %2246 = vmatmul.mubr.f32.gmra.mrb[0].mxu0 %v1550
  %v2247 = vpop.f32.mrb[0].mxu0
  %v2248 = vadd.f32 %v2015, %v2247
  %v2249 = vpop.f32.mrb[0].mxu0
  %v2250 = vadd.f32 %v2019, %v2249
  %2251 = vdwg.mxu0
  %2252 = vmatprep.subr.mxu0 %v1781
  %2253 = vmatpush1.msra.mxu0 %v1780
  %2254 = vmatprep.subr.mxu0 %v1788
  %2255 = vmatpush1.msra.mxu0 %v1787
  %2256 = vmatprep.subr.mxu0 %v1795
  %2257 = vmatpush1.msra.mxu0 %v1794
  %2258 = vmatprep.subr.mxu0 %v1802
  %2259 = vmatpush1.msra.mxu0 %v1801
  %2260 = vmatprep.subr.mxu0 %v1809
  %2261 = vmatpush1.msra.mxu0 %v1808
  %2262 = vmatprep.subr.mxu0 %v1816
  %2263 = vmatpush1.msra.mxu0 %v1815
  %2264 = vmatprep.subr.mxu0 %v1823
  %2265 = vmatpush1.msra.mxu0 %v1822
  %2266 = vmatprep.subr.mxu0 %v1830
  %2267 = vmatpush1.msra.mxu0 %v1829
  %2268 = vmatprep.subr.mxu0 %v1837
  %2269 = vmatpush1.msra.mxu0 %v1836
  %2270 = vmatprep.subr.mxu0 %v1844
  %2271 = vmatpush1.msra.mxu0 %v1843
  %2272 = vmatprep.subr.mxu0 %v1851
  %2273 = vmatpush1.msra.mxu0 %v1850
  %2274 = vmatprep.subr.mxu0 %v1858
  %2275 = vmatpush1.msra.mxu0 %v1857
  %2276 = vmatprep.subr.mxu0 %v1865
  %2277 = vmatpush1.msra.mxu0 %v1864
  %2278 = vmatprep.subr.mxu0 %v1872
  %2279 = vmatpush1.msra.mxu0 %v1871
  %2280 = vmatprep.subr.mxu0 %v1879
  %2281 = vmatpush1.msra.mxu0 %v1878
  %2282 = vmatprep.subr.mxu0 %v1886
  %2283 = vmatpush1.msra.mxu0 %v1885
  %2284 = vmatprep.subr.mxu0 %v1893
  %2285 = vmatpush1.msra.mxu0 %v1892
  %2286 = vmatprep.subr.mxu0 %v1900
  %2287 = vmatpush1.msra.mxu0 %v1899
  %2288 = vmatprep.subr.mxu0 %v1907
  %2289 = vmatpush1.msra.mxu0 %v1906
  %2290 = vmatprep.subr.mxu0 %v1914
  %2291 = vmatpush1.msra.mxu0 %v1913
  %2292 = vmatprep.subr.mxu0 %v1921
  %2293 = vmatpush1.msra.mxu0 %v1920
  %2294 = vmatprep.subr.mxu0 %v1928
  %2295 = vmatpush1.msra.mxu0 %v1927
  %2296 = vmatprep.subr.mxu0 %v1935
  %2297 = vmatpush1.msra.mxu0 %v1934
  %2298 = vmatprep.subr.mxu0 %v1942
  %2299 = vmatpush1.msra.mxu0 %v1941
  %2300 = vmatprep.subr.mxu0 %v1949
  %2301 = vmatpush1.msra.mxu0 %v1948
  %2302 = vmatprep.subr.mxu0 %v1956
  %2303 = vmatpush1.msra.mxu0 %v1955
  %2304 = vmatprep.subr.mxu0 %v1963
  %2305 = vmatpush1.msra.mxu0 %v1962
  %2306 = vmatprep.subr.mxu0 %v1970
  %2307 = vmatpush1.msra.mxu0 %v1969
  %2308 = vmatprep.subr.mxu0 %v1977
  %2309 = vmatpush1.msra.mxu0 %v1976
  %2310 = vmatprep.subr.mxu0 %v1984
  %2311 = vmatpush1.msra.mxu0 %v1983
  %2312 = vmatprep.subr.mxu0 %v1991
  %2313 = vmatpush1.msra.mxu0 %v1990
  %2314 = vmatprep.subr.mxu0 %v1998
  %2315 = vmatpush1.msra.mxu0 %v1997
  %2316 = vmatprep.mubr.f32.mxu0 %v1553
  %2317 = vmatmul.mubr.f32.gmra.mrb[0].mxu0 %v1552
  %v2318 = vpop.f32.mrb[0].mxu0
  %v2319 = vadd.f32 %v2248, %v2318
  %v2320 = vpop.f32.mrb[0].mxu0
  %v2321 = vadd.f32 %v2250, %v2320
  %2322 = vdwg.mxu0
  %2323 = vmatprep.subr.mxu0 %v1559
  %2324 = vmatpush1.msra.mxu0 %v1558
  %2325 = vmatprep.subr.mxu0 %v1566
  %2326 = vmatpush1.msra.mxu0 %v1565
  %2327 = vmatprep.subr.mxu0 %v1573
  %2328 = vmatpush1.msra.mxu0 %v1572
  %2329 = vmatprep.subr.mxu0 %v1580
  %2330 = vmatpush1.msra.mxu0 %v1579
  %2331 = vmatprep.subr.mxu0 %v1587
  %2332 = vmatpush1.msra.mxu0 %v1586
  %2333 = vmatprep.subr.mxu0 %v1594
  %2334 = vmatpush1.msra.mxu0 %v1593
  %2335 = vmatprep.subr.mxu0 %v1601
  %2336 = vmatpush1.msra.mxu0 %v1600
  %2337 = vmatprep.subr.mxu0 %v1608
  %2338 = vmatpush1.msra.mxu0 %v1607
  %2339 = vmatprep.subr.mxu0 %v1615
  %2340 = vmatpush1.msra.mxu0 %v1614
  %2341 = vmatprep.subr.mxu0 %v1622
  %2342 = vmatpush1.msra.mxu0 %v1621
  %2343 = vmatprep.subr.mxu0 %v1629
  %2344 = vmatpush1.msra.mxu0 %v1628
  %2345 = vmatprep.subr.mxu0 %v1636
  %2346 = vmatpush1.msra.mxu0 %v1635
  %2347 = vmatprep.subr.mxu0 %v1643
  %2348 = vmatpush1.msra.mxu0 %v1642
  %2349 = vmatprep.subr.mxu0 %v1650
  %2350 = vmatpush1.msra.mxu0 %v1649
  %2351 = vmatprep.subr.mxu0 %v1657
  %2352 = vmatpush1.msra.mxu0 %v1656
  %2353 = vmatprep.subr.mxu0 %v1664
  %2354 = vmatpush1.msra.mxu0 %v1663
  %2355 = vmatprep.subr.mxu0 %v1671
  %2356 = vmatpush1.msra.mxu0 %v1670
  %2357 = vmatprep.subr.mxu0 %v1678
  %2358 = vmatpush1.msra.mxu0 %v1677
  %2359 = vmatprep.subr.mxu0 %v1685
  %2360 = vmatpush1.msra.mxu0 %v1684
  %2361 = vmatprep.subr.mxu0 %v1692
  %2362 = vmatpush1.msra.mxu0 %v1691
  %2363 = vmatprep.subr.mxu0 %v1699
  %2364 = vmatpush1.msra.mxu0 %v1698
  %2365 = vmatprep.subr.mxu0 %v1706
  %2366 = vmatpush1.msra.mxu0 %v1705
  %2367 = vmatprep.subr.mxu0 %v1713
  %2368 = vmatpush1.msra.mxu0 %v1712
  %2369 = vmatprep.subr.mxu0 %v1720
  %2370 = vmatpush1.msra.mxu0 %v1719
  %2371 = vmatprep.subr.mxu0 %v1727
  %2372 = vmatpush1.msra.mxu0 %v1726
  %2373 = vmatprep.subr.mxu0 %v1734
  %2374 = vmatpush1.msra.mxu0 %v1733
  %2375 = vmatprep.subr.mxu0 %v1741
  %2376 = vmatpush1.msra.mxu0 %v1740
  %2377 = vmatprep.subr.mxu0 %v1748
  %2378 = vmatpush1.msra.mxu0 %v1747
  %2379 = vmatprep.subr.mxu0 %v1755
  %2380 = vmatpush1.msra.mxu0 %v1754
  %2381 = vmatprep.subr.mxu0 %v1762
  %2382 = vmatpush1.msra.mxu0 %v1761
  %2383 = vmatprep.subr.mxu0 %v1769
  %2384 = vmatpush1.msra.mxu0 %v1768
  %2385 = vmatprep.subr.mxu0 %v1776
  %2386 = vmatpush1.msra.mxu0 %v1775
  %2387 = vmatprep.mubr.f32.mxu0 %v1551
  %2388 = vmatmul.mubr.f32.gmra.mrb[0].mxu0 %v1550
  %v2389 = vpop.f32.mrb[0].mxu0
  %v2390 = vadd.f32 %v2023, %v2389
  %v2391 = vpop.f32.mrb[0].mxu0
  %v2392 = vadd.f32 %v2027, %v2391
  %2393 = vdwg.mxu0
  %2394 = vmatprep.subr.mxu0 %v1783
  %2395 = vmatpush1.msra.mxu0 %v1782
  %2396 = vmatprep.subr.mxu0 %v1790
  %2397 = vmatpush1.msra.mxu0 %v1789
  %2398 = vmatprep.subr.mxu0 %v1797
  %2399 = vmatpush1.msra.mxu0 %v1796
  %2400 = vmatprep.subr.mxu0 %v1804
  %2401 = vmatpush1.msra.mxu0 %v1803
  %2402 = vmatprep.subr.mxu0 %v1811
  %2403 = vmatpush1.msra.mxu0 %v1810
  %2404 = vmatprep.subr.mxu0 %v1818
  %2405 = vmatpush1.msra.mxu0 %v1817
  %2406 = vmatprep.subr.mxu0 %v1825
  %2407 = vmatpush1.msra.mxu0 %v1824
  %2408 = vmatprep.subr.mxu0 %v1832
  %2409 = vmatpush1.msra.mxu0 %v1831
  %2410 = vmatprep.subr.mxu0 %v1839
  %2411 = vmatpush1.msra.mxu0 %v1838
  %2412 = vmatprep.subr.mxu0 %v1846
  %2413 = vmatpush1.msra.mxu0 %v1845
  %2414 = vmatprep.subr.mxu0 %v1853
  %2415 = vmatpush1.msra.mxu0 %v1852
  %2416 = vmatprep.subr.mxu0 %v1860
  %2417 = vmatpush1.msra.mxu0 %v1859
  %2418 = vmatprep.subr.mxu0 %v1867
  %2419 = vmatpush1.msra.mxu0 %v1866
  %2420 = vmatprep.subr.mxu0 %v1874
  %2421 = vmatpush1.msra.mxu0 %v1873
  %2422 = vmatprep.subr.mxu0 %v1881
  %2423 = vmatpush1.msra.mxu0 %v1880
  %2424 = vmatprep.subr.mxu0 %v1888
  %2425 = vmatpush1.msra.mxu0 %v1887
  %2426 = vmatprep.subr.mxu0 %v1895
  %2427 = vmatpush1.msra.mxu0 %v1894
  %2428 = vmatprep.subr.mxu0 %v1902
  %2429 = vmatpush1.msra.mxu0 %v1901
  %2430 = vmatprep.subr.mxu0 %v1909
  %2431 = vmatpush1.msra.mxu0 %v1908
  %2432 = vmatprep.subr.mxu0 %v1916
  %2433 = vmatpush1.msra.mxu0 %v1915
  %2434 = vmatprep.subr.mxu0 %v1923
  %2435 = vmatpush1.msra.mxu0 %v1922
  %2436 = vmatprep.subr.mxu0 %v1930
  %2437 = vmatpush1.msra.mxu0 %v1929
  %2438 = vmatprep.subr.mxu0 %v1937
  %2439 = vmatpush1.msra.mxu0 %v1936
  %2440 = vmatprep.subr.mxu0 %v1944
  %2441 = vmatpush1.msra.mxu0 %v1943
  %2442 = vmatprep.subr.mxu0 %v1951
  %2443 = vmatpush1.msra.mxu0 %v1950
  %2444 = vmatprep.subr.mxu0 %v1958
  %2445 = vmatpush1.msra.mxu0 %v1957
  %2446 = vmatprep.subr.mxu0 %v1965
  %2447 = vmatpush1.msra.mxu0 %v1964
  %2448 = vmatprep.subr.mxu0 %v1972
  %2449 = vmatpush1.msra.mxu0 %v1971
  %2450 = vmatprep.subr.mxu0 %v1979
  %2451 = vmatpush1.msra.mxu0 %v1978
  %2452 = vmatprep.subr.mxu0 %v1986
  %2453 = vmatpush1.msra.mxu0 %v1985
  %2454 = vmatprep.subr.mxu0 %v1993
  %2455 = vmatpush1.msra.mxu0 %v1992
  %2456 = vmatprep.subr.mxu0 %v2000
  %2457 = vmatpush1.msra.mxu0 %v1999
  %2458 = vmatprep.mubr.f32.mxu0 %v1553
  %2459 = vmatmul.mubr.f32.gmra.mrb[0].mxu0 %v1552
  %v2460 = vpop.f32.mrb[0].mxu0
  %v2461 = vadd.f32 %v2390, %v2460
  %v2462 = vpop.f32.mrb[0].mxu0
  %v2463 = vadd.f32 %v2392, %v2462
  %2464 = vdwg.mxu0
  %2465 = vmatprep.subr.mxu0 0.0
  %2466 = vmatpush1.msra.mxu0 %v1560
  %2467 = vmatprep.subr.mxu0 0.0
  %2468 = vmatpush1.msra.mxu0 %v1567
  %2469 = vmatprep.subr.mxu0 0.0
  %2470 = vmatpush1.msra.mxu0 %v1574
  %2471 = vmatprep.subr.mxu0 0.0
  %2472 = vmatpush1.msra.mxu0 %v1581
  %2473 = vmatprep.subr.mxu0 0.0
  %2474 = vmatpush1.msra.mxu0 %v1588
  %2475 = vmatprep.subr.mxu0 0.0
  %2476 = vmatpush1.msra.mxu0 %v1595
  %2477 = vmatprep.subr.mxu0 0.0
  %2478 = vmatpush1.msra.mxu0 %v1602
  %2479 = vmatprep.subr.mxu0 0.0
  %2480 = vmatpush1.msra.mxu0 %v1609
  %2481 = vmatprep.subr.mxu0 0.0
  %2482 = vmatpush1.msra.mxu0 %v1616
  %2483 = vmatprep.subr.mxu0 0.0
  %2484 = vmatpush1.msra.mxu0 %v1623
  %2485 = vmatprep.subr.mxu0 0.0
  %2486 = vmatpush1.msra.mxu0 %v1630
  %2487 = vmatprep.subr.mxu0 0.0
  %2488 = vmatpush1.msra.mxu0 %v1637
  %2489 = vmatprep.subr.mxu0 0.0
  %2490 = vmatpush1.msra.mxu0 %v1644
  %2491 = vmatprep.subr.mxu0 0.0
  %2492 = vmatpush1.msra.mxu0 %v1651
  %2493 = vmatprep.subr.mxu0 0.0
  %2494 = vmatpush1.msra.mxu0 %v1658
  %2495 = vmatprep.subr.mxu0 0.0
  %2496 = vmatpush1.msra.mxu0 %v1665
  %2497 = vmatprep.subr.mxu0 0.0
  %2498 = vmatpush1.msra.mxu0 %v1672
  %2499 = vmatprep.subr.mxu0 0.0
  %2500 = vmatpush1.msra.mxu0 %v1679
  %2501 = vmatprep.subr.mxu0 0.0
  %2502 = vmatpush1.msra.mxu0 %v1686
  %2503 = vmatprep.subr.mxu0 0.0
  %2504 = vmatpush1.msra.mxu0 %v1693
  %2505 = vmatprep.subr.mxu0 0.0
  %2506 = vmatpush1.msra.mxu0 %v1700
  %2507 = vmatprep.subr.mxu0 0.0
  %2508 = vmatpush1.msra.mxu0 %v1707
  %2509 = vmatprep.subr.mxu0 0.0
  %2510 = vmatpush1.msra.mxu0 %v1714
  %2511 = vmatprep.subr.mxu0 0.0
  %2512 = vmatpush1.msra.mxu0 %v1721
  %2513 = vmatprep.subr.mxu0 0.0
  %2514 = vmatpush1.msra.mxu0 %v1728
  %2515 = vmatprep.subr.mxu0 0.0
  %2516 = vmatpush1.msra.mxu0 %v1735
  %2517 = vmatprep.subr.mxu0 0.0
  %2518 = vmatpush1.msra.mxu0 %v1742
  %2519 = vmatprep.subr.mxu0 0.0
  %2520 = vmatpush1.msra.mxu0 %v1749
  %2521 = vmatprep.subr.mxu0 0.0
  %2522 = vmatpush1.msra.mxu0 %v1756
  %2523 = vmatprep.subr.mxu0 0.0
  %2524 = vmatpush1.msra.mxu0 %v1763
  %2525 = vmatprep.subr.mxu0 0.0
  %2526 = vmatpush1.msra.mxu0 %v1770
  %2527 = vmatprep.subr.mxu0 0.0
  %2528 = vmatpush1.msra.mxu0 %v1777
  %2529 = vmatprep.mubr.f32.mxu0 %v1551
  %2530 = vmatmul.mubr.f32.gmra.mrb[0].mxu0 %v1550
  %v2531 = vpop.f32.mrb[0].mxu0
  %v2532 = vadd.f32 %v2031, %v2531
  %v2533 = vpop.f32.mrb[0].mxu0
  %2534 = vdwg.mxu0
  %2535 = vmatprep.subr.mxu0 0.0
  %2536 = vmatpush1.msra.mxu0 %v1784
  %2537 = vmatprep.subr.mxu0 0.0
  %2538 = vmatpush1.msra.mxu0 %v1791
  %2539 = vmatprep.subr.mxu0 0.0
  %2540 = vmatpush1.msra.mxu0 %v1798
  %2541 = vmatprep.subr.mxu0 0.0
  %2542 = vmatpush1.msra.mxu0 %v1805
  %2543 = vmatprep.subr.mxu0 0.0
  %2544 = vmatpush1.msra.mxu0 %v1812
  %2545 = vmatprep.subr.mxu0 0.0
  %2546 = vmatpush1.msra.mxu0 %v1819
  %2547 = vmatprep.subr.mxu0 0.0
  %2548 = vmatpush1.msra.mxu0 %v1826
  %2549 = vmatprep.subr.mxu0 0.0
  %2550 = vmatpush1.msra.mxu0 %v1833
  %2551 = vmatprep.subr.mxu0 0.0
  %2552 = vmatpush1.msra.mxu0 %v1840
  %2553 = vmatprep.subr.mxu0 0.0
  %2554 = vmatpush1.msra.mxu0 %v1847
  %2555 = vmatprep.subr.mxu0 0.0
  %2556 = vmatpush1.msra.mxu0 %v1854
  %2557 = vmatprep.subr.mxu0 0.0
  %2558 = vmatpush1.msra.mxu0 %v1861
  %2559 = vmatprep.subr.mxu0 0.0
  %2560 = vmatpush1.msra.mxu0 %v1868
  %2561 = vmatprep.subr.mxu0 0.0
  %2562 = vmatpush1.msra.mxu0 %v1875
  %2563 = vmatprep.subr.mxu0 0.0
  %2564 = vmatpush1.msra.mxu0 %v1882
  %2565 = vmatprep.subr.mxu0 0.0
  %2566 = vmatpush1.msra.mxu0 %v1889
  %2567 = vmatprep.subr.mxu0 0.0
  %2568 = vmatpush1.msra.mxu0 %v1896
  %2569 = vmatprep.subr.mxu0 0.0
  %2570 = vmatpush1.msra.mxu0 %v1903
  %2571 = vmatprep.subr.mxu0 0.0
  %2572 = vmatpush1.msra.mxu0 %v1910
  %2573 = vmatprep.subr.mxu0 0.0
  %2574 = vmatpush1.msra.mxu0 %v1917
  %2575 = vmatprep.subr.mxu0 0.0
  %2576 = vmatpush1.msra.mxu0 %v1924
  %2577 = vmatprep.subr.mxu0 0.0
  %2578 = vmatpush1.msra.mxu0 %v1931
  %2579 = vmatprep.subr.mxu0 0.0
  %2580 = vmatpush1.msra.mxu0 %v1938
  %2581 = vmatprep.subr.mxu0 0.0
  %2582 = vmatpush1.msra.mxu0 %v1945
  %2583 = vmatprep.subr.mxu0 0.0
  %2584 = vmatpush1.msra.mxu0 %v1952
  %2585 = vmatprep.subr.mxu0 0.0
  %2586 = vmatpush1.msra.mxu0 %v1959
  %2587 = vmatprep.subr.mxu0 0.0
  %2588 = vmatpush1.msra.mxu0 %v1966
  %2589 = vmatprep.subr.mxu0 0.0
  %2590 = vmatpush1.msra.mxu0 %v1973
  %2591 = vmatprep.subr.mxu0 0.0
  %2592 = vmatpush1.msra.mxu0 %v1980
  %2593 = vmatprep.subr.mxu0 0.0
  %2594 = vmatpush1.msra.mxu0 %v1987
  %2595 = vmatprep.subr.mxu0 0.0
  %2596 = vmatpush1.msra.mxu0 %v1994
  %2597 = vmatprep.subr.mxu0 0.0
  %2598 = vmatpush1.msra.mxu0 %v2001
  %2599 = vmatprep.mubr.f32.mxu0 %v1553
  %2600 = vmatmul.mubr.f32.gmra.mrb[0].mxu0 %v1552
  %v2601 = vpop.f32.mrb[0].mxu0
  %v2602 = vadd.f32 %v2532, %v2601
  %v2603 = vpop.f32.mrb[0].mxu0
  %2604 = vdwg.mxu0
  %v2605 = vxor.u32 %v2177, 2147483648
  %v2606 = vxor.u32 %v2179, 2147483648
  %v2607 = vxor.u32 %v2319, 2147483648
  %v2608 = vxor.u32 %v2321, 2147483648
  %v2609 = vxor.u32 %v2461, 2147483648
  %v2610 = vxor.u32 %v2463, 2147483648
  %v2611 = vxor.u32 %v2602, 2147483648
  %v2612 = vmul.f32 %v2605, 1.442695
  %v2613 = vpow.pop %v2612
  %v2614 = vmul.f32 %v2606, 1.442695
  %v2615 = vpow.pop %v2614
  %v2616 = vmul.f32 %v2607, 1.442695
  %v2617 = vpow.pop %v2616
  %v2618 = vmul.f32 %v2608, 1.442695
  %v2619 = vpow.pop %v2618
  %v2620 = vmul.f32 %v2609, 1.442695
  %v2621 = vpow.pop %v2620
  %v2622 = vmul.f32 %v2610, 1.442695
  %v2623 = vpow.pop %v2622
  %v2624 = vmul.f32 %v2611, 1.442695
  %v2625 = vpow.pop %v2624
  %v2626 = vadd.f32 %v2613, 1.0
  %v2627 = vadd.f32 %v2615, 1.0
  %v2628 = vadd.f32 %v2617, 1.0
  %v2629 = vadd.f32 %v2619, 1.0
  %v2630 = vadd.f32 %v2621, 1.0
  %v2631 = vadd.f32 %v2623, 1.0
  %v2632 = vadd.f32 %v2625, 1.0
  %v2633 = vrcp.pop %v2626
  %v2634 = vmul.f32 1.0, %v2633
  %v2635 = vrcp.pop %v2627
  %v2636 = vmul.f32 1.0, %v2635
  %v2637 = vrcp.pop %v2628
  %v2638 = vmul.f32 1.0, %v2637
  %v2639 = vrcp.pop %v2629
  %v2640 = vmul.f32 1.0, %v2639
  %v2641 = vrcp.pop %v2630
  %v2642 = vmul.f32 1.0, %v2641
  %v2643 = vrcp.pop %v2631
  %v2644 = vmul.f32 1.0, %v2643
  %v2645 = vrcp.pop %v2632
  %v2646 = vmul.f32 1.0, %v2645
  %2647 = vst [vmem:[%s10] sm:$0xff] %v2634
  %2648 = vst [vmem:[%s10 + $0x8] sm:$0xff] %v2636
  %2649 = vst [vmem:[%s10 + $0x10] sm:$0xff] %v2638
  %2650 = vst [vmem:[%s10 + $0x18] sm:$0xff] %v2640
  %2651 = vst [vmem:[%s10 + $0x20] sm:$0xff] %v2642
  %2652 = vst [vmem:[%s10 + $0x28] sm:$0xff] %v2644
  %2653 = vst.msk [vmem:[%s10 + $0x30] sm:$0xff] %vm458, %v2646
  %2654 = vst [vmem:[%s11] sm:$0xff] %v1312
  %2655 = vst [vmem:[%s11 + $0x8] sm:$0xff] %v1314
  // Predicated region
  $region42: #{vae_forward.1} parent=0 // pred_check
    _
  $region43: #{vae_forward.1} parent=0 // pred_check_branch
    %2657 = sbr.rel (0) target = $region45
  $region44: #{vae_forward.1} parent=0 // pred_region
    _
  $region45: #{vae_forward.1} parent=0 // pred_fallthru
    _
  // Predicated region
  $region46: #{vae_forward.1} parent=0 // pred_check
    _
  $region47: #{vae_forward.1} parent=0 // pred_check_branch
    %2659 = sbr.rel (0) target = $region49
  $region48: #{vae_forward.1} parent=0 // pred_region
    _
  $region49: #{vae_forward.1} parent=0 // pred_fallthru
    _
  // Predicated region
  $region50: #{vae_forward.1} parent=0 // pred_check
    _
  $region51: #{vae_forward.1} parent=0 // pred_check_branch
    %2661 = sbr.rel (0) target = $region53
  $region52: #{vae_forward.1} parent=0 // pred_region
    _
  $region53: #{vae_forward.1} parent=0 // pred_fallthru
    _
  // Predicated region
  $region54: #{vae_forward.1} parent=0 // pred_check
    _
  $region55: #{vae_forward.1} parent=0 // pred_check_branch
    %2663 = sbr.rel (0) target = $region57
  $region56: #{vae_forward.1} parent=0 // pred_region
    _
  $region57: #{vae_forward.1} parent=0 // pred_fallthru
    _

</llo_original>
